<compile_context>
chip_gen: v6e
topology: v6e:2x2x1
jax: 0.10.0
libtpu: 0.0.40
codegen_flags: <defaults>
</compile_context>

<pallas_src>
import jax
import jax.numpy as jnp
from jax.experimental import pallas as pl
from jax.experimental.pallas import tpu as pltpu


# ---------------------------------------------------------------------------
# Wrapper-side construction of lane-interleaved "banded" weight matrices.
# Activation layout: pixel x[h, w, c] of image n lives at
#   act[row, n*W*C + w*C + c]
# (band matrices only encode width/channel mixing per height tap, so they are
#  independent of the phase-stacked row ordering used at full resolution).
# ---------------------------------------------------------------------------
def _bias_row(b, reps):
    """Per-channel bias broadcast over (phase x batch x width) lane slots."""
    return jnp.tile(b.astype(jnp.float32), reps).reshape(1, reps * b.shape[0])


def _band_s1_fused(w_oihw, wpix, nb):
    """3x3 / stride 1 / pad 1 conv as one (3*nb*wpix*Cin, nb*wpix*Cout) matrix.
    LHS lane blocks are [row h-1 | row h | row h+1]; edge width taps are
    truncated so no width padding is needed."""
    w = jnp.transpose(w_oihw, (2, 3, 1, 0)).astype(jnp.float32)   # (KH,KW,Cin,Cout)
    cin, cout = w.shape[2], w.shape[3]
    eye_n = jnp.eye(nb, dtype=jnp.float32)
    blocks = []
    for kh in range(3):
        m = jnp.zeros((wpix * cin, wpix * cout), jnp.float32)
        for kw in range(3):
            # input col i feeds output col j when i == j + kw - 1
            s = jnp.eye(wpix, wpix, k=1 - kw, dtype=jnp.float32)
            m = m + jnp.kron(s, w[kh, kw])
        blocks.append(jnp.kron(eye_n, m))                          # batch block-diag
    return jnp.concatenate(blocks, axis=0)


def _band_down_fused(w_oihw, win, nb):
    """3x3 / stride 2 / pad 1 conv (column stride folded in) as one
    (3*nb*win*Cin, nb*(win//2)*Cout) matrix; LHS lane blocks are
    [row 2i-1 | row 2i | row 2i+1]."""
    w = jnp.transpose(w_oihw, (2, 3, 1, 0)).astype(jnp.float32)
    cin, cout = w.shape[2], w.shape[3]
    wout = win // 2
    eye_n = jnp.eye(nb, dtype=jnp.float32)
    ii = jnp.arange(win)[:, None]
    jj = jnp.arange(wout)[None, :]
    blocks = []
    for kh in range(3):
        m = jnp.zeros((win * cin, wout * cout), jnp.float32)
        for kw in range(3):
            s = (ii == 2 * jj + kw - 1).astype(jnp.float32)
            m = m + jnp.kron(s, w[kh, kw])
        blocks.append(jnp.kron(eye_n, m))
    return jnp.concatenate(blocks, axis=0)


def _band_up_fused(w_iokk, win, nb):
    """ConvTranspose2d(k=6, stride=2, pad=2): both sub-pixel output row phases
    as ONE matmul.  Returns (3*nb*win*Cin, 2*nb*(2*win)*Cout); LHS lane blocks
    are [in row a-1 | a | a+1], output lane blocks are [phase 0 | phase 1]
    (output rows 2a / 2a+1)."""
    cin, cout = w_iokk.shape[0], w_iokk.shape[1]
    wout = 2 * win
    eye_n = jnp.eye(nb, dtype=jnp.float32)
    ii = jnp.arange(win)[:, None]      # unpadded input col
    cc = jnp.arange(wout)[None, :]     # output col

    def img_mat(p, th):
        m = jnp.zeros((win * cin, wout * cout), jnp.float32)
        for tw in range(3):
            for q in range(2):
                s = ((cc % 2 == q) & (ii == (cc - q) // 2 + tw - 1)).astype(jnp.float32)
                blk = w_iokk[:, :, 4 - 2 * th + p, 4 - 2 * tw + q].astype(jnp.float32)
                m = m + jnp.kron(s, blk)
        return m

    rows = []
    for th in range(3):
        rows.append(jnp.concatenate(
            [jnp.kron(eye_n, img_mat(0, th)), jnp.kron(eye_n, img_mat(1, th))], axis=1))
    return jnp.concatenate(rows, axis=0)


def _band_1x1(w_oihw, reps):
    w1 = w_oihw[:, :, 0, 0].T.astype(jnp.float32)                  # (Cin, Cout)
    return jnp.kron(jnp.eye(reps, dtype=jnp.float32), w1)


# ---------------------------------------------------------------------------
# The fused Pallas kernel (single invocation, everything VMEM-resident).
# ---------------------------------------------------------------------------
def _make_kernel(H, W, C, N):
    Hh = H // 2
    Lf = N * W * C                 # full-res lane width  (128 here)
    Lh = N * (W // 2) * C          # half-res lane width  (64 here)
    f32, bf16 = jnp.float32, jnp.bfloat16

    def kernel(x_ref,
               r1m1, r1b1, r1m2, r1b2,
               dmat, dbias,
               r2am1, r2ab1, r2am2, r2ab2,
               r2bm1, r2bb1, r2bm2, r2bb2,
               umat, ubias,
               r3m1, r3b1, r3m2, r3b2,
               cmat, cbias,
               o_ref):

        def zrow(l):
            return jnp.zeros((1, l), f32)

        # spatially previous / next row for a half-res map in natural row order
        def prev_nat(a):
            return jnp.concatenate([zrow(a.shape[1]), a[:-1]], axis=0)

        def next_nat(a):
            return jnp.concatenate([a[1:], zrow(a.shape[1])], axis=0)

        # spatially previous / next row for a full-res map stored with
        # phase-stacked rows fs = [rows 0,2,..,H-2 ; rows 1,3,..,H-1]
        def prev_stacked(fs):
            l = fs.shape[1]
            return jnp.concatenate([zrow(l), fs[Hh:2 * Hh - 1], fs[:Hh]], axis=0)

        def next_stacked(fs):
            l = fs.shape[1]
            return jnp.concatenate([fs[Hh:], fs[1:Hh], zrow(l)], axis=0)

        def conv3(a, prev_fn, next_fn, mref, bref, relu):
            # one MXU matmul: K = 3 * lane_width, f32 accumulation + bias
            lhs = jnp.concatenate([prev_fn(a), a, next_fn(a)], axis=1).astype(bf16)
            acc = jnp.dot(lhs, mref[...], preferred_element_type=f32) + bref[...]
            return jnp.maximum(acc, 0.0) if relu else acc

        def resblock(a, prev_fn, next_fn, mA, bA, mB, bB):
            mid = conv3(a, prev_fn, next_fn, mA, bA, relu=True)
            return conv3(mid, prev_fn, next_fn, mB, bB, relu=False) + a

        x = x_ref[...].astype(f32)                     # (H, Lf), phase-stacked rows

        # ---- MB_RB1 (full resolution) -----------------------------------
        x_rb1 = resblock(x, prev_stacked, next_stacked, r1m1, r1b1, r1m2, r1b2)

        # ---- MB_Down: 3x3 / stride 2 / pad 1 (rows 2i-1, 2i, 2i+1 are just
        #      the first-half rows of prev_stacked / the two row halves) -----
        pv = prev_stacked(x_rb1)
        lhs_dn = jnp.concatenate([pv[:Hh], x_rb1[:Hh], x_rb1[Hh:]],
                                 axis=1).astype(bf16)               # (Hh, 3*Lf)
        x_down = jnp.dot(lhs_dn, dmat[...], preferred_element_type=f32) + dbias[...]

        # ---- MB_RB2 (two ResBlocks at half resolution) --------------------
        y = resblock(x_down, prev_nat, next_nat, r2am1, r2ab1, r2am2, r2ab2)
        y = resblock(y, prev_nat, next_nat, r2bm1, r2bb1, r2bm2, r2bb2)

        # ---- MB_Up: ConvTranspose2d(6, stride 2, pad 2).  One matmul gives
        #      both sub-pixel row phases in lanes [phase0 | phase1]; stacking
        #      the two lane halves along rows IS the phase-stacked layout. ----
        lhs_up = jnp.concatenate([prev_nat(y), y, next_nat(y)],
                                 axis=1).astype(bf16)               # (Hh, 3*Lh)
        up2 = jnp.dot(lhs_up, umat[...], preferred_element_type=f32) + ubias[...]
        x_up = jnp.concatenate([up2[:, :Lf], up2[:, Lf:]], axis=0)  # (H, Lf), f32

        x_pre = x_rb1 + x_up                                        # f32 residual

        # ---- MB_RB3 --------------------------------------------------------
        x_rb3 = resblock(x_pre, prev_stacked, next_stacked, r3m1, r3b1, r3m2, r3b2)

        # ---- MB_1x1conv + sigmoid (EUP exp + approximate reciprocal) -------
        logits = jnp.dot(x_rb3.astype(bf16), cmat[...],
                         preferred_element_type=f32) + cbias[...]
        o_ref[...] = pl.reciprocal(1.0 + jnp.exp(-logits), approx=True)

    return kernel


# ---------------------------------------------------------------------------
# Public entry point: NCHW in / NCHW out, PyTorch-layout parameters.
# ---------------------------------------------------------------------------
def mask_branch_down_up(x_nchw, params):
    N, C, H, W = x_nchw.shape
    assert H % 2 == 0 and W % 2 == 0, "even spatial sizes required (stride-2 path)"
    Hh, Wh = H // 2, W // 2
    Lf = N * W * C
    bf16 = jnp.bfloat16

    # NCHW -> (H, N*W*C) with phase-stacked rows [0,2,..,H-2, 1,3,..,H-1],
    # shipped as bf16 (halves the input DMA; MXU operands are bf16 anyway).
    x_t = jnp.transpose(x_nchw, (2, 0, 3, 1))                       # (H, N, W, C)
    x2d = (x_t.reshape(Hh, 2, N, W, C)
              .transpose(1, 0, 2, 3, 4)
              .reshape(H, Lf)
              .astype(bf16))

    def rb(p, wpix):
        w1, b1, w2, b2 = p
        reps = N * wpix
        return (_band_s1_fused(w1, wpix, N).astype(bf16), _bias_row(b1, reps),
                _band_s1_fused(w2, wpix, N).astype(bf16), _bias_row(b2, reps))

    w_dn, b_dn = params["down"]
    w_up, b_up = params["up"]
    w_c1, b_c1 = params["c1x1"]

    weights = (
        *rb(params["rb1"], W),
        _band_down_fused(w_dn, W, N).astype(bf16), _bias_row(b_dn, N * Wh),
        *rb(params["rb2a"], Wh),
        *rb(params["rb2b"], Wh),
        _band_up_fused(w_up, Wh, N).astype(bf16), _bias_row(b_up, 2 * N * W),
        *rb(params["rb3"], W),
        _band_1x1(w_c1, N * W).astype(bf16), _bias_row(b_c1, N * W),
    )

    act_spec = pl.BlockSpec((H, Lf), lambda i: (0, 0))
    w_specs = [pl.BlockSpec(w.shape, lambda i: (0, 0)) for w in weights]

    # NOTE: on v7x (2 TensorCores) a grid=(num_cores,) batch split would halve
    # wall-clock for large batches; at this size one lane-dense invocation is
    # the better trade on every generation.
    out2d = pl.pallas_call(
        _make_kernel(H, W, C, N),
        out_shape=jax.ShapeDtypeStruct((H, Lf), jnp.float32),
        grid=(1,),
        in_specs=[act_spec] + w_specs,
        out_specs=act_spec,
        compiler_params=pltpu.CompilerParams(
            dimension_semantics=("arbitrary",),
            vmem_limit_bytes=32 * 1024 * 1024),
    )(x2d, *weights)

    # un-stack the row phases and return to NCHW (plain XLA, outside kernel)
    o_t = (out2d.reshape(2, Hh, N, W, C)
                .transpose(1, 0, 2, 3, 4)
                .reshape(H, N, W, C))
    return jnp.transpose(o_t, (1, 3, 0, 2))


# ---------------------------------------------------------------------------
# Plain-JAX reference (independent lax.conv formulation) used for a self-check.
# ---------------------------------------------------------------------------
def _conv2d_ref(x, w_oihw, b, stride=1, padding=1):
    w = jnp.transpose(w_oihw, (2, 3, 1, 0))                         # HWIO
    out = jax.lax.conv_general_dilated(
        x, w, window_strides=(stride, stride),
        padding=((padding, padding), (padding, padding)),
        dimension_numbers=("NHWC", "HWIO", "NHWC"),
        precision=jax.lax.Precision.HIGHEST)
    return out + b


def _convT_ref(x, w_iokk, b):
    # ConvTranspose2d(k=6, stride=2, pad=2) == conv(dilated input, flipped w, pad 3)
    w = jnp.transpose(w_iokk, (2, 3, 0, 1))[::-1, ::-1]
    out = jax.lax.conv_general_dilated(
        x, w, window_strides=(1, 1),
        padding=((3, 3), (3, 3)),
        lhs_dilation=(2, 2),
        dimension_numbers=("NHWC", "HWIO", "NHWC"),
        precision=jax.lax.Precision.HIGHEST)
    return out + b


def _resblock_ref(x, p):
    w1, b1, w2, b2 = p
    h = jax.nn.relu(_conv2d_ref(x, w1, b1))
    return _conv2d_ref(h, w2, b2) + x


def reference_forward(x_nchw, params):
    x = jnp.transpose(x_nchw, (0, 2, 3, 1))
    x_rb1 = _resblock_ref(x, params["rb1"])
    x_down = _conv2d_ref(x_rb1, *params["down"], stride=2, padding=1)
    y = _resblock_ref(x_down, params["rb2a"])
    y = _resblock_ref(y, params["rb2b"])
    x_up = _convT_ref(y, *params["up"])
    x_pre = x_rb1 + x_up
    x_rb3 = _resblock_ref(x_pre, params["rb3"])
    w1, b1 = params["c1x1"]
    mx = jax.nn.sigmoid(_conv2d_ref(x_rb3, w1, b1, stride=1, padding=0))
    return jnp.transpose(mx, (0, 3, 1, 2))


# ---------------------------------------------------------------------------
# Deterministic parameter init (PyTorch layouts: Conv2d OIHW, ConvTranspose IOHW)
# ---------------------------------------------------------------------------
def init_params(key, c):
    keys = iter(jax.random.split(key, 32))

    def conv(k):
        w = jax.random.normal(next(keys), (c, c, k, k), jnp.float32) * 0.1
        b = jax.random.normal(next(keys), (c,), jnp.float32) * 0.01
        return w, b

    def resblock():
        w1, b1 = conv(3)
        w2, b2 = conv(3)
        return (w1, b1, w2, b2)

    params = {
        "rb1": resblock(),
        "down": conv(3),
        "rb2a": resblock(),
        "rb2b": resblock(),
        "rb3": resblock(),
        "c1x1": conv(1),
    }
    w_up = jax.random.normal(next(keys), (c, c, 6, 6), jnp.float32) * 0.1
    b_up = jax.random.normal(next(keys), (c,), jnp.float32) * 0.01
    params["up"] = (w_up, b_up)
    return params


if __name__ == "__main__":
    key = jax.random.PRNGKey(0)
    k_x, k_p = jax.random.split(key)

    N, C, H, W = 2, 4, 16, 16                          # n_feat = 4, kernel_size = 3
    x = jax.random.normal(k_x, (N, C, H, W), jnp.float32)
    params = init_params(k_p, C)

    fwd = jax.jit(lambda xx: mask_branch_down_up(xx, params))
    out = jax.block_until_ready(fwd(x))

    assert out.shape == (N, C, H, W), out.shape
    assert bool(jnp.all(jnp.isfinite(out)))
    # sigmoid range (small slack for the EUP approximate reciprocal epilogue)
    assert bool(jnp.all((out >= -1e-3) & (out <= 1.0 + 1e-3)))

    # Self-check against an independent plain-JAX (lax.conv) formulation.
    # bf16 MXU operands => expected drift ~1e-2 vs the f32 reference.
    ref = reference_forward(x, params)
    max_err = float(jnp.max(jnp.abs(out - ref)))
    assert max_err < 5e-2, f"max abs err vs reference: {max_err}"

    print("KERNEL_OK")
</pallas_src>

<mosaic_0001>
module attributes {stable_mosaic.version = 11 : i64} {
  func.func @kernel(%arg0: i32, %arg1: memref<16x128xbf16, #tpu.memory_space<vmem>>, %arg2: memref<384x128xbf16, #tpu.memory_space<vmem>>, %arg3: memref<1x128xf32, #tpu.memory_space<vmem>>, %arg4: memref<384x128xbf16, #tpu.memory_space<vmem>>, %arg5: memref<1x128xf32, #tpu.memory_space<vmem>>, %arg6: memref<384x64xbf16, #tpu.memory_space<vmem>>, %arg7: memref<1x64xf32, #tpu.memory_space<vmem>>, %arg8: memref<192x64xbf16, #tpu.memory_space<vmem>>, %arg9: memref<1x64xf32, #tpu.memory_space<vmem>>, %arg10: memref<192x64xbf16, #tpu.memory_space<vmem>>, %arg11: memref<1x64xf32, #tpu.memory_space<vmem>>, %arg12: memref<192x64xbf16, #tpu.memory_space<vmem>>, %arg13: memref<1x64xf32, #tpu.memory_space<vmem>>, %arg14: memref<192x64xbf16, #tpu.memory_space<vmem>>, %arg15: memref<1x64xf32, #tpu.memory_space<vmem>>, %arg16: memref<192x256xbf16, #tpu.memory_space<vmem>>, %arg17: memref<1x256xf32, #tpu.memory_space<vmem>>, %arg18: memref<384x128xbf16, #tpu.memory_space<vmem>>, %arg19: memref<1x128xf32, #tpu.memory_space<vmem>>, %arg20: memref<384x128xbf16, #tpu.memory_space<vmem>>, %arg21: memref<1x128xf32, #tpu.memory_space<vmem>>, %arg22: memref<128x128xbf16, #tpu.memory_space<vmem>>, %arg23: memref<1x128xf32, #tpu.memory_space<vmem>>, %arg24: memref<16x128xf32, #tpu.memory_space<vmem>>) attributes {dimension_semantics = [#tpu.dimension_semantics<arbitrary>], iteration_bounds = array<i64: 1>, scalar_prefetch = 0 : i64, scratch_operands = 0 : i64, tpu.core_type = #tpu.core_type<tc>, window_params = [{pipeline_mode = #tpu.pipeline_mode<synchronous>, transform_indices = @transform_0, window_bounds = array<i64: 16, 128>}, {pipeline_mode = #tpu.pipeline_mode<synchronous>, transform_indices = @transform_1, window_bounds = array<i64: 384, 128>}, {pipeline_mode = #tpu.pipeline_mode<synchronous>, transform_indices = @transform_2, window_bounds = array<i64: 1, 128>}, {pipeline_mode = #tpu.pipeline_mode<synchronous>, transform_indices = @transform_3, window_bounds = array<i64: 384, 128>}, {pipeline_mode = #tpu.pipeline_mode<synchronous>, transform_indices = @transform_4, window_bounds = array<i64: 1, 128>}, {pipeline_mode = #tpu.pipeline_mode<synchronous>, transform_indices = @transform_5, window_bounds = array<i64: 384, 64>}, {pipeline_mode = #tpu.pipeline_mode<synchronous>, transform_indices = @transform_6, window_bounds = array<i64: 1, 64>}, {pipeline_mode = #tpu.pipeline_mode<synchronous>, transform_indices = @transform_7, window_bounds = array<i64: 192, 64>}, {pipeline_mode = #tpu.pipeline_mode<synchronous>, transform_indices = @transform_8, window_bounds = array<i64: 1, 64>}, {pipeline_mode = #tpu.pipeline_mode<synchronous>, transform_indices = @transform_9, window_bounds = array<i64: 192, 64>}, {pipeline_mode = #tpu.pipeline_mode<synchronous>, transform_indices = @transform_10, window_bounds = array<i64: 1, 64>}, {pipeline_mode = #tpu.pipeline_mode<synchronous>, transform_indices = @transform_11, window_bounds = array<i64: 192, 64>}, {pipeline_mode = #tpu.pipeline_mode<synchronous>, transform_indices = @transform_12, window_bounds = array<i64: 1, 64>}, {pipeline_mode = #tpu.pipeline_mode<synchronous>, transform_indices = @transform_13, window_bounds = array<i64: 192, 64>}, {pipeline_mode = #tpu.pipeline_mode<synchronous>, transform_indices = @transform_14, window_bounds = array<i64: 1, 64>}, {pipeline_mode = #tpu.pipeline_mode<synchronous>, transform_indices = @transform_15, window_bounds = array<i64: 192, 256>}, {pipeline_mode = #tpu.pipeline_mode<synchronous>, transform_indices = @transform_16, window_bounds = array<i64: 1, 256>}, {pipeline_mode = #tpu.pipeline_mode<synchronous>, transform_indices = @transform_17, window_bounds = array<i64: 384, 128>}, {pipeline_mode = #tpu.pipeline_mode<synchronous>, transform_indices = @transform_18, window_bounds = array<i64: 1, 128>}, {pipeline_mode = #tpu.pipeline_mode<synchronous>, transform_indices = @transform_19, window_bounds = array<i64: 384, 128>}, {pipeline_mode = #tpu.pipeline_mode<synchronous>, transform_indices = @transform_20, window_bounds = array<i64: 1, 128>}, {pipeline_mode = #tpu.pipeline_mode<synchronous>, transform_indices = @transform_21, window_bounds = array<i64: 128, 128>}, {pipeline_mode = #tpu.pipeline_mode<synchronous>, transform_indices = @transform_22, window_bounds = array<i64: 1, 128>}, {pipeline_mode = #tpu.pipeline_mode<synchronous>, transform_indices = @transform_23, window_bounds = array<i64: 16, 128>}]} {
    %c0 = arith.constant 0 : index
    %c0_0 = arith.constant 0 : index
    %0 = vector.load %arg1[%c0, %c0_0] : memref<16x128xbf16, #tpu.memory_space<vmem>>, vector<16x128xbf16>
    %1 = arith.extf %0 : vector<16x128xbf16> to vector<16x128xf32>
    %cst = arith.constant 0.000000e+00 : f32
    %2 = vector.broadcast %cst : f32 to vector<1x128xf32>
    %3 = vector.extract_strided_slice %1 {offsets = [8, 0], sizes = [7, 128], strides = [1, 1]} : vector<16x128xf32> to vector<7x128xf32>
    %4 = vector.extract_strided_slice %1 {offsets = [0, 0], sizes = [8, 128], strides = [1, 1]} : vector<16x128xf32> to vector<8x128xf32>
    %5 = tpu.concatenate %2, %3, %4 in 0 : vector<1x128xf32>, vector<7x128xf32>, vector<8x128xf32> -> vector<16x128xf32>
    %6 = vector.extract_strided_slice %1 {offsets = [8, 0], sizes = [8, 128], strides = [1, 1]} : vector<16x128xf32> to vector<8x128xf32>
    %7 = vector.extract_strided_slice %1 {offsets = [1, 0], sizes = [7, 128], strides = [1, 1]} : vector<16x128xf32> to vector<7x128xf32>
    %cst_1 = arith.constant 0.000000e+00 : f32
    %8 = vector.broadcast %cst_1 : f32 to vector<1x128xf32>
    %9 = tpu.concatenate %6, %7, %8 in 0 : vector<8x128xf32>, vector<7x128xf32>, vector<1x128xf32> -> vector<16x128xf32>
    %10 = tpu.concatenate %5, %1, %9 in 1 : vector<16x128xf32>, vector<16x128xf32>, vector<16x128xf32> -> vector<16x384xf32>
    %11 = arith.truncf %10 : vector<16x384xf32> to vector<16x384xbf16>
    %c0_2 = arith.constant 0 : index
    %c0_3 = arith.constant 0 : index
    %12 = vector.load %arg2[%c0_2, %c0_3] : memref<384x128xbf16, #tpu.memory_space<vmem>>, vector<384x128xbf16>
    %cst_4 = arith.constant dense<0.000000e+00> : vector<16x128xf32>
    %13 = tpu.matmul %11, %12, %cst_4 {dimension_numbers = #tpu.dot_dimension_numbers<[1], [0], [0], [1], [0, 0, 1, 1], [], []>} : vector<16x384xbf16>, vector<384x128xbf16>, vector<16x128xf32> -> vector<16x128xf32>
    %c0_5 = arith.constant 0 : index
    %c0_6 = arith.constant 0 : index
    %14 = vector.load %arg3[%c0_5, %c0_6] : memref<1x128xf32, #tpu.memory_space<vmem>>, vector<1x128xf32>
    %15 = vector.broadcast %14 : vector<1x128xf32> to vector<16x128xf32>
    %16 = arith.addf %13, %15 : vector<16x128xf32>
    %cst_7 = arith.constant 0.000000e+00 : f32
    %17 = vector.broadcast %cst_7 : f32 to vector<16x128xf32>
    %18 = arith.maximumf %16, %17 : vector<16x128xf32>
    %cst_8 = arith.constant 0.000000e+00 : f32
    %19 = vector.broadcast %cst_8 : f32 to vector<1x128xf32>
    %20 = vector.extract_strided_slice %18 {offsets = [8, 0], sizes = [7, 128], strides = [1, 1]} : vector<16x128xf32> to vector<7x128xf32>
    %21 = vector.extract_strided_slice %18 {offsets = [0, 0], sizes = [8, 128], strides = [1, 1]} : vector<16x128xf32> to vector<8x128xf32>
    %22 = tpu.concatenate %19, %20, %21 in 0 : vector<1x128xf32>, vector<7x128xf32>, vector<8x128xf32> -> vector<16x128xf32>
    %23 = vector.extract_strided_slice %18 {offsets = [8, 0], sizes = [8, 128], strides = [1, 1]} : vector<16x128xf32> to vector<8x128xf32>
    %24 = vector.extract_strided_slice %18 {offsets = [1, 0], sizes = [7, 128], strides = [1, 1]} : vector<16x128xf32> to vector<7x128xf32>
    %cst_9 = arith.constant 0.000000e+00 : f32
    %25 = vector.broadcast %cst_9 : f32 to vector<1x128xf32>
    %26 = tpu.concatenate %23, %24, %25 in 0 : vector<8x128xf32>, vector<7x128xf32>, vector<1x128xf32> -> vector<16x128xf32>
    %27 = tpu.concatenate %22, %18, %26 in 1 : vector<16x128xf32>, vector<16x128xf32>, vector<16x128xf32> -> vector<16x384xf32>
    %28 = arith.truncf %27 : vector<16x384xf32> to vector<16x384xbf16>
    %c0_10 = arith.constant 0 : index
    %c0_11 = arith.constant 0 : index
    %29 = vector.load %arg4[%c0_10, %c0_11] : memref<384x128xbf16, #tpu.memory_space<vmem>>, vector<384x128xbf16>
    %cst_12 = arith.constant dense<0.000000e+00> : vector<16x128xf32>
    %30 = tpu.matmul %28, %29, %cst_12 {dimension_numbers = #tpu.dot_dimension_numbers<[1], [0], [0], [1], [0, 0, 1, 1], [], []>} : vector<16x384xbf16>, vector<384x128xbf16>, vector<16x128xf32> -> vector<16x128xf32>
    %c0_13 = arith.constant 0 : index
    %c0_14 = arith.constant 0 : index
    %31 = vector.load %arg5[%c0_13, %c0_14] : memref<1x128xf32, #tpu.memory_space<vmem>>, vector<1x128xf32>
    %32 = vector.broadcast %31 : vector<1x128xf32> to vector<16x128xf32>
    %33 = arith.addf %30, %32 : vector<16x128xf32>
    %34 = arith.addf %33, %1 : vector<16x128xf32>
    %cst_15 = arith.constant 0.000000e+00 : f32
    %35 = vector.broadcast %cst_15 : f32 to vector<1x128xf32>
    %36 = vector.extract_strided_slice %34 {offsets = [8, 0], sizes = [7, 128], strides = [1, 1]} : vector<16x128xf32> to vector<7x128xf32>
    %37 = vector.extract_strided_slice %34 {offsets = [0, 0], sizes = [8, 128], strides = [1, 1]} : vector<16x128xf32> to vector<8x128xf32>
    %38 = tpu.concatenate %35, %36, %37 in 0 : vector<1x128xf32>, vector<7x128xf32>, vector<8x128xf32> -> vector<16x128xf32>
    %39 = vector.extract_strided_slice %38 {offsets = [0, 0], sizes = [8, 128], strides = [1, 1]} : vector<16x128xf32> to vector<8x128xf32>
    %40 = vector.extract_strided_slice %34 {offsets = [0, 0], sizes = [8, 128], strides = [1, 1]} : vector<16x128xf32> to vector<8x128xf32>
    %41 = vector.extract_strided_slice %34 {offsets = [8, 0], sizes = [8, 128], strides = [1, 1]} : vector<16x128xf32> to vector<8x128xf32>
    %42 = tpu.concatenate %39, %40, %41 in 1 : vector<8x128xf32>, vector<8x128xf32>, vector<8x128xf32> -> vector<8x384xf32>
    %43 = arith.truncf %42 : vector<8x384xf32> to vector<8x384xbf16>
    %c0_16 = arith.constant 0 : index
    %c0_17 = arith.constant 0 : index
    %44 = vector.load %arg6[%c0_16, %c0_17] : memref<384x64xbf16, #tpu.memory_space<vmem>>, vector<384x64xbf16>
    %cst_18 = arith.constant dense<0.000000e+00> : vector<8x64xf32>
    %45 = tpu.matmul %43, %44, %cst_18 {dimension_numbers = #tpu.dot_dimension_numbers<[1], [0], [0], [1], [0, 0, 1, 1], [], []>} : vector<8x384xbf16>, vector<384x64xbf16>, vector<8x64xf32> -> vector<8x64xf32>
    %c0_19 = arith.constant 0 : index
    %c0_20 = arith.constant 0 : index
    %46 = vector.load %arg7[%c0_19, %c0_20] : memref<1x64xf32, #tpu.memory_space<vmem>>, vector<1x64xf32>
    %47 = vector.broadcast %46 : vector<1x64xf32> to vector<8x64xf32>
    %48 = arith.addf %45, %47 : vector<8x64xf32>
    %cst_21 = arith.constant 0.000000e+00 : f32
    %49 = vector.broadcast %cst_21 : f32 to vector<1x64xf32>
    %50 = vector.extract_strided_slice %48 {offsets = [0, 0], sizes = [7, 64], strides = [1, 1]} : vector<8x64xf32> to vector<7x64xf32>
    %51 = tpu.concatenate %49, %50 in 0 : vector<1x64xf32>, vector<7x64xf32> -> vector<8x64xf32>
    %52 = vector.extract_strided_slice %48 {offsets = [1, 0], sizes = [7, 64], strides = [1, 1]} : vector<8x64xf32> to vector<7x64xf32>
    %cst_22 = arith.constant 0.000000e+00 : f32
    %53 = vector.broadcast %cst_22 : f32 to vector<1x64xf32>
    %54 = tpu.concatenate %52, %53 in 0 : vector<7x64xf32>, vector<1x64xf32> -> vector<8x64xf32>
    %55 = tpu.concatenate %51, %48, %54 in 1 : vector<8x64xf32>, vector<8x64xf32>, vector<8x64xf32> -> vector<8x192xf32>
    %56 = arith.truncf %55 : vector<8x192xf32> to vector<8x192xbf16>
    %c0_23 = arith.constant 0 : index
    %c0_24 = arith.constant 0 : index
    %57 = vector.load %arg8[%c0_23, %c0_24] : memref<192x64xbf16, #tpu.memory_space<vmem>>, vector<192x64xbf16>
    %cst_25 = arith.constant dense<0.000000e+00> : vector<8x64xf32>
    %58 = tpu.matmul %56, %57, %cst_25 {dimension_numbers = #tpu.dot_dimension_numbers<[1], [0], [0], [1], [0, 0, 1, 1], [], []>} : vector<8x192xbf16>, vector<192x64xbf16>, vector<8x64xf32> -> vector<8x64xf32>
    %c0_26 = arith.constant 0 : index
    %c0_27 = arith.constant 0 : index
    %59 = vector.load %arg9[%c0_26, %c0_27] : memref<1x64xf32, #tpu.memory_space<vmem>>, vector<1x64xf32>
    %60 = vector.broadcast %59 : vector<1x64xf32> to vector<8x64xf32>
    %61 = arith.addf %58, %60 : vector<8x64xf32>
    %cst_28 = arith.constant 0.000000e+00 : f32
    %62 = vector.broadcast %cst_28 : f32 to vector<8x64xf32>
    %63 = arith.maximumf %61, %62 : vector<8x64xf32>
    %cst_29 = arith.constant 0.000000e+00 : f32
    %64 = vector.broadcast %cst_29 : f32 to vector<1x64xf32>
    %65 = vector.extract_strided_slice %63 {offsets = [0, 0], sizes = [7, 64], strides = [1, 1]} : vector<8x64xf32> to vector<7x64xf32>
    %66 = tpu.concatenate %64, %65 in 0 : vector<1x64xf32>, vector<7x64xf32> -> vector<8x64xf32>
    %67 = vector.extract_strided_slice %63 {offsets = [1, 0], sizes = [7, 64], strides = [1, 1]} : vector<8x64xf32> to vector<7x64xf32>
    %cst_30 = arith.constant 0.000000e+00 : f32
    %68 = vector.broadcast %cst_30 : f32 to vector<1x64xf32>
    %69 = tpu.concatenate %67, %68 in 0 : vector<7x64xf32>, vector<1x64xf32> -> vector<8x64xf32>
    %70 = tpu.concatenate %66, %63, %69 in 1 : vector<8x64xf32>, vector<8x64xf32>, vector<8x64xf32> -> vector<8x192xf32>
    %71 = arith.truncf %70 : vector<8x192xf32> to vector<8x192xbf16>
    %c0_31 = arith.constant 0 : index
    %c0_32 = arith.constant 0 : index
    %72 = vector.load %arg10[%c0_31, %c0_32] : memref<192x64xbf16, #tpu.memory_space<vmem>>, vector<192x64xbf16>
    %cst_33 = arith.constant dense<0.000000e+00> : vector<8x64xf32>
    %73 = tpu.matmul %71, %72, %cst_33 {dimension_numbers = #tpu.dot_dimension_numbers<[1], [0], [0], [1], [0, 0, 1, 1], [], []>} : vector<8x192xbf16>, vector<192x64xbf16>, vector<8x64xf32> -> vector<8x64xf32>
    %c0_34 = arith.constant 0 : index
    %c0_35 = arith.constant 0 : index
    %74 = vector.load %arg11[%c0_34, %c0_35] : memref<1x64xf32, #tpu.memory_space<vmem>>, vector<1x64xf32>
    %75 = vector.broadcast %74 : vector<1x64xf32> to vector<8x64xf32>
    %76 = arith.addf %73, %75 : vector<8x64xf32>
    %77 = arith.addf %76, %48 : vector<8x64xf32>
    %cst_36 = arith.constant 0.000000e+00 : f32
    %78 = vector.broadcast %cst_36 : f32 to vector<1x64xf32>
    %79 = vector.extract_strided_slice %77 {offsets = [0, 0], sizes = [7, 64], strides = [1, 1]} : vector<8x64xf32> to vector<7x64xf32>
    %80 = tpu.concatenate %78, %79 in 0 : vector<1x64xf32>, vector<7x64xf32> -> vector<8x64xf32>
    %81 = vector.extract_strided_slice %77 {offsets = [1, 0], sizes = [7, 64], strides = [1, 1]} : vector<8x64xf32> to vector<7x64xf32>
    %cst_37 = arith.constant 0.000000e+00 : f32
    %82 = vector.broadcast %cst_37 : f32 to vector<1x64xf32>
    %83 = tpu.concatenate %81, %82 in 0 : vector<7x64xf32>, vector<1x64xf32> -> vector<8x64xf32>
    %84 = tpu.concatenate %80, %77, %83 in 1 : vector<8x64xf32>, vector<8x64xf32>, vector<8x64xf32> -> vector<8x192xf32>
    %85 = arith.truncf %84 : vector<8x192xf32> to vector<8x192xbf16>
    %c0_38 = arith.constant 0 : index
    %c0_39 = arith.constant 0 : index
    %86 = vector.load %arg12[%c0_38, %c0_39] : memref<192x64xbf16, #tpu.memory_space<vmem>>, vector<192x64xbf16>
    %cst_40 = arith.constant dense<0.000000e+00> : vector<8x64xf32>
    %87 = tpu.matmul %85, %86, %cst_40 {dimension_numbers = #tpu.dot_dimension_numbers<[1], [0], [0], [1], [0, 0, 1, 1], [], []>} : vector<8x192xbf16>, vector<192x64xbf16>, vector<8x64xf32> -> vector<8x64xf32>
    %c0_41 = arith.constant 0 : index
    %c0_42 = arith.constant 0 : index
    %88 = vector.load %arg13[%c0_41, %c0_42] : memref<1x64xf32, #tpu.memory_space<vmem>>, vector<1x64xf32>
    %89 = vector.broadcast %88 : vector<1x64xf32> to vector<8x64xf32>
    %90 = arith.addf %87, %89 : vector<8x64xf32>
    %cst_43 = arith.constant 0.000000e+00 : f32
    %91 = vector.broadcast %cst_43 : f32 to vector<8x64xf32>
    %92 = arith.maximumf %90, %91 : vector<8x64xf32>
    %cst_44 = arith.constant 0.000000e+00 : f32
    %93 = vector.broadcast %cst_44 : f32 to vector<1x64xf32>
    %94 = vector.extract_strided_slice %92 {offsets = [0, 0], sizes = [7, 64], strides = [1, 1]} : vector<8x64xf32> to vector<7x64xf32>
    %95 = tpu.concatenate %93, %94 in 0 : vector<1x64xf32>, vector<7x64xf32> -> vector<8x64xf32>
    %96 = vector.extract_strided_slice %92 {offsets = [1, 0], sizes = [7, 64], strides = [1, 1]} : vector<8x64xf32> to vector<7x64xf32>
    %cst_45 = arith.constant 0.000000e+00 : f32
    %97 = vector.broadcast %cst_45 : f32 to vector<1x64xf32>
    %98 = tpu.concatenate %96, %97 in 0 : vector<7x64xf32>, vector<1x64xf32> -> vector<8x64xf32>
    %99 = tpu.concatenate %95, %92, %98 in 1 : vector<8x64xf32>, vector<8x64xf32>, vector<8x64xf32> -> vector<8x192xf32>
    %100 = arith.truncf %99 : vector<8x192xf32> to vector<8x192xbf16>
    %c0_46 = arith.constant 0 : index
    %c0_47 = arith.constant 0 : index
    %101 = vector.load %arg14[%c0_46, %c0_47] : memref<192x64xbf16, #tpu.memory_space<vmem>>, vector<192x64xbf16>
    %cst_48 = arith.constant dense<0.000000e+00> : vector<8x64xf32>
    %102 = tpu.matmul %100, %101, %cst_48 {dimension_numbers = #tpu.dot_dimension_numbers<[1], [0], [0], [1], [0, 0, 1, 1], [], []>} : vector<8x192xbf16>, vector<192x64xbf16>, vector<8x64xf32> -> vector<8x64xf32>
    %c0_49 = arith.constant 0 : index
    %c0_50 = arith.constant 0 : index
    %103 = vector.load %arg15[%c0_49, %c0_50] : memref<1x64xf32, #tpu.memory_space<vmem>>, vector<1x64xf32>
    %104 = vector.broadcast %103 : vector<1x64xf32> to vector<8x64xf32>
    %105 = arith.addf %102, %104 : vector<8x64xf32>
    %106 = arith.addf %105, %77 : vector<8x64xf32>
    %cst_51 = arith.constant 0.000000e+00 : f32
    %107 = vector.broadcast %cst_51 : f32 to vector<1x64xf32>
    %108 = vector.extract_strided_slice %106 {offsets = [0, 0], sizes = [7, 64], strides = [1, 1]} : vector<8x64xf32> to vector<7x64xf32>
    %109 = tpu.concatenate %107, %108 in 0 : vector<1x64xf32>, vector<7x64xf32> -> vector<8x64xf32>
    %110 = vector.extract_strided_slice %106 {offsets = [1, 0], sizes = [7, 64], strides = [1, 1]} : vector<8x64xf32> to vector<7x64xf32>
    %cst_52 = arith.constant 0.000000e+00 : f32
    %111 = vector.broadcast %cst_52 : f32 to vector<1x64xf32>
    %112 = tpu.concatenate %110, %111 in 0 : vector<7x64xf32>, vector<1x64xf32> -> vector<8x64xf32>
    %113 = tpu.concatenate %109, %106, %112 in 1 : vector<8x64xf32>, vector<8x64xf32>, vector<8x64xf32> -> vector<8x192xf32>
    %114 = arith.truncf %113 : vector<8x192xf32> to vector<8x192xbf16>
    %c0_53 = arith.constant 0 : index
    %c0_54 = arith.constant 0 : index
    %115 = vector.load %arg16[%c0_53, %c0_54] : memref<192x256xbf16, #tpu.memory_space<vmem>>, vector<192x256xbf16>
    %cst_55 = arith.constant dense<0.000000e+00> : vector<8x256xf32>
    %116 = tpu.matmul %114, %115, %cst_55 {dimension_numbers = #tpu.dot_dimension_numbers<[1], [0], [0], [1], [0, 0, 1, 1], [], []>} : vector<8x192xbf16>, vector<192x256xbf16>, vector<8x256xf32> -> vector<8x256xf32>
    %c0_56 = arith.constant 0 : index
    %c0_57 = arith.constant 0 : index
    %117 = vector.load %arg17[%c0_56, %c0_57] : memref<1x256xf32, #tpu.memory_space<vmem>>, vector<1x256xf32>
    %118 = vector.broadcast %117 : vector<1x256xf32> to vector<8x256xf32>
    %119 = arith.addf %116, %118 : vector<8x256xf32>
    %120 = vector.extract_strided_slice %119 {offsets = [0, 0], sizes = [8, 128], strides = [1, 1]} : vector<8x256xf32> to vector<8x128xf32>
    %121 = vector.extract_strided_slice %119 {offsets = [0, 128], sizes = [8, 128], strides = [1, 1]} : vector<8x256xf32> to vector<8x128xf32>
    %122 = tpu.concatenate %120, %121 in 0 : vector<8x128xf32>, vector<8x128xf32> -> vector<16x128xf32>
    %123 = arith.addf %34, %122 : vector<16x128xf32>
    %cst_58 = arith.constant 0.000000e+00 : f32
    %124 = vector.broadcast %cst_58 : f32 to vector<1x128xf32>
    %125 = vector.extract_strided_slice %123 {offsets = [8, 0], sizes = [7, 128], strides = [1, 1]} : vector<16x128xf32> to vector<7x128xf32>
    %126 = vector.extract_strided_slice %123 {offsets = [0, 0], sizes = [8, 128], strides = [1, 1]} : vector<16x128xf32> to vector<8x128xf32>
    %127 = tpu.concatenate %124, %125, %126 in 0 : vector<1x128xf32>, vector<7x128xf32>, vector<8x128xf32> -> vector<16x128xf32>
    %128 = vector.extract_strided_slice %123 {offsets = [8, 0], sizes = [8, 128], strides = [1, 1]} : vector<16x128xf32> to vector<8x128xf32>
    %129 = vector.extract_strided_slice %123 {offsets = [1, 0], sizes = [7, 128], strides = [1, 1]} : vector<16x128xf32> to vector<7x128xf32>
    %cst_59 = arith.constant 0.000000e+00 : f32
    %130 = vector.broadcast %cst_59 : f32 to vector<1x128xf32>
    %131 = tpu.concatenate %128, %129, %130 in 0 : vector<8x128xf32>, vector<7x128xf32>, vector<1x128xf32> -> vector<16x128xf32>
    %132 = tpu.concatenate %127, %123, %131 in 1 : vector<16x128xf32>, vector<16x128xf32>, vector<16x128xf32> -> vector<16x384xf32>
    %133 = arith.truncf %132 : vector<16x384xf32> to vector<16x384xbf16>
    %c0_60 = arith.constant 0 : index
    %c0_61 = arith.constant 0 : index
    %134 = vector.load %arg18[%c0_60, %c0_61] : memref<384x128xbf16, #tpu.memory_space<vmem>>, vector<384x128xbf16>
    %cst_62 = arith.constant dense<0.000000e+00> : vector<16x128xf32>
    %135 = tpu.matmul %133, %134, %cst_62 {dimension_numbers = #tpu.dot_dimension_numbers<[1], [0], [0], [1], [0, 0, 1, 1], [], []>} : vector<16x384xbf16>, vector<384x128xbf16>, vector<16x128xf32> -> vector<16x128xf32>
    %c0_63 = arith.constant 0 : index
    %c0_64 = arith.constant 0 : index
    %136 = vector.load %arg19[%c0_63, %c0_64] : memref<1x128xf32, #tpu.memory_space<vmem>>, vector<1x128xf32>
    %137 = vector.broadcast %136 : vector<1x128xf32> to vector<16x128xf32>
    %138 = arith.addf %135, %137 : vector<16x128xf32>
    %cst_65 = arith.constant 0.000000e+00 : f32
    %139 = vector.broadcast %cst_65 : f32 to vector<16x128xf32>
    %140 = arith.maximumf %138, %139 : vector<16x128xf32>
    %cst_66 = arith.constant 0.000000e+00 : f32
    %141 = vector.broadcast %cst_66 : f32 to vector<1x128xf32>
    %142 = vector.extract_strided_slice %140 {offsets = [8, 0], sizes = [7, 128], strides = [1, 1]} : vector<16x128xf32> to vector<7x128xf32>
    %143 = vector.extract_strided_slice %140 {offsets = [0, 0], sizes = [8, 128], strides = [1, 1]} : vector<16x128xf32> to vector<8x128xf32>
    %144 = tpu.concatenate %141, %142, %143 in 0 : vector<1x128xf32>, vector<7x128xf32>, vector<8x128xf32> -> vector<16x128xf32>
    %145 = vector.extract_strided_slice %140 {offsets = [8, 0], sizes = [8, 128], strides = [1, 1]} : vector<16x128xf32> to vector<8x128xf32>
    %146 = vector.extract_strided_slice %140 {offsets = [1, 0], sizes = [7, 128], strides = [1, 1]} : vector<16x128xf32> to vector<7x128xf32>
    %cst_67 = arith.constant 0.000000e+00 : f32
    %147 = vector.broadcast %cst_67 : f32 to vector<1x128xf32>
    %148 = tpu.concatenate %145, %146, %147 in 0 : vector<8x128xf32>, vector<7x128xf32>, vector<1x128xf32> -> vector<16x128xf32>
    %149 = tpu.concatenate %144, %140, %148 in 1 : vector<16x128xf32>, vector<16x128xf32>, vector<16x128xf32> -> vector<16x384xf32>
    %150 = arith.truncf %149 : vector<16x384xf32> to vector<16x384xbf16>
    %c0_68 = arith.constant 0 : index
    %c0_69 = arith.constant 0 : index
    %151 = vector.load %arg20[%c0_68, %c0_69] : memref<384x128xbf16, #tpu.memory_space<vmem>>, vector<384x128xbf16>
    %cst_70 = arith.constant dense<0.000000e+00> : vector<16x128xf32>
    %152 = tpu.matmul %150, %151, %cst_70 {dimension_numbers = #tpu.dot_dimension_numbers<[1], [0], [0], [1], [0, 0, 1, 1], [], []>} : vector<16x384xbf16>, vector<384x128xbf16>, vector<16x128xf32> -> vector<16x128xf32>
    %c0_71 = arith.constant 0 : index
    %c0_72 = arith.constant 0 : index
    %153 = vector.load %arg21[%c0_71, %c0_72] : memref<1x128xf32, #tpu.memory_space<vmem>>, vector<1x128xf32>
    %154 = vector.broadcast %153 : vector<1x128xf32> to vector<16x128xf32>
    %155 = arith.addf %152, %154 : vector<16x128xf32>
    %156 = arith.addf %155, %123 : vector<16x128xf32>
    %157 = arith.truncf %156 : vector<16x128xf32> to vector<16x128xbf16>
    %c0_73 = arith.constant 0 : index
    %c0_74 = arith.constant 0 : index
    %158 = vector.load %arg22[%c0_73, %c0_74] : memref<128x128xbf16, #tpu.memory_space<vmem>>, vector<128x128xbf16>
    %cst_75 = arith.constant dense<0.000000e+00> : vector<16x128xf32>
    %159 = tpu.matmul %157, %158, %cst_75 {dimension_numbers = #tpu.dot_dimension_numbers<[1], [0], [0], [1], [0, 0, 1, 1], [], []>} : vector<16x128xbf16>, vector<128x128xbf16>, vector<16x128xf32> -> vector<16x128xf32>
    %c0_76 = arith.constant 0 : index
    %c0_77 = arith.constant 0 : index
    %160 = vector.load %arg23[%c0_76, %c0_77] : memref<1x128xf32, #tpu.memory_space<vmem>>, vector<1x128xf32>
    %161 = vector.broadcast %160 : vector<1x128xf32> to vector<16x128xf32>
    %162 = arith.addf %159, %161 : vector<16x128xf32>
    %cst_78 = arith.constant 0.000000e+00 : f32
    %163 = vector.broadcast %cst_78 : f32 to vector<16x128xf32>
    %164 = arith.subf %163, %162 : vector<16x128xf32>
    %165 = math.exp %164 : vector<16x128xf32>
    %cst_79 = arith.constant 1.000000e+00 : f32
    %166 = vector.broadcast %cst_79 : f32 to vector<16x128xf32>
    %167 = arith.addf %166, %165 : vector<16x128xf32>
    %168 = tpu.reciprocal %167 {approx = true} : vector<16x128xf32> -> vector<16x128xf32>
    %c0_80 = arith.constant 0 : index
    %c0_81 = arith.constant 0 : index
    %169 = vector.load %arg24[%c0_80, %c0_81] : memref<16x128xf32, #tpu.memory_space<vmem>>, vector<16x128xf32>
    tpu.vector_store %arg24[%c0_80, %c0_81], %168 {strides = array<i32>} : memref<16x128xf32, #tpu.memory_space<vmem>>, vector<16x128xf32>,
    return
  }
  func.func @transform_0(%arg0: i32) -> (i32, i32) {
    %c0_i32 = arith.constant 0 : i32
    %c0_i32_0 = arith.constant 0 : i32
    %c0_i32_1 = arith.constant 0 : i32
    return %c0_i32, %c0_i32_0 : i32, i32
  }
  func.func @transform_1(%arg0: i32) -> (i32, i32) {
    %c0_i32 = arith.constant 0 : i32
    %c0_i32_0 = arith.constant 0 : i32
    %c0_i32_1 = arith.constant 0 : i32
    return %c0_i32, %c0_i32_0 : i32, i32
  }
  func.func @transform_2(%arg0: i32) -> (i32, i32) {
    %c0_i32 = arith.constant 0 : i32
    %c0_i32_0 = arith.constant 0 : i32
    %c0_i32_1 = arith.constant 0 : i32
    return %c0_i32, %c0_i32_0 : i32, i32
  }
  func.func @transform_3(%arg0: i32) -> (i32, i32) {
    %c0_i32 = arith.constant 0 : i32
    %c0_i32_0 = arith.constant 0 : i32
    %c0_i32_1 = arith.constant 0 : i32
    return %c0_i32, %c0_i32_0 : i32, i32
  }
  func.func @transform_4(%arg0: i32) -> (i32, i32) {
    %c0_i32 = arith.constant 0 : i32
    %c0_i32_0 = arith.constant 0 : i32
    %c0_i32_1 = arith.constant 0 : i32
    return %c0_i32, %c0_i32_0 : i32, i32
  }
  func.func @transform_5(%arg0: i32) -> (i32, i32) {
    %c0_i32 = arith.constant 0 : i32
    %c0_i32_0 = arith.constant 0 : i32
    %c0_i32_1 = arith.constant 0 : i32
    return %c0_i32, %c0_i32_0 : i32, i32
  }
  func.func @transform_6(%arg0: i32) -> (i32, i32) {
    %c0_i32 = arith.constant 0 : i32
    %c0_i32_0 = arith.constant 0 : i32
    %c0_i32_1 = arith.constant 0 : i32
    return %c0_i32, %c0_i32_0 : i32, i32
  }
  func.func @transform_7(%arg0: i32) -> (i32, i32) {
    %c0_i32 = arith.constant 0 : i32
    %c0_i32_0 = arith.constant 0 : i32
    %c0_i32_1 = arith.constant 0 : i32
    return %c0_i32, %c0_i32_0 : i32, i32
  }
  func.func @transform_8(%arg0: i32) -> (i32, i32) {
    %c0_i32 = arith.constant 0 : i32
    %c0_i32_0 = arith.constant 0 : i32
    %c0_i32_1 = arith.constant 0 : i32
    return %c0_i32, %c0_i32_0 : i32, i32
  }
  func.func @transform_9(%arg0: i32) -> (i32, i32) {
    %c0_i32 = arith.constant 0 : i32
    %c0_i32_0 = arith.constant 0 : i32
    %c0_i32_1 = arith.constant 0 : i32
    return %c0_i32, %c0_i32_0 : i32, i32
  }
  func.func @transform_10(%arg0: i32) -> (i32, i32) {
    %c0_i32 = arith.constant 0 : i32
    %c0_i32_0 = arith.constant 0 : i32
    %c0_i32_1 = arith.constant 0 : i32
    return %c0_i32, %c0_i32_0 : i32, i32
  }
  func.func @transform_11(%arg0: i32) -> (i32, i32) {
    %c0_i32 = arith.constant 0 : i32
    %c0_i32_0 = arith.constant 0 : i32
    %c0_i32_1 = arith.constant 0 : i32
    return %c0_i32, %c0_i32_0 : i32, i32
  }
  func.func @transform_12(%arg0: i32) -> (i32, i32) {
    %c0_i32 = arith.constant 0 : i32
    %c0_i32_0 = arith.constant 0 : i32
    %c0_i32_1 = arith.constant 0 : i32
    return %c0_i32, %c0_i32_0 : i32, i32
  }
  func.func @transform_13(%arg0: i32) -> (i32, i32) {
    %c0_i32 = arith.constant 0 : i32
    %c0_i32_0 = arith.constant 0 : i32
    %c0_i32_1 = arith.constant 0 : i32
    return %c0_i32, %c0_i32_0 : i32, i32
  }
  func.func @transform_14(%arg0: i32) -> (i32, i32) {
    %c0_i32 = arith.constant 0 : i32
    %c0_i32_0 = arith.constant 0 : i32
    %c0_i32_1 = arith.constant 0 : i32
    return %c0_i32, %c0_i32_0 : i32, i32
  }
  func.func @transform_15(%arg0: i32) -> (i32, i32) {
    %c0_i32 = arith.constant 0 : i32
    %c0_i32_0 = arith.constant 0 : i32
    %c0_i32_1 = arith.constant 0 : i32
    return %c0_i32, %c0_i32_0 : i32, i32
  }
  func.func @transform_16(%arg0: i32) -> (i32, i32) {
    %c0_i32 = arith.constant 0 : i32
    %c0_i32_0 = arith.constant 0 : i32
    %c0_i32_1 = arith.constant 0 : i32
    return %c0_i32, %c0_i32_0 : i32, i32
  }
  func.func @transform_17(%arg0: i32) -> (i32, i32) {
    %c0_i32 = arith.constant 0 : i32
    %c0_i32_0 = arith.constant 0 : i32
    %c0_i32_1 = arith.constant 0 : i32
    return %c0_i32, %c0_i32_0 : i32, i32
  }
  func.func @transform_18(%arg0: i32) -> (i32, i32) {
    %c0_i32 = arith.constant 0 : i32
    %c0_i32_0 = arith.constant 0 : i32
    %c0_i32_1 = arith.constant 0 : i32
    return %c0_i32, %c0_i32_0 : i32, i32
  }
  func.func @transform_19(%arg0: i32) -> (i32, i32) {
    %c0_i32 = arith.constant 0 : i32
    %c0_i32_0 = arith.constant 0 : i32
    %c0_i32_1 = arith.constant 0 : i32
    return %c0_i32, %c0_i32_0 : i32, i32
  }
  func.func @transform_20(%arg0: i32) -> (i32, i32) {
    %c0_i32 = arith.constant 0 : i32
    %c0_i32_0 = arith.constant 0 : i32
    %c0_i32_1 = arith.constant 0 : i32
    return %c0_i32, %c0_i32_0 : i32, i32
  }
  func.func @transform_21(%arg0: i32) -> (i32, i32) {
    %c0_i32 = arith.constant 0 : i32
    %c0_i32_0 = arith.constant 0 : i32
    %c0_i32_1 = arith.constant 0 : i32
    return %c0_i32, %c0_i32_0 : i32, i32
  }
  func.func @transform_22(%arg0: i32) -> (i32, i32) {
    %c0_i32 = arith.constant 0 : i32
    %c0_i32_0 = arith.constant 0 : i32
    %c0_i32_1 = arith.constant 0 : i32
    return %c0_i32, %c0_i32_0 : i32, i32
  }
  func.func @transform_23(%arg0: i32) -> (i32, i32) {
    %c0_i32 = arith.constant 0 : i32
    %c0_i32_0 = arith.constant 0 : i32
    %c0_i32_1 = arith.constant 0 : i32
    return %c0_i32, %c0_i32_0 : i32, i32
  }
}

</mosaic_0001>

<llo_original>
// kernel: tile.46
$region0: #{tile.46}
  #allocation0 [shape = 's32[1]{0}', space=sflag, size = 0x4, scoped, tag = 'scoped memory for tile.46']
  %s0 = inlined_call_operand.vmem [shape: f32[4], index: 0, kind: input, shape index: {}]
  %s1 = inlined_call_operand.vmem [shape: f32[32,4], index: 1, kind: output, shape index: {}]
  // Predicated region
  $region2: #{tile.46} parent=0 // pred_check
    _
  $region3: #{tile.46} parent=0 // pred_check_branch
    %3 = sbr.rel (0) target = $region5
  $region4: #{tile.46} parent=0 // pred_region
    _
  $region5: #{tile.46} parent=0 // pred_fallthru
    _
  %v4 = vld [vmem:[%s0] ss:$0 sm:$0xff]
  %5 = vst [vmem:[%s1] sm:$0xff] %v4
  %s6 = scalar_lea.vmem %s1, 8
  %7 = vst [vmem:[%s6] sm:$0xff] %v4
  %s8 = scalar_lea.vmem %s1, 16
  %9 = vst [vmem:[%s8] sm:$0xff] %v4
  %s10 = scalar_lea.vmem %s1, 24
  %11 = vst [vmem:[%s10] sm:$0xff] %v4

// kernel: tile.47
$region0: #{tile.47}
  %s0 = inlined_call_operand.vmem [shape: f32[32,4], index: 0, kind: input, shape index: {}]
  %s1 = inlined_call_operand.vmem [shape: f32[1,128], index: 1, kind: output, shape index: {}]
  $region1: #{tile.47} parent=0
    #allocation0 [shape = 'u8[4096]{0}', space=vmem, size = 0x1000, scoped, tag = 'scoped mem for output reshape']
    %v2 = vld [vmem:[%s0] sm:$0x1]
    %vm3 = vcmask 31744
    %4 = vst.msk [vmem:[#allocation0] sm:$0x1] %vm3, %v2
    %s5 = scalar_lea.vmem %s0, 31
    %v6 = vld [vmem:[%s5] sm:$0x1]
    %7 = vrot.lane.b32.xlu0 %v6, 124
    %v8 = vpop.permute.xlu0 %7
    %vm9 = vcmask 1048544
    %10 = vst.msk [vmem:[#allocation0] sm:$0x1] %vm9, %v8
    %s11 = scalar_lea.vmem %s0, 30
    %v12 = vld [vmem:[%s11] sm:$0x1]
    %13 = vrot.lane.b32.xlu0 %v12, 120
    %v14 = vpop.permute.xlu0 %13
    %vm15 = vcmask 1015744
    %16 = vst.msk [vmem:[#allocation0] sm:$0x1] %vm15, %v14
    %s17 = scalar_lea.vmem %s0, 29
    %v18 = vld [vmem:[%s17] sm:$0x1]
    %19 = vrot.lane.b32.xlu0 %v18, 116
    %v20 = vpop.permute.xlu0 %19
    %vm21 = vcmask 982944
    %22 = vst.msk [vmem:[#allocation0] sm:$0x1] %vm21, %v20
    %s23 = scalar_lea.vmem %s0, 28
    %v24 = vld [vmem:[%s23] sm:$0x1]
    %25 = vrot.lane.b32.xlu0 %v24, 112
    %v26 = vpop.permute.xlu0 %25
    %vm27 = vcmask 950144
    %28 = vst.msk [vmem:[#allocation0] sm:$0x1] %vm27, %v26
    %s29 = scalar_lea.vmem %s0, 27
    %v30 = vld [vmem:[%s29] sm:$0x1]
    %31 = vrot.lane.b32.xlu0 %v30, 108
    %v32 = vpop.permute.xlu0 %31
    %vm33 = vcmask 917344
    %34 = vst.msk [vmem:[#allocation0] sm:$0x1] %vm33, %v32
    %s35 = scalar_lea.vmem %s0, 26
    %v36 = vld [vmem:[%s35] sm:$0x1]
    %37 = vrot.lane.b32.xlu0 %v36, 104
    %v38 = vpop.permute.xlu0 %37
    %vm39 = vcmask 884544
    %40 = vst.msk [vmem:[#allocation0] sm:$0x1] %vm39, %v38
    %s41 = scalar_lea.vmem %s0, 25
    %v42 = vld [vmem:[%s41] sm:$0x1]
    %43 = vrot.lane.b32.xlu0 %v42, 100
    %v44 = vpop.permute.xlu0 %43
    %vm45 = vcmask 851744
    %46 = vst.msk [vmem:[#allocation0] sm:$0x1] %vm45, %v44
    %s47 = scalar_lea.vmem %s0, 24
    %v48 = vld [vmem:[%s47] sm:$0x1]
    %49 = vrot.lane.b32.xlu0 %v48, 96
    %v50 = vpop.permute.xlu0 %49
    %vm51 = vcmask 818944
    %52 = vst.msk [vmem:[#allocation0] sm:$0x1] %vm51, %v50
    %s53 = scalar_lea.vmem %s0, 23
    %v54 = vld [vmem:[%s53] sm:$0x1]
    %55 = vrot.lane.b32.xlu0 %v54, 92
    %v56 = vpop.permute.xlu0 %55
    %vm57 = vcmask 786144
    %58 = vst.msk [vmem:[#allocation0] sm:$0x1] %vm57, %v56
    %s59 = scalar_lea.vmem %s0, 22
    %v60 = vld [vmem:[%s59] sm:$0x1]
    %61 = vrot.lane.b32.xlu0 %v60, 88
    %v62 = vpop.permute.xlu0 %61
    %vm63 = vcmask 753344
    %64 = vst.msk [vmem:[#allocation0] sm:$0x1] %vm63, %v62
    %s65 = scalar_lea.vmem %s0, 21
    %v66 = vld [vmem:[%s65] sm:$0x1]
    %67 = vrot.lane.b32.xlu0 %v66, 84
    %v68 = vpop.permute.xlu0 %67
    %vm69 = vcmask 720544
    %70 = vst.msk [vmem:[#allocation0] sm:$0x1] %vm69, %v68
    %s71 = scalar_lea.vmem %s0, 20
    %v72 = vld [vmem:[%s71] sm:$0x1]
    %73 = vrot.lane.b32.xlu0 %v72, 80
    %v74 = vpop.permute.xlu0 %73
    %vm75 = vcmask 687744
    %76 = vst.msk [vmem:[#allocation0] sm:$0x1] %vm75, %v74
    %s77 = scalar_lea.vmem %s0, 19
    %v78 = vld [vmem:[%s77] sm:$0x1]
    %79 = vrot.lane.b32.xlu0 %v78, 76
    %v80 = vpop.permute.xlu0 %79
    %vm81 = vcmask 654944
    %82 = vst.msk [vmem:[#allocation0] sm:$0x1] %vm81, %v80
    %s83 = scalar_lea.vmem %s0, 18
    %v84 = vld [vmem:[%s83] sm:$0x1]
    %85 = vrot.lane.b32.xlu0 %v84, 72
    %v86 = vpop.permute.xlu0 %85
    %vm87 = vcmask 622144
    %88 = vst.msk [vmem:[#allocation0] sm:$0x1] %vm87, %v86
    %s89 = scalar_lea.vmem %s0, 17
    %v90 = vld [vmem:[%s89] sm:$0x1]
    %91 = vrot.lane.b32.xlu0 %v90, 68
    %v92 = vpop.permute.xlu0 %91
    %vm93 = vcmask 589344
    %94 = vst.msk [vmem:[#allocation0] sm:$0x1] %vm93, %v92
    %s95 = scalar_lea.vmem %s0, 16
    %v96 = vld [vmem:[%s95] sm:$0x1]
    %97 = vrot.lane.b32.xlu0 %v96, 64
    %v98 = vpop.permute.xlu0 %97
    %vm99 = vcmask 556544
    %100 = vst.msk [vmem:[#allocation0] sm:$0x1] %vm99, %v98
    %s101 = scalar_lea.vmem %s0, 15
    %v102 = vld [vmem:[%s101] sm:$0x1]
    %103 = vrot.lane.b32.xlu0 %v102, 60
    %v104 = vpop.permute.xlu0 %103
    %vm105 = vcmask 523744
    %106 = vst.msk [vmem:[#allocation0] sm:$0x1] %vm105, %v104
    %s107 = scalar_lea.vmem %s0, 14
    %v108 = vld [vmem:[%s107] sm:$0x1]
    %109 = vrot.lane.b32.xlu0 %v108, 56
    %v110 = vpop.permute.xlu0 %109
    %vm111 = vcmask 490944
    %112 = vst.msk [vmem:[#allocation0] sm:$0x1] %vm111, %v110
    %s113 = scalar_lea.vmem %s0, 13
    %v114 = vld [vmem:[%s113] sm:$0x1]
    %115 = vrot.lane.b32.xlu0 %v114, 52
    %v116 = vpop.permute.xlu0 %115
    %vm117 = vcmask 458144
    %118 = vst.msk [vmem:[#allocation0] sm:$0x1] %vm117, %v116
    %s119 = scalar_lea.vmem %s0, 12
    %v120 = vld [vmem:[%s119] sm:$0x1]
    %121 = vrot.lane.b32.xlu0 %v120, 48
    %v122 = vpop.permute.xlu0 %121
    %vm123 = vcmask 425344
    %124 = vst.msk [vmem:[#allocation0] sm:$0x1] %vm123, %v122
    %s125 = scalar_lea.vmem %s0, 11
    %v126 = vld [vmem:[%s125] sm:$0x1]
    %127 = vrot.lane.b32.xlu0 %v126, 44
    %v128 = vpop.permute.xlu0 %127
    %vm129 = vcmask 392544
    %130 = vst.msk [vmem:[#allocation0] sm:$0x1] %vm129, %v128
    %s131 = scalar_lea.vmem %s0, 10
    %v132 = vld [vmem:[%s131] sm:$0x1]
    %133 = vrot.lane.b32.xlu0 %v132, 40
    %v134 = vpop.permute.xlu0 %133
    %vm135 = vcmask 359744
    %136 = vst.msk [vmem:[#allocation0] sm:$0x1] %vm135, %v134
    %s137 = scalar_lea.vmem %s0, 9
    %v138 = vld [vmem:[%s137] sm:$0x1]
    %139 = vrot.lane.b32.xlu0 %v138, 36
    %v140 = vpop.permute.xlu0 %139
    %vm141 = vcmask 326944
    %142 = vst.msk [vmem:[#allocation0] sm:$0x1] %vm141, %v140
    %s143 = scalar_lea.vmem %s0, 8
    %v144 = vld [vmem:[%s143] sm:$0x1]
    %145 = vrot.lane.b32.xlu0 %v144, 32
    %v146 = vpop.permute.xlu0 %145
    %vm147 = vcmask 294144
    %148 = vst.msk [vmem:[#allocation0] sm:$0x1] %vm147, %v146
    %s149 = scalar_lea.vmem %s0, 7
    %v150 = vld [vmem:[%s149] sm:$0x1]
    %151 = vrot.lane.b32.xlu0 %v150, 28
    %v152 = vpop.permute.xlu0 %151
    %vm153 = vcmask 261344
    %154 = vst.msk [vmem:[#allocation0] sm:$0x1] %vm153, %v152
    %s155 = scalar_lea.vmem %s0, 6
    %v156 = vld [vmem:[%s155] sm:$0x1]
    %157 = vrot.lane.b32.xlu0 %v156, 24
    %v158 = vpop.permute.xlu0 %157
    %vm159 = vcmask 228544
    %160 = vst.msk [vmem:[#allocation0] sm:$0x1] %vm159, %v158
    %s161 = scalar_lea.vmem %s0, 5
    %v162 = vld [vmem:[%s161] sm:$0x1]
    %163 = vrot.lane.b32.xlu0 %v162, 20
    %v164 = vpop.permute.xlu0 %163
    %vm165 = vcmask 195744
    %166 = vst.msk [vmem:[#allocation0] sm:$0x1] %vm165, %v164
    %s167 = scalar_lea.vmem %s0, 4
    %v168 = vld [vmem:[%s167] sm:$0x1]
    %169 = vrot.lane.b32.xlu0 %v168, 16
    %v170 = vpop.permute.xlu0 %169
    %vm171 = vcmask 162944
    %172 = vst.msk [vmem:[#allocation0] sm:$0x1] %vm171, %v170
    %s173 = scalar_lea.vmem %s0, 3
    %v174 = vld [vmem:[%s173] sm:$0x1]
    %175 = vrot.lane.b32.xlu0 %v174, 12
    %v176 = vpop.permute.xlu0 %175
    %vm177 = vcmask 130144
    %178 = vst.msk [vmem:[#allocation0] sm:$0x1] %vm177, %v176
    %s179 = scalar_lea.vmem %s0, 2
    %v180 = vld [vmem:[%s179] sm:$0x1]
    %181 = vrot.lane.b32.xlu0 %v180, 8
    %v182 = vpop.permute.xlu0 %181
    %vm183 = vcmask 97344
    %184 = vst.msk [vmem:[#allocation0] sm:$0x1] %vm183, %v182
    %s185 = scalar_lea.vmem %s0, 1
    %v186 = vld [vmem:[%s185] sm:$0x1]
    %187 = vrot.lane.b32.xlu0 %v186, 4
    %v188 = vpop.permute.xlu0 %187
    %vm189 = vcmask 64544
    %190 = vst.msk [vmem:[#allocation0] sm:$0x1] %vm189, %v188
    %s192 = sshll.u32 1, 1
    %s193 = ssub.s32 %s192, 1
    %v195 = vld [vmem:[#allocation0] sm:%s193]
    %s196 = sshll.u32 1, 1
    %s197 = ssub.s32 %s196, 1
    %198 = vst [vmem:[%s1] sm:%s197] %v195

// kernel: tile.54
$region0: #{tile.54}
  #allocation0 [shape = 's32[1]{0}', space=sflag, size = 0x4, scoped, tag = 'scoped memory for tile.54']
  %s0 = inlined_call_operand.vmem [shape: f32[4], index: 0, kind: input, shape index: {}]
  %s1 = inlined_call_operand.vmem [shape: f32[16,4], index: 1, kind: output, shape index: {}]
  // Predicated region
  $region2: #{tile.54} parent=0 // pred_check
    _
  $region3: #{tile.54} parent=0 // pred_check_branch
    %3 = sbr.rel (0) target = $region5
  $region4: #{tile.54} parent=0 // pred_region
    _
  $region5: #{tile.54} parent=0 // pred_fallthru
    _
  %v4 = vld [vmem:[%s0] ss:$0 sm:$0xff]
  %5 = vst [vmem:[%s1] sm:$0xff] %v4
  %s6 = scalar_lea.vmem %s1, 8
  %7 = vst [vmem:[%s6] sm:$0xff] %v4

// kernel: tile.55
$region0: #{tile.55}
  %s0 = inlined_call_operand.vmem [shape: f32[16,4], index: 0, kind: input, shape index: {}]
  %s1 = inlined_call_operand.vmem [shape: f32[1,64], index: 1, kind: output, shape index: {}]
  $region1: #{tile.55} parent=0
    #allocation0 [shape = 'u8[4096]{0}', space=vmem, size = 0x1000, scoped, tag = 'scoped mem for output reshape']
    %v2 = vld [vmem:[%s0] sm:$0x1]
    %vm3 = vcmask 31744
    %4 = vst.msk [vmem:[#allocation0] sm:$0x1] %vm3, %v2
    %s5 = scalar_lea.vmem %s0, 15
    %v6 = vld [vmem:[%s5] sm:$0x1]
    %7 = vrot.lane.b32.xlu0 %v6, 60
    %v8 = vpop.permute.xlu0 %7
    %vm9 = vcmask 523744
    %10 = vst.msk [vmem:[#allocation0] sm:$0x1] %vm9, %v8
    %s11 = scalar_lea.vmem %s0, 14
    %v12 = vld [vmem:[%s11] sm:$0x1]
    %13 = vrot.lane.b32.xlu0 %v12, 56
    %v14 = vpop.permute.xlu0 %13
    %vm15 = vcmask 490944
    %16 = vst.msk [vmem:[#allocation0] sm:$0x1] %vm15, %v14
    %s17 = scalar_lea.vmem %s0, 13
    %v18 = vld [vmem:[%s17] sm:$0x1]
    %19 = vrot.lane.b32.xlu0 %v18, 52
    %v20 = vpop.permute.xlu0 %19
    %vm21 = vcmask 458144
    %22 = vst.msk [vmem:[#allocation0] sm:$0x1] %vm21, %v20
    %s23 = scalar_lea.vmem %s0, 12
    %v24 = vld [vmem:[%s23] sm:$0x1]
    %25 = vrot.lane.b32.xlu0 %v24, 48
    %v26 = vpop.permute.xlu0 %25
    %vm27 = vcmask 425344
    %28 = vst.msk [vmem:[#allocation0] sm:$0x1] %vm27, %v26
    %s29 = scalar_lea.vmem %s0, 11
    %v30 = vld [vmem:[%s29] sm:$0x1]
    %31 = vrot.lane.b32.xlu0 %v30, 44
    %v32 = vpop.permute.xlu0 %31
    %vm33 = vcmask 392544
    %34 = vst.msk [vmem:[#allocation0] sm:$0x1] %vm33, %v32
    %s35 = scalar_lea.vmem %s0, 10
    %v36 = vld [vmem:[%s35] sm:$0x1]
    %37 = vrot.lane.b32.xlu0 %v36, 40
    %v38 = vpop.permute.xlu0 %37
    %vm39 = vcmask 359744
    %40 = vst.msk [vmem:[#allocation0] sm:$0x1] %vm39, %v38
    %s41 = scalar_lea.vmem %s0, 9
    %v42 = vld [vmem:[%s41] sm:$0x1]
    %43 = vrot.lane.b32.xlu0 %v42, 36
    %v44 = vpop.permute.xlu0 %43
    %vm45 = vcmask 326944
    %46 = vst.msk [vmem:[#allocation0] sm:$0x1] %vm45, %v44
    %s47 = scalar_lea.vmem %s0, 8
    %v48 = vld [vmem:[%s47] sm:$0x1]
    %49 = vrot.lane.b32.xlu0 %v48, 32
    %v50 = vpop.permute.xlu0 %49
    %vm51 = vcmask 294144
    %52 = vst.msk [vmem:[#allocation0] sm:$0x1] %vm51, %v50
    %s53 = scalar_lea.vmem %s0, 7
    %v54 = vld [vmem:[%s53] sm:$0x1]
    %55 = vrot.lane.b32.xlu0 %v54, 28
    %v56 = vpop.permute.xlu0 %55
    %vm57 = vcmask 261344
    %58 = vst.msk [vmem:[#allocation0] sm:$0x1] %vm57, %v56
    %s59 = scalar_lea.vmem %s0, 6
    %v60 = vld [vmem:[%s59] sm:$0x1]
    %61 = vrot.lane.b32.xlu0 %v60, 24
    %v62 = vpop.permute.xlu0 %61
    %vm63 = vcmask 228544
    %64 = vst.msk [vmem:[#allocation0] sm:$0x1] %vm63, %v62
    %s65 = scalar_lea.vmem %s0, 5
    %v66 = vld [vmem:[%s65] sm:$0x1]
    %67 = vrot.lane.b32.xlu0 %v66, 20
    %v68 = vpop.permute.xlu0 %67
    %vm69 = vcmask 195744
    %70 = vst.msk [vmem:[#allocation0] sm:$0x1] %vm69, %v68
    %s71 = scalar_lea.vmem %s0, 4
    %v72 = vld [vmem:[%s71] sm:$0x1]
    %73 = vrot.lane.b32.xlu0 %v72, 16
    %v74 = vpop.permute.xlu0 %73
    %vm75 = vcmask 162944
    %76 = vst.msk [vmem:[#allocation0] sm:$0x1] %vm75, %v74
    %s77 = scalar_lea.vmem %s0, 3
    %v78 = vld [vmem:[%s77] sm:$0x1]
    %79 = vrot.lane.b32.xlu0 %v78, 12
    %v80 = vpop.permute.xlu0 %79
    %vm81 = vcmask 130144
    %82 = vst.msk [vmem:[#allocation0] sm:$0x1] %vm81, %v80
    %s83 = scalar_lea.vmem %s0, 2
    %v84 = vld [vmem:[%s83] sm:$0x1]
    %85 = vrot.lane.b32.xlu0 %v84, 8
    %v86 = vpop.permute.xlu0 %85
    %vm87 = vcmask 97344
    %88 = vst.msk [vmem:[#allocation0] sm:$0x1] %vm87, %v86
    %s89 = scalar_lea.vmem %s0, 1
    %v90 = vld [vmem:[%s89] sm:$0x1]
    %91 = vrot.lane.b32.xlu0 %v90, 4
    %v92 = vpop.permute.xlu0 %91
    %vm93 = vcmask 64544
    %94 = vst.msk [vmem:[#allocation0] sm:$0x1] %vm93, %v92
    %s96 = sshll.u32 1, 1
    %s97 = ssub.s32 %s96, 1
    %v99 = vld [vmem:[#allocation0] sm:%s97]
    %s100 = sshll.u32 1, 1
    %s101 = ssub.s32 %s100, 1
    %102 = vst [vmem:[%s1] sm:%s101] %v99

// kernel: tile.74
$region0: #{tile.74}
  #allocation0 [shape = 's32[1]{0}', space=sflag, size = 0x4, scoped, tag = 'scoped memory for tile.74']
  %s0 = inlined_call_operand.vmem [shape: f32[4], index: 0, kind: input, shape index: {}]
  %s1 = inlined_call_operand.vmem [shape: f32[64,4], index: 1, kind: output, shape index: {}]
  // Predicated region
  $region2: #{tile.74} parent=0 // pred_check
    _
  $region3: #{tile.74} parent=0 // pred_check_branch
    %3 = sbr.rel (0) target = $region5
  $region4: #{tile.74} parent=0 // pred_region
    _
  $region5: #{tile.74} parent=0 // pred_fallthru
    _
  %v4 = vld [vmem:[%s0] ss:$0 sm:$0xff]
  %5 = vst [vmem:[%s1] sm:$0xff] %v4
  %s6 = scalar_lea.vmem %s1, 8
  %7 = vst [vmem:[%s6] sm:$0xff] %v4
  %s8 = scalar_lea.vmem %s1, 16
  %9 = vst [vmem:[%s8] sm:$0xff] %v4
  %s10 = scalar_lea.vmem %s1, 24
  %11 = vst [vmem:[%s10] sm:$0xff] %v4
  %s12 = scalar_lea.vmem %s1, 32
  %13 = vst [vmem:[%s12] sm:$0xff] %v4
  %s14 = scalar_lea.vmem %s1, 40
  %15 = vst [vmem:[%s14] sm:$0xff] %v4
  %s16 = scalar_lea.vmem %s1, 48
  %17 = vst [vmem:[%s16] sm:$0xff] %v4
  %s18 = scalar_lea.vmem %s1, 56
  %19 = vst [vmem:[%s18] sm:$0xff] %v4

// kernel: tile.75
$region0: #{tile.75}
  %s0 = inlined_call_operand.vmem [shape: f32[64,4], index: 0, kind: input, shape index: {}]
  %s1 = inlined_call_operand.vmem [shape: f32[1,256], index: 1, kind: output, shape index: {}]
  $region1: #{tile.75} parent=0
    #allocation0 [shape = 'u8[8192]{0}', space=vmem, size = 0x2000, scoped, tag = 'scoped mem for output reshape']
    %v2 = vld [vmem:[%s0] sm:$0x1]
    %s3 = scalar_lea.vmem %s0, 31
    %v4 = vld [vmem:[%s3] sm:$0x2]
    %vm5 = vcmask 1041409
    %v6 = vsel %vm5, %v4, %v2
    %vm7 = vcmask 31744
    %8 = vst.msk [vmem:[#allocation0] ss:$8 sm:$0x3] %vm7, %v6
    %s9 = scalar_lea.vmem %s0, 31
    %v10 = vld [vmem:[%s9] sm:$0x1]
    %s11 = scalar_lea.vmem %s0, 62
    %v12 = vld [vmem:[%s11] sm:$0x2]
    %vm13 = vcmask 1041409
    %v14 = vsel %vm13, %v12, %v10
    %15 = vrot.lane.b32.xlu0 %v14, 124
    %v16 = vpop.permute.xlu0 %15
    %vm17 = vcmask 1048544
    %18 = vst.msk [vmem:[#allocation0] ss:$8 sm:$0x3] %vm17, %v16
    %s19 = scalar_lea.vmem %s0, 30
    %v20 = vld [vmem:[%s19] sm:$0x1]
    %s21 = scalar_lea.vmem %s0, 61
    %v22 = vld [vmem:[%s21] sm:$0x2]
    %vm23 = vcmask 1041409
    %v24 = vsel %vm23, %v22, %v20
    %25 = vrot.lane.b32.xlu0 %v24, 120
    %v26 = vpop.permute.xlu0 %25
    %vm27 = vcmask 1015744
    %28 = vst.msk [vmem:[#allocation0] ss:$8 sm:$0x3] %vm27, %v26
    %s29 = scalar_lea.vmem %s0, 29
    %v30 = vld [vmem:[%s29] sm:$0x1]
    %s31 = scalar_lea.vmem %s0, 60
    %v32 = vld [vmem:[%s31] sm:$0x2]
    %vm33 = vcmask 1041409
    %v34 = vsel %vm33, %v32, %v30
    %35 = vrot.lane.b32.xlu0 %v34, 116
    %v36 = vpop.permute.xlu0 %35
    %vm37 = vcmask 982944
    %38 = vst.msk [vmem:[#allocation0] ss:$8 sm:$0x3] %vm37, %v36
    %s39 = scalar_lea.vmem %s0, 28
    %v40 = vld [vmem:[%s39] sm:$0x1]
    %s41 = scalar_lea.vmem %s0, 59
    %v42 = vld [vmem:[%s41] sm:$0x2]
    %vm43 = vcmask 1041409
    %v44 = vsel %vm43, %v42, %v40
    %45 = vrot.lane.b32.xlu0 %v44, 112
    %v46 = vpop.permute.xlu0 %45
    %vm47 = vcmask 950144
    %48 = vst.msk [vmem:[#allocation0] ss:$8 sm:$0x3] %vm47, %v46
    %s49 = scalar_lea.vmem %s0, 27
    %v50 = vld [vmem:[%s49] sm:$0x1]
    %s51 = scalar_lea.vmem %s0, 58
    %v52 = vld [vmem:[%s51] sm:$0x2]
    %vm53 = vcmask 1041409
    %v54 = vsel %vm53, %v52, %v50
    %55 = vrot.lane.b32.xlu0 %v54, 108
    %v56 = vpop.permute.xlu0 %55
    %vm57 = vcmask 917344
    %58 = vst.msk [vmem:[#allocation0] ss:$8 sm:$0x3] %vm57, %v56
    %s59 = scalar_lea.vmem %s0, 26
    %v60 = vld [vmem:[%s59] sm:$0x1]
    %s61 = scalar_lea.vmem %s0, 57
    %v62 = vld [vmem:[%s61] sm:$0x2]
    %vm63 = vcmask 1041409
    %v64 = vsel %vm63, %v62, %v60
    %65 = vrot.lane.b32.xlu0 %v64, 104
    %v66 = vpop.permute.xlu0 %65
    %vm67 = vcmask 884544
    %68 = vst.msk [vmem:[#allocation0] ss:$8 sm:$0x3] %vm67, %v66
    %s69 = scalar_lea.vmem %s0, 25
    %v70 = vld [vmem:[%s69] sm:$0x1]
    %s71 = scalar_lea.vmem %s0, 56
    %v72 = vld [vmem:[%s71] sm:$0x2]
    %vm73 = vcmask 1041409
    %v74 = vsel %vm73, %v72, %v70
    %75 = vrot.lane.b32.xlu0 %v74, 100
    %v76 = vpop.permute.xlu0 %75
    %vm77 = vcmask 851744
    %78 = vst.msk [vmem:[#allocation0] ss:$8 sm:$0x3] %vm77, %v76
    %s79 = scalar_lea.vmem %s0, 24
    %v80 = vld [vmem:[%s79] sm:$0x1]
    %s81 = scalar_lea.vmem %s0, 55
    %v82 = vld [vmem:[%s81] sm:$0x2]
    %vm83 = vcmask 1041409
    %v84 = vsel %vm83, %v82, %v80
    %85 = vrot.lane.b32.xlu0 %v84, 96
    %v86 = vpop.permute.xlu0 %85
    %vm87 = vcmask 818944
    %88 = vst.msk [vmem:[#allocation0] ss:$8 sm:$0x3] %vm87, %v86
    %s89 = scalar_lea.vmem %s0, 23
    %v90 = vld [vmem:[%s89] sm:$0x1]
    %s91 = scalar_lea.vmem %s0, 54
    %v92 = vld [vmem:[%s91] sm:$0x2]
    %vm93 = vcmask 1041409
    %v94 = vsel %vm93, %v92, %v90
    %95 = vrot.lane.b32.xlu0 %v94, 92
    %v96 = vpop.permute.xlu0 %95
    %vm97 = vcmask 786144
    %98 = vst.msk [vmem:[#allocation0] ss:$8 sm:$0x3] %vm97, %v96
    %s99 = scalar_lea.vmem %s0, 22
    %v100 = vld [vmem:[%s99] sm:$0x1]
    %s101 = scalar_lea.vmem %s0, 53
    %v102 = vld [vmem:[%s101] sm:$0x2]
    %vm103 = vcmask 1041409
    %v104 = vsel %vm103, %v102, %v100
    %105 = vrot.lane.b32.xlu0 %v104, 88
    %v106 = vpop.permute.xlu0 %105
    %vm107 = vcmask 753344
    %108 = vst.msk [vmem:[#allocation0] ss:$8 sm:$0x3] %vm107, %v106
    %s109 = scalar_lea.vmem %s0, 21
    %v110 = vld [vmem:[%s109] sm:$0x1]
    %s111 = scalar_lea.vmem %s0, 52
    %v112 = vld [vmem:[%s111] sm:$0x2]
    %vm113 = vcmask 1041409
    %v114 = vsel %vm113, %v112, %v110
    %115 = vrot.lane.b32.xlu0 %v114, 84
    %v116 = vpop.permute.xlu0 %115
    %vm117 = vcmask 720544
    %118 = vst.msk [vmem:[#allocation0] ss:$8 sm:$0x3] %vm117, %v116
    %s119 = scalar_lea.vmem %s0, 20
    %v120 = vld [vmem:[%s119] sm:$0x1]
    %s121 = scalar_lea.vmem %s0, 51
    %v122 = vld [vmem:[%s121] sm:$0x2]
    %vm123 = vcmask 1041409
    %v124 = vsel %vm123, %v122, %v120
    %125 = vrot.lane.b32.xlu0 %v124, 80
    %v126 = vpop.permute.xlu0 %125
    %vm127 = vcmask 687744
    %128 = vst.msk [vmem:[#allocation0] ss:$8 sm:$0x3] %vm127, %v126
    %s129 = scalar_lea.vmem %s0, 19
    %v130 = vld [vmem:[%s129] sm:$0x1]
    %s131 = scalar_lea.vmem %s0, 50
    %v132 = vld [vmem:[%s131] sm:$0x2]
    %vm133 = vcmask 1041409
    %v134 = vsel %vm133, %v132, %v130
    %135 = vrot.lane.b32.xlu0 %v134, 76
    %v136 = vpop.permute.xlu0 %135
    %vm137 = vcmask 654944
    %138 = vst.msk [vmem:[#allocation0] ss:$8 sm:$0x3] %vm137, %v136
    %s139 = scalar_lea.vmem %s0, 18
    %v140 = vld [vmem:[%s139] sm:$0x1]
    %s141 = scalar_lea.vmem %s0, 49
    %v142 = vld [vmem:[%s141] sm:$0x2]
    %vm143 = vcmask 1041409
    %v144 = vsel %vm143, %v142, %v140
    %145 = vrot.lane.b32.xlu0 %v144, 72
    %v146 = vpop.permute.xlu0 %145
    %vm147 = vcmask 622144
    %148 = vst.msk [vmem:[#allocation0] ss:$8 sm:$0x3] %vm147, %v146
    %s149 = scalar_lea.vmem %s0, 17
    %v150 = vld [vmem:[%s149] sm:$0x1]
    %s151 = scalar_lea.vmem %s0, 48
    %v152 = vld [vmem:[%s151] sm:$0x2]
    %vm153 = vcmask 1041409
    %v154 = vsel %vm153, %v152, %v150
    %155 = vrot.lane.b32.xlu0 %v154, 68
    %v156 = vpop.permute.xlu0 %155
    %vm157 = vcmask 589344
    %158 = vst.msk [vmem:[#allocation0] ss:$8 sm:$0x3] %vm157, %v156
    %s159 = scalar_lea.vmem %s0, 16
    %v160 = vld [vmem:[%s159] sm:$0x1]
    %s161 = scalar_lea.vmem %s0, 47
    %v162 = vld [vmem:[%s161] sm:$0x2]
    %vm163 = vcmask 1041409
    %v164 = vsel %vm163, %v162, %v160
    %165 = vrot.lane.b32.xlu0 %v164, 64
    %v166 = vpop.permute.xlu0 %165
    %vm167 = vcmask 556544
    %168 = vst.msk [vmem:[#allocation0] ss:$8 sm:$0x3] %vm167, %v166
    %s169 = scalar_lea.vmem %s0, 15
    %v170 = vld [vmem:[%s169] sm:$0x1]
    %s171 = scalar_lea.vmem %s0, 46
    %v172 = vld [vmem:[%s171] sm:$0x2]
    %vm173 = vcmask 1041409
    %v174 = vsel %vm173, %v172, %v170
    %175 = vrot.lane.b32.xlu0 %v174, 60
    %v176 = vpop.permute.xlu0 %175
    %vm177 = vcmask 523744
    %178 = vst.msk [vmem:[#allocation0] ss:$8 sm:$0x3] %vm177, %v176
    %s179 = scalar_lea.vmem %s0, 14
    %v180 = vld [vmem:[%s179] sm:$0x1]
    %s181 = scalar_lea.vmem %s0, 45
    %v182 = vld [vmem:[%s181] sm:$0x2]
    %vm183 = vcmask 1041409
    %v184 = vsel %vm183, %v182, %v180
    %185 = vrot.lane.b32.xlu0 %v184, 56
    %v186 = vpop.permute.xlu0 %185
    %vm187 = vcmask 490944
    %188 = vst.msk [vmem:[#allocation0] ss:$8 sm:$0x3] %vm187, %v186
    %s189 = scalar_lea.vmem %s0, 13
    %v190 = vld [vmem:[%s189] sm:$0x1]
    %s191 = scalar_lea.vmem %s0, 44
    %v192 = vld [vmem:[%s191] sm:$0x2]
    %vm193 = vcmask 1041409
    %v194 = vsel %vm193, %v192, %v190
    %195 = vrot.lane.b32.xlu0 %v194, 52
    %v196 = vpop.permute.xlu0 %195
    %vm197 = vcmask 458144
    %198 = vst.msk [vmem:[#allocation0] ss:$8 sm:$0x3] %vm197, %v196
    %s199 = scalar_lea.vmem %s0, 12
    %v200 = vld [vmem:[%s199] sm:$0x1]
    %s201 = scalar_lea.vmem %s0, 43
    %v202 = vld [vmem:[%s201] sm:$0x2]
    %vm203 = vcmask 1041409
    %v204 = vsel %vm203, %v202, %v200
    %205 = vrot.lane.b32.xlu0 %v204, 48
    %v206 = vpop.permute.xlu0 %205
    %vm207 = vcmask 425344
    %208 = vst.msk [vmem:[#allocation0] ss:$8 sm:$0x3] %vm207, %v206
    %s209 = scalar_lea.vmem %s0, 11
    %v210 = vld [vmem:[%s209] sm:$0x1]
    %s211 = scalar_lea.vmem %s0, 42
    %v212 = vld [vmem:[%s211] sm:$0x2]
    %vm213 = vcmask 1041409
    %v214 = vsel %vm213, %v212, %v210
    %215 = vrot.lane.b32.xlu0 %v214, 44
    %v216 = vpop.permute.xlu0 %215
    %vm217 = vcmask 392544
    %218 = vst.msk [vmem:[#allocation0] ss:$8 sm:$0x3] %vm217, %v216
    %s219 = scalar_lea.vmem %s0, 10
    %v220 = vld [vmem:[%s219] sm:$0x1]
    %s221 = scalar_lea.vmem %s0, 41
    %v222 = vld [vmem:[%s221] sm:$0x2]
    %vm223 = vcmask 1041409
    %v224 = vsel %vm223, %v222, %v220
    %225 = vrot.lane.b32.xlu0 %v224, 40
    %v226 = vpop.permute.xlu0 %225
    %vm227 = vcmask 359744
    %228 = vst.msk [vmem:[#allocation0] ss:$8 sm:$0x3] %vm227, %v226
    %s229 = scalar_lea.vmem %s0, 9
    %v230 = vld [vmem:[%s229] sm:$0x1]
    %s231 = scalar_lea.vmem %s0, 40
    %v232 = vld [vmem:[%s231] sm:$0x2]
    %vm233 = vcmask 1041409
    %v234 = vsel %vm233, %v232, %v230
    %235 = vrot.lane.b32.xlu0 %v234, 36
    %v236 = vpop.permute.xlu0 %235
    %vm237 = vcmask 326944
    %238 = vst.msk [vmem:[#allocation0] ss:$8 sm:$0x3] %vm237, %v236
    %s239 = scalar_lea.vmem %s0, 8
    %v240 = vld [vmem:[%s239] sm:$0x1]
    %s241 = scalar_lea.vmem %s0, 39
    %v242 = vld [vmem:[%s241] sm:$0x2]
    %vm243 = vcmask 1041409
    %v244 = vsel %vm243, %v242, %v240
    %245 = vrot.lane.b32.xlu0 %v244, 32
    %v246 = vpop.permute.xlu0 %245
    %vm247 = vcmask 294144
    %248 = vst.msk [vmem:[#allocation0] ss:$8 sm:$0x3] %vm247, %v246
    %s249 = scalar_lea.vmem %s0, 7
    %v250 = vld [vmem:[%s249] sm:$0x1]
    %s251 = scalar_lea.vmem %s0, 38
    %v252 = vld [vmem:[%s251] sm:$0x2]
    %vm253 = vcmask 1041409
    %v254 = vsel %vm253, %v252, %v250
    %255 = vrot.lane.b32.xlu0 %v254, 28
    %v256 = vpop.permute.xlu0 %255
    %vm257 = vcmask 261344
    %258 = vst.msk [vmem:[#allocation0] ss:$8 sm:$0x3] %vm257, %v256
    %s259 = scalar_lea.vmem %s0, 6
    %v260 = vld [vmem:[%s259] sm:$0x1]
    %s261 = scalar_lea.vmem %s0, 37
    %v262 = vld [vmem:[%s261] sm:$0x2]
    %vm263 = vcmask 1041409
    %v264 = vsel %vm263, %v262, %v260
    %265 = vrot.lane.b32.xlu0 %v264, 24
    %v266 = vpop.permute.xlu0 %265
    %vm267 = vcmask 228544
    %268 = vst.msk [vmem:[#allocation0] ss:$8 sm:$0x3] %vm267, %v266
    %s269 = scalar_lea.vmem %s0, 5
    %v270 = vld [vmem:[%s269] sm:$0x1]
    %s271 = scalar_lea.vmem %s0, 36
    %v272 = vld [vmem:[%s271] sm:$0x2]
    %vm273 = vcmask 1041409
    %v274 = vsel %vm273, %v272, %v270
    %275 = vrot.lane.b32.xlu0 %v274, 20
    %v276 = vpop.permute.xlu0 %275
    %vm277 = vcmask 195744
    %278 = vst.msk [vmem:[#allocation0] ss:$8 sm:$0x3] %vm277, %v276
    %s279 = scalar_lea.vmem %s0, 4
    %v280 = vld [vmem:[%s279] sm:$0x1]
    %s281 = scalar_lea.vmem %s0, 35
    %v282 = vld [vmem:[%s281] sm:$0x2]
    %vm283 = vcmask 1041409
    %v284 = vsel %vm283, %v282, %v280
    %285 = vrot.lane.b32.xlu0 %v284, 16
    %v286 = vpop.permute.xlu0 %285
    %vm287 = vcmask 162944
    %288 = vst.msk [vmem:[#allocation0] ss:$8 sm:$0x3] %vm287, %v286
    %s289 = scalar_lea.vmem %s0, 3
    %v290 = vld [vmem:[%s289] sm:$0x1]
    %s291 = scalar_lea.vmem %s0, 34
    %v292 = vld [vmem:[%s291] sm:$0x2]
    %vm293 = vcmask 1041409
    %v294 = vsel %vm293, %v292, %v290
    %295 = vrot.lane.b32.xlu0 %v294, 12
    %v296 = vpop.permute.xlu0 %295
    %vm297 = vcmask 130144
    %298 = vst.msk [vmem:[#allocation0] ss:$8 sm:$0x3] %vm297, %v296
    %s299 = scalar_lea.vmem %s0, 2
    %v300 = vld [vmem:[%s299] sm:$0x1]
    %s301 = scalar_lea.vmem %s0, 33
    %v302 = vld [vmem:[%s301] sm:$0x2]
    %vm303 = vcmask 1041409
    %v304 = vsel %vm303, %v302, %v300
    %305 = vrot.lane.b32.xlu0 %v304, 8
    %v306 = vpop.permute.xlu0 %305
    %vm307 = vcmask 97344
    %308 = vst.msk [vmem:[#allocation0] ss:$8 sm:$0x3] %vm307, %v306
    %s309 = scalar_lea.vmem %s0, 1
    %v310 = vld [vmem:[%s309] sm:$0x1]
    %s311 = scalar_lea.vmem %s0, 32
    %v312 = vld [vmem:[%s311] sm:$0x2]
    %vm313 = vcmask 1041409
    %v314 = vsel %vm313, %v312, %v310
    %315 = vrot.lane.b32.xlu0 %v314, 4
    %v316 = vpop.permute.xlu0 %315
    %vm317 = vcmask 64544
    %318 = vst.msk [vmem:[#allocation0] ss:$8 sm:$0x3] %vm317, %v316
    %s320 = sshll.u32 1, 1
    %s321 = ssub.s32 %s320, 1
    %v323 = vld [vmem:[#allocation0] sm:%s321]
    %s324 = sshll.u32 1, 1
    %s325 = ssub.s32 %s324, 1
    %326 = vst [vmem:[%s1] sm:%s325] %v323
    %s327 = scalar_lea.vmem [#allocation0], 8
    %v328 = vld [vmem:[%s327] sm:%s321]
    %s329 = sshll.u32 1, 1
    %s330 = ssub.s32 %s329, 1
    %s331 = scalar_lea.vmem %s1, 1
    %332 = vst [vmem:[%s331] sm:%s330] %v328

// kernel: _lambda_.1
$region0: #{_lambda_.1}
  #allocation0 [shape = 'u32[]', space=smem, size = 0x4, offset = 0x4, fixed_abs, tag = 'smem constant byte address 0x4 - core index']
  #allocation1 [shape = 'u32[144,128]{1,0:T(1,128)}', space=vmem, size = 0x12000, scoped, tag = 'internal scratch']
  %s0 = inlined_call_operand.vmem [shape: bf16[16,128], index: 0, kind: input, shape index: {}]
  %s1 = inlined_call_operand.vmem [shape: bf16[384,128], index: 1, kind: input, shape index: {}]
  %s2 = inlined_call_operand.vmem [shape: f32[1,128], index: 2, kind: input, shape index: {}]
  %s3 = inlined_call_operand.vmem [shape: bf16[384,128], index: 3, kind: input, shape index: {}]
  %s4 = inlined_call_operand.vmem [shape: f32[1,128], index: 4, kind: input, shape index: {}]
  %s5 = inlined_call_operand.vmem [shape: bf16[384,64], index: 5, kind: input, shape index: {}]
  %s6 = inlined_call_operand.vmem [shape: f32[1,64], index: 6, kind: input, shape index: {}]
  %s7 = inlined_call_operand.vmem [shape: bf16[192,64], index: 7, kind: input, shape index: {}]
  %s8 = inlined_call_operand.vmem [shape: f32[1,64], index: 8, kind: input, shape index: {}]
  %s9 = inlined_call_operand.vmem [shape: bf16[192,64], index: 9, kind: input, shape index: {}]
  %s10 = inlined_call_operand.vmem [shape: f32[1,64], index: 10, kind: input, shape index: {}]
  %s11 = inlined_call_operand.vmem [shape: bf16[192,64], index: 11, kind: input, shape index: {}]
  %s12 = inlined_call_operand.vmem [shape: f32[1,64], index: 12, kind: input, shape index: {}]
  %s13 = inlined_call_operand.vmem [shape: bf16[192,64], index: 13, kind: input, shape index: {}]
  %s14 = inlined_call_operand.vmem [shape: f32[1,64], index: 14, kind: input, shape index: {}]
  %s15 = inlined_call_operand.vmem [shape: bf16[192,256], index: 15, kind: input, shape index: {}]
  %s16 = inlined_call_operand.vmem [shape: f32[1,256], index: 16, kind: input, shape index: {}]
  %s17 = inlined_call_operand.vmem [shape: bf16[384,128], index: 17, kind: input, shape index: {}]
  %s18 = inlined_call_operand.vmem [shape: f32[1,128], index: 18, kind: input, shape index: {}]
  %s19 = inlined_call_operand.vmem [shape: bf16[384,128], index: 19, kind: input, shape index: {}]
  %s20 = inlined_call_operand.vmem [shape: f32[1,128], index: 20, kind: input, shape index: {}]
  %s21 = inlined_call_operand.vmem [shape: bf16[128,128], index: 21, kind: input, shape index: {}]
  %s22 = inlined_call_operand.vmem [shape: f32[1,128], index: 22, kind: input, shape index: {}]
  %s23 = inlined_call_operand.vmem [shape: f32[16,128], index: 23, kind: output, shape index: {}]
  %s24 = sld [smem:[#allocation0]]
  $region102: #{_lambda_.1} parent=0
    _
  %s26 = ssub.s32 1, %s24
  %s27 = scalar_select 0, %s26, %s24
  // Predicated region
  $region2: #{_lambda_.1} parent=0 // pred_check
    _
  $region3: #{_lambda_.1} parent=0 // pred_check_branch
    %29 = sbr.rel (0) target = $region5
  $region4: #{_lambda_.1} parent=0 // pred_region
    _
  $region5: #{_lambda_.1} parent=0 // pred_fallthru
    _
  // Predicated region
  $region6: #{_lambda_.1} parent=0 // pred_check
    _
  $region7: #{_lambda_.1} parent=0 // pred_check_branch
    %31 = sbr.rel (0) target = $region9
  $region8: #{_lambda_.1} parent=0 // pred_region
    _
  $region9: #{_lambda_.1} parent=0 // pred_fallthru
    _
  // Predicated region
  $region10: #{_lambda_.1} parent=0 // pred_check
    _
  $region11: #{_lambda_.1} parent=0 // pred_check_branch
    %33 = sbr.rel (0) target = $region13
  $region12: #{_lambda_.1} parent=0 // pred_region
    _
  $region13: #{_lambda_.1} parent=0 // pred_fallthru
    _
  // Predicated region
  $region14: #{_lambda_.1} parent=0 // pred_check
    _
  $region15: #{_lambda_.1} parent=0 // pred_check_branch
    %35 = sbr.rel (0) target = $region17
  $region16: #{_lambda_.1} parent=0 // pred_region
    _
  $region17: #{_lambda_.1} parent=0 // pred_fallthru
    _
  // Predicated region
  $region18: #{_lambda_.1} parent=0 // pred_check
    _
  $region19: #{_lambda_.1} parent=0 // pred_check_branch
    %37 = sbr.rel (0) target = $region21
  $region20: #{_lambda_.1} parent=0 // pred_region
    _
  $region21: #{_lambda_.1} parent=0 // pred_fallthru
    _
  // Predicated region
  $region22: #{_lambda_.1} parent=0 // pred_check
    _
  $region23: #{_lambda_.1} parent=0 // pred_check_branch
    %39 = sbr.rel (0) target = $region25
  $region24: #{_lambda_.1} parent=0 // pred_region
    _
  $region25: #{_lambda_.1} parent=0 // pred_fallthru
    _
  // Predicated region
  $region26: #{_lambda_.1} parent=0 // pred_check
    _
  $region27: #{_lambda_.1} parent=0 // pred_check_branch
    %41 = sbr.rel (0) target = $region29
  $region28: #{_lambda_.1} parent=0 // pred_region
    _
  $region29: #{_lambda_.1} parent=0 // pred_fallthru
    _
  // Predicated region
  $region30: #{_lambda_.1} parent=0 // pred_check
    _
  $region31: #{_lambda_.1} parent=0 // pred_check_branch
    %43 = sbr.rel (0) target = $region33
  $region32: #{_lambda_.1} parent=0 // pred_region
    _
  $region33: #{_lambda_.1} parent=0 // pred_fallthru
    _
  // Predicated region
  $region34: #{_lambda_.1} parent=0 // pred_check
    _
  $region35: #{_lambda_.1} parent=0 // pred_check_branch
    %45 = sbr.rel (0) target = $region37
  $region36: #{_lambda_.1} parent=0 // pred_region
    _
  $region37: #{_lambda_.1} parent=0 // pred_fallthru
    _
  // Predicated region
  $region38: #{_lambda_.1} parent=0 // pred_check
    _
  $region39: #{_lambda_.1} parent=0 // pred_check_branch
    %47 = sbr.rel (0) target = $region41
  $region40: #{_lambda_.1} parent=0 // pred_region
    _
  $region41: #{_lambda_.1} parent=0 // pred_fallthru
    _
  // Predicated region
  $region42: #{_lambda_.1} parent=0 // pred_check
    _
  $region43: #{_lambda_.1} parent=0 // pred_check_branch
    %49 = sbr.rel (0) target = $region45
  $region44: #{_lambda_.1} parent=0 // pred_region
    _
  $region45: #{_lambda_.1} parent=0 // pred_fallthru
    _
  // Predicated region
  $region46: #{_lambda_.1} parent=0 // pred_check
    _
  $region47: #{_lambda_.1} parent=0 // pred_check_branch
    %51 = sbr.rel (0) target = $region49
  $region48: #{_lambda_.1} parent=0 // pred_region
    _
  $region49: #{_lambda_.1} parent=0 // pred_fallthru
    _
  // Predicated region
  $region50: #{_lambda_.1} parent=0 // pred_check
    _
  $region51: #{_lambda_.1} parent=0 // pred_check_branch
    %53 = sbr.rel (0) target = $region53
  $region52: #{_lambda_.1} parent=0 // pred_region
    _
  $region53: #{_lambda_.1} parent=0 // pred_fallthru
    _
  // Predicated region
  $region54: #{_lambda_.1} parent=0 // pred_check
    _
  $region55: #{_lambda_.1} parent=0 // pred_check_branch
    %55 = sbr.rel (0) target = $region57
  $region56: #{_lambda_.1} parent=0 // pred_region
    _
  $region57: #{_lambda_.1} parent=0 // pred_fallthru
    _
  // Predicated region
  $region58: #{_lambda_.1} parent=0 // pred_check
    _
  $region59: #{_lambda_.1} parent=0 // pred_check_branch
    %57 = sbr.rel (0) target = $region61
  $region60: #{_lambda_.1} parent=0 // pred_region
    _
  $region61: #{_lambda_.1} parent=0 // pred_fallthru
    _
  // Predicated region
  $region62: #{_lambda_.1} parent=0 // pred_check
    _
  $region63: #{_lambda_.1} parent=0 // pred_check_branch
    %59 = sbr.rel (0) target = $region65
  $region64: #{_lambda_.1} parent=0 // pred_region
    _
  $region65: #{_lambda_.1} parent=0 // pred_fallthru
    _
  // Predicated region
  $region66: #{_lambda_.1} parent=0 // pred_check
    _
  $region67: #{_lambda_.1} parent=0 // pred_check_branch
    %61 = sbr.rel (0) target = $region69
  $region68: #{_lambda_.1} parent=0 // pred_region
    _
  $region69: #{_lambda_.1} parent=0 // pred_fallthru
    _
  // Predicated region
  $region70: #{_lambda_.1} parent=0 // pred_check
    _
  $region71: #{_lambda_.1} parent=0 // pred_check_branch
    %63 = sbr.rel (0) target = $region73
  $region72: #{_lambda_.1} parent=0 // pred_region
    _
  $region73: #{_lambda_.1} parent=0 // pred_fallthru
    _
  // Predicated region
  $region74: #{_lambda_.1} parent=0 // pred_check
    _
  $region75: #{_lambda_.1} parent=0 // pred_check_branch
    %65 = sbr.rel (0) target = $region77
  $region76: #{_lambda_.1} parent=0 // pred_region
    _
  $region77: #{_lambda_.1} parent=0 // pred_fallthru
    _
  // Predicated region
  $region78: #{_lambda_.1} parent=0 // pred_check
    _
  $region79: #{_lambda_.1} parent=0 // pred_check_branch
    %67 = sbr.rel (0) target = $region81
  $region80: #{_lambda_.1} parent=0 // pred_region
    _
  $region81: #{_lambda_.1} parent=0 // pred_fallthru
    _
  // Predicated region
  $region82: #{_lambda_.1} parent=0 // pred_check
    _
  $region83: #{_lambda_.1} parent=0 // pred_check_branch
    %69 = sbr.rel (0) target = $region85
  $region84: #{_lambda_.1} parent=0 // pred_region
    _
  $region85: #{_lambda_.1} parent=0 // pred_fallthru
    _
  // Predicated region
  $region86: #{_lambda_.1} parent=0 // pred_check
    _
  $region87: #{_lambda_.1} parent=0 // pred_check_branch
    %71 = sbr.rel (0) target = $region89
  $region88: #{_lambda_.1} parent=0 // pred_region
    _
  $region89: #{_lambda_.1} parent=0 // pred_fallthru
    _
  // Predicated region
  $region90: #{_lambda_.1} parent=0 // pred_check
    _
  $region91: #{_lambda_.1} parent=0 // pred_check_branch
    %73 = sbr.rel (0) target = $region93
  $region92: #{_lambda_.1} parent=0 // pred_region
    _
  $region93: #{_lambda_.1} parent=0 // pred_fallthru
    _
  %v75 = vld [vmem:[%s0] sm:$0xf]
  %v76 = vld [vmem:[%s0 + $0x4] sm:$0xf]
  %v77 = vunpack.c.l.bf16 %v75
  %v78 = vunpack.c.l.bf16 %v76
  %v80 = vrot.slane %v78, 7
  %vm82 = vcmask 1040384
  %v83 = vsel %vm82, 0.0, %v80
  %v85 = vrot.slane %v77, 1
  %vm87 = vcmask 1046528
  %v88 = vsel %vm87, %v85, 0.0
  %v89 = vpack.c.bf16 %v77, %v83
  %v90 = vpack.c.bf16 %v78, %v77
  %v91 = vpack.c.bf16 %v88, %v78
  %v92 = vld [vmem:[%s1] sm:$0xf]
  %v93 = vld [vmem:[%s1 + $0x4] sm:$0xf]
  %v94 = vld [vmem:[%s1 + $0x8] sm:$0xf]
  %v95 = vld [vmem:[%s1 + $0xc] sm:$0xf]
  %v96 = vld [vmem:[%s1 + $0x10] sm:$0xf]
  %v97 = vld [vmem:[%s1 + $0x14] sm:$0xf]
  %v98 = vld [vmem:[%s1 + $0x18] sm:$0xf]
  %v99 = vld [vmem:[%s1 + $0x1c] sm:$0xf]
  %v100 = vld [vmem:[%s1 + $0x20] sm:$0xf]
  %v101 = vld [vmem:[%s1 + $0x24] sm:$0xf]
  %v102 = vld [vmem:[%s1 + $0x28] sm:$0xf]
  %v103 = vld [vmem:[%s1 + $0x2c] sm:$0xf]
  %v104 = vld [vmem:[%s1 + $0x30] sm:$0xf]
  %v105 = vld [vmem:[%s1 + $0x34] sm:$0xf]
  %v106 = vld [vmem:[%s1 + $0x38] sm:$0xf]
  %v107 = vld [vmem:[%s1 + $0x3c] sm:$0xf]
  %v108 = vld [vmem:[%s1 + $0x40] sm:$0xf]
  %v109 = vld [vmem:[%s1 + $0x44] sm:$0xf]
  %v110 = vld [vmem:[%s1 + $0x48] sm:$0xf]
  %v111 = vld [vmem:[%s1 + $0x4c] sm:$0xf]
  %v112 = vld [vmem:[%s1 + $0x50] sm:$0xf]
  %v113 = vld [vmem:[%s1 + $0x54] sm:$0xf]
  %v114 = vld [vmem:[%s1 + $0x58] sm:$0xf]
  %v115 = vld [vmem:[%s1 + $0x5c] sm:$0xf]
  %v116 = vld [vmem:[%s1 + $0x60] sm:$0xf]
  %v117 = vld [vmem:[%s1 + $0x64] sm:$0xf]
  %v118 = vld [vmem:[%s1 + $0x68] sm:$0xf]
  %v119 = vld [vmem:[%s1 + $0x6c] sm:$0xf]
  %v120 = vld [vmem:[%s1 + $0x70] sm:$0xf]
  %v121 = vld [vmem:[%s1 + $0x74] sm:$0xf]
  %v122 = vld [vmem:[%s1 + $0x78] sm:$0xf]
  %v123 = vld [vmem:[%s1 + $0x7c] sm:$0xf]
  %v124 = vld [vmem:[%s1 + $0x80] sm:$0xf]
  %v125 = vld [vmem:[%s1 + $0x84] sm:$0xf]
  %v126 = vld [vmem:[%s1 + $0x88] sm:$0xf]
  %v127 = vld [vmem:[%s1 + $0x8c] sm:$0xf]
  %v128 = vld [vmem:[%s1 + $0x90] sm:$0xf]
  %v129 = vld [vmem:[%s1 + $0x94] sm:$0xf]
  %v130 = vld [vmem:[%s1 + $0x98] sm:$0xf]
  %v131 = vld [vmem:[%s1 + $0x9c] sm:$0xf]
  %v132 = vld [vmem:[%s1 + $0xa0] sm:$0xf]
  %v133 = vld [vmem:[%s1 + $0xa4] sm:$0xf]
  %v134 = vld [vmem:[%s1 + $0xa8] sm:$0xf]
  %v135 = vld [vmem:[%s1 + $0xac] sm:$0xf]
  %v136 = vld [vmem:[%s1 + $0xb0] sm:$0xf]
  %v137 = vld [vmem:[%s1 + $0xb4] sm:$0xf]
  %v138 = vld [vmem:[%s1 + $0xb8] sm:$0xf]
  %v139 = vld [vmem:[%s1 + $0xbc] sm:$0xf]
  %v140 = vld [vmem:[%s2] sm:$0x1]
  %v142 = vlaneseq
  %v143 = vshrl.u32 %v142, 7
  %v144 = vsub.s32 0, %v143
  %v145 = vrot.slane %v140, %v144
  %v195 = vunpack.c.l.b16 %v92
  %v196 = vunpack.c.l.b16 %v93
  %v197 = vunpack.c.l.b16 %v94
  %v198 = vunpack.c.l.b16 %v95
  %v199 = vunpack.c.l.b16 %v96
  %v200 = vunpack.c.l.b16 %v97
  %v201 = vunpack.c.l.b16 %v98
  %v202 = vunpack.c.l.b16 %v99
  %v203 = vunpack.c.l.b16 %v100
  %v204 = vunpack.c.l.b16 %v101
  %v205 = vunpack.c.l.b16 %v102
  %v206 = vunpack.c.l.b16 %v103
  %v207 = vunpack.c.l.b16 %v104
  %v208 = vunpack.c.l.b16 %v105
  %v209 = vunpack.c.l.b16 %v106
  %v210 = vunpack.c.l.b16 %v107
  %v211 = vunpack.c.l.b16 %v108
  %v212 = vunpack.c.l.b16 %v109
  %v213 = vunpack.c.l.b16 %v110
  %v214 = vunpack.c.l.b16 %v111
  %v215 = vunpack.c.l.b16 %v112
  %v216 = vunpack.c.l.b16 %v113
  %v217 = vunpack.c.l.b16 %v114
  %v218 = vunpack.c.l.b16 %v115
  %v219 = vunpack.c.l.b16 %v116
  %v220 = vunpack.c.l.b16 %v117
  %v221 = vunpack.c.l.b16 %v118
  %v222 = vunpack.c.l.b16 %v119
  %v223 = vunpack.c.l.b16 %v120
  %v224 = vunpack.c.l.b16 %v121
  %v225 = vunpack.c.l.b16 %v122
  %v226 = vunpack.c.l.b16 %v123
  %v227 = vunpack.c.l.b16 %v124
  %v228 = vunpack.c.l.b16 %v125
  %v229 = vunpack.c.l.b16 %v126
  %v230 = vunpack.c.l.b16 %v127
  %v231 = vunpack.c.l.b16 %v128
  %v232 = vunpack.c.l.b16 %v129
  %v233 = vunpack.c.l.b16 %v130
  %v234 = vunpack.c.l.b16 %v131
  %v235 = vunpack.c.l.b16 %v132
  %v236 = vunpack.c.l.b16 %v133
  %v237 = vunpack.c.l.b16 %v134
  %v238 = vunpack.c.l.b16 %v135
  %v239 = vunpack.c.l.b16 %v136
  %v240 = vunpack.c.l.b16 %v137
  %v241 = vunpack.c.l.b16 %v138
  %v242 = vunpack.c.l.b16 %v139
  %v243 = vpack.c.b16 %v196, %v195
  %v244 = vpack.c.b16 %v198, %v197
  %v245 = vpack.c.b16 %v200, %v199
  %v246 = vpack.c.b16 %v202, %v201
  %v247 = vpack.c.b16 %v204, %v203
  %v248 = vpack.c.b16 %v206, %v205
  %v249 = vpack.c.b16 %v208, %v207
  %v250 = vpack.c.b16 %v210, %v209
  %v251 = vpack.c.b16 %v212, %v211
  %v252 = vpack.c.b16 %v214, %v213
  %v253 = vpack.c.b16 %v216, %v215
  %v254 = vpack.c.b16 %v218, %v217
  %v255 = vpack.c.b16 %v220, %v219
  %v256 = vpack.c.b16 %v222, %v221
  %v257 = vpack.c.b16 %v224, %v223
  %v258 = vpack.c.b16 %v226, %v225
  %v259 = vpack.c.b16 %v228, %v227
  %v260 = vpack.c.b16 %v230, %v229
  %v261 = vpack.c.b16 %v232, %v231
  %v262 = vpack.c.b16 %v234, %v233
  %v263 = vpack.c.b16 %v236, %v235
  %v264 = vpack.c.b16 %v238, %v237
  %v265 = vpack.c.b16 %v240, %v239
  %v266 = vpack.c.b16 %v242, %v241
  %291 = vmatprep.subr.bf16.mxu0 0
  %292 = vmatpush1.bf16.msra.mxu0 %v250
  %293 = vmatprep.subr.bf16.mxu0 0
  %294 = vmatpush1.bf16.msra.mxu0 %v249
  %295 = vmatprep.subr.bf16.mxu0 0
  %296 = vmatpush1.bf16.msra.mxu0 %v248
  %297 = vmatprep.subr.bf16.mxu0 0
  %298 = vmatpush1.bf16.msra.mxu0 %v247
  %299 = vmatprep.subr.bf16.mxu0 0
  %300 = vmatpush1.bf16.msra.mxu0 %v246
  %301 = vmatprep.subr.bf16.mxu0 0
  %302 = vmatpush1.bf16.msra.mxu0 %v245
  %303 = vmatprep.subr.bf16.mxu0 0
  %304 = vmatpush1.bf16.msra.mxu0 %v244
  %305 = vmatprep.subr.bf16.mxu0 0
  %306 = vmatpush1.bf16.msra.mxu0 %v243
  %307 = vmatprep.subr.bf16.mxu0 0
  %308 = vmatpush2.bf16.msra.mxu0 %v258
  %309 = vmatprep.subr.bf16.mxu0 0
  %310 = vmatpush2.bf16.msra.mxu0 %v257
  %311 = vmatprep.subr.bf16.mxu0 0
  %312 = vmatpush2.bf16.msra.mxu0 %v256
  %313 = vmatprep.subr.bf16.mxu0 0
  %314 = vmatpush2.bf16.msra.mxu0 %v255
  %315 = vmatprep.subr.bf16.mxu0 0
  %316 = vmatpush2.bf16.msra.mxu0 %v254
  %317 = vmatprep.subr.bf16.mxu0 0
  %318 = vmatpush2.bf16.msra.mxu0 %v253
  %319 = vmatprep.subr.bf16.mxu0 0
  %320 = vmatpush2.bf16.msra.mxu0 %v252
  %321 = vmatprep.subr.bf16.mxu0 0
  %322 = vmatpush2.bf16.msra.mxu0 %v251
  %323 = vmatprep.mubr.bf16.mxu0 %v90
  %324 = vmatmul.mubr.bf16.gmra.mxu0 %v89
  %v325 = vpop.f32.mrf.mxu0
  %v326 = vadd.f32 %v145, %v325
  %v327 = vpop.f32.mrf.mxu0
  %v328 = vpop.f32.mrf.mxu0
  %v329 = vadd.f32 %v145, %v328
  %v330 = vpop.f32.mrf.mxu0
  %331 = vdwg.mxu0
  %332 = vmatprep.subr.bf16.mxu0 0
  %333 = vmatpush1.bf16.msra.mxu0 %v266
  %334 = vmatprep.subr.bf16.mxu0 0
  %335 = vmatpush1.bf16.msra.mxu0 %v265
  %336 = vmatprep.subr.bf16.mxu0 0
  %337 = vmatpush1.bf16.msra.mxu0 %v264
  %338 = vmatprep.subr.bf16.mxu0 0
  %339 = vmatpush1.bf16.msra.mxu0 %v263
  %340 = vmatprep.subr.bf16.mxu0 0
  %341 = vmatpush1.bf16.msra.mxu0 %v262
  %342 = vmatprep.subr.bf16.mxu0 0
  %343 = vmatpush1.bf16.msra.mxu0 %v261
  %344 = vmatprep.subr.bf16.mxu0 0
  %345 = vmatpush1.bf16.msra.mxu0 %v260
  %346 = vmatprep.subr.bf16.mxu0 0
  %347 = vmatpush1.bf16.msra.mxu0 %v259
  %348 = vmatprep.subr.bf16.mxu0 0
  %349 = vmatpush2.bf16.msra.mxu0 0
  %350 = vmatprep.subr.bf16.mxu0 0
  %351 = vmatpush2.bf16.msra.mxu0 0
  %352 = vmatprep.subr.bf16.mxu0 0
  %353 = vmatpush2.bf16.msra.mxu0 0
  %354 = vmatprep.subr.bf16.mxu0 0
  %355 = vmatpush2.bf16.msra.mxu0 0
  %356 = vmatprep.subr.bf16.mxu0 0
  %357 = vmatpush2.bf16.msra.mxu0 0
  %358 = vmatprep.subr.bf16.mxu0 0
  %359 = vmatpush2.bf16.msra.mxu0 0
  %360 = vmatprep.subr.bf16.mxu0 0
  %361 = vmatpush2.bf16.msra.mxu0 0
  %362 = vmatprep.subr.bf16.mxu0 0
  %363 = vmatpush2.bf16.msra.mxu0 0
  %364 = vmatprep.mubr.bf16.mxu0 0
  %365 = vmatmul.mubr.bf16.gmra.mxu0 %v91
  %v366 = vpop.f32.mrf.mxu0
  %v367 = vadd.f32 %v326, %v366
  %v368 = vpop.f32.mrf.mxu0
  %v369 = vpop.f32.mrf.mxu0
  %v370 = vadd.f32 %v329, %v369
  %v371 = vpop.f32.mrf.mxu0
  %372 = vdwg.mxu0
  %v373 = vmax.f32 %v367, 0.0
  %v374 = vmax.f32 %v370, 0.0
  %v376 = vrot.slane %v374, 7
  %v378 = vsel %vm82, 0.0, %v376
  %v380 = vrot.slane %v373, 1
  %v382 = vsel %vm87, %v380, 0.0
  %v383 = vpack.c.bf16 %v373, %v378
  %v384 = vpack.c.bf16 %v374, %v373
  %v385 = vpack.c.bf16 %v382, %v374
  %v386 = vld [vmem:[%s3] sm:$0xf]
  %v387 = vld [vmem:[%s3 + $0x4] sm:$0xf]
  %v388 = vld [vmem:[%s3 + $0x8] sm:$0xf]
  %v389 = vld [vmem:[%s3 + $0xc] sm:$0xf]
  %v390 = vld [vmem:[%s3 + $0x10] sm:$0xf]
  %v391 = vld [vmem:[%s3 + $0x14] sm:$0xf]
  %v392 = vld [vmem:[%s3 + $0x18] sm:$0xf]
  %v393 = vld [vmem:[%s3 + $0x1c] sm:$0xf]
  %v394 = vld [vmem:[%s3 + $0x20] sm:$0xf]
  %v395 = vld [vmem:[%s3 + $0x24] sm:$0xf]
  %v396 = vld [vmem:[%s3 + $0x28] sm:$0xf]
  %v397 = vld [vmem:[%s3 + $0x2c] sm:$0xf]
  %v398 = vld [vmem:[%s3 + $0x30] sm:$0xf]
  %v399 = vld [vmem:[%s3 + $0x34] sm:$0xf]
  %v400 = vld [vmem:[%s3 + $0x38] sm:$0xf]
  %v401 = vld [vmem:[%s3 + $0x3c] sm:$0xf]
  %v402 = vld [vmem:[%s3 + $0x40] sm:$0xf]
  %v403 = vld [vmem:[%s3 + $0x44] sm:$0xf]
  %v404 = vld [vmem:[%s3 + $0x48] sm:$0xf]
  %v405 = vld [vmem:[%s3 + $0x4c] sm:$0xf]
  %v406 = vld [vmem:[%s3 + $0x50] sm:$0xf]
  %v407 = vld [vmem:[%s3 + $0x54] sm:$0xf]
  %v408 = vld [vmem:[%s3 + $0x58] sm:$0xf]
  %v409 = vld [vmem:[%s3 + $0x5c] sm:$0xf]
  %v410 = vld [vmem:[%s3 + $0x60] sm:$0xf]
  %v411 = vld [vmem:[%s3 + $0x64] sm:$0xf]
  %v412 = vld [vmem:[%s3 + $0x68] sm:$0xf]
  %v413 = vld [vmem:[%s3 + $0x6c] sm:$0xf]
  %v414 = vld [vmem:[%s3 + $0x70] sm:$0xf]
  %v415 = vld [vmem:[%s3 + $0x74] sm:$0xf]
  %v416 = vld [vmem:[%s3 + $0x78] sm:$0xf]
  %v417 = vld [vmem:[%s3 + $0x7c] sm:$0xf]
  %v418 = vld [vmem:[%s3 + $0x80] sm:$0xf]
  %v419 = vld [vmem:[%s3 + $0x84] sm:$0xf]
  %v420 = vld [vmem:[%s3 + $0x88] sm:$0xf]
  %v421 = vld [vmem:[%s3 + $0x8c] sm:$0xf]
  %v422 = vld [vmem:[%s3 + $0x90] sm:$0xf]
  %v423 = vld [vmem:[%s3 + $0x94] sm:$0xf]
  %v424 = vld [vmem:[%s3 + $0x98] sm:$0xf]
  %v425 = vld [vmem:[%s3 + $0x9c] sm:$0xf]
  %v426 = vld [vmem:[%s3 + $0xa0] sm:$0xf]
  %v427 = vld [vmem:[%s3 + $0xa4] sm:$0xf]
  %v428 = vld [vmem:[%s3 + $0xa8] sm:$0xf]
  %v429 = vld [vmem:[%s3 + $0xac] sm:$0xf]
  %v430 = vld [vmem:[%s3 + $0xb0] sm:$0xf]
  %v431 = vld [vmem:[%s3 + $0xb4] sm:$0xf]
  %v432 = vld [vmem:[%s3 + $0xb8] sm:$0xf]
  %v433 = vld [vmem:[%s3 + $0xbc] sm:$0xf]
  %v434 = vld [vmem:[%s4] sm:$0x1]
  %v436 = vlaneseq
  %v437 = vshrl.u32 %v436, 7
  %v438 = vsub.s32 0, %v437
  %v439 = vrot.slane %v434, %v438
  %v489 = vunpack.c.l.b16 %v386
  %v490 = vunpack.c.l.b16 %v387
  %v491 = vunpack.c.l.b16 %v388
  %v492 = vunpack.c.l.b16 %v389
  %v493 = vunpack.c.l.b16 %v390
  %v494 = vunpack.c.l.b16 %v391
  %v495 = vunpack.c.l.b16 %v392
  %v496 = vunpack.c.l.b16 %v393
  %v497 = vunpack.c.l.b16 %v394
  %v498 = vunpack.c.l.b16 %v395
  %v499 = vunpack.c.l.b16 %v396
  %v500 = vunpack.c.l.b16 %v397
  %v501 = vunpack.c.l.b16 %v398
  %v502 = vunpack.c.l.b16 %v399
  %v503 = vunpack.c.l.b16 %v400
  %v504 = vunpack.c.l.b16 %v401
  %v505 = vunpack.c.l.b16 %v402
  %v506 = vunpack.c.l.b16 %v403
  %v507 = vunpack.c.l.b16 %v404
  %v508 = vunpack.c.l.b16 %v405
  %v509 = vunpack.c.l.b16 %v406
  %v510 = vunpack.c.l.b16 %v407
  %v511 = vunpack.c.l.b16 %v408
  %v512 = vunpack.c.l.b16 %v409
  %v513 = vunpack.c.l.b16 %v410
  %v514 = vunpack.c.l.b16 %v411
  %v515 = vunpack.c.l.b16 %v412
  %v516 = vunpack.c.l.b16 %v413
  %v517 = vunpack.c.l.b16 %v414
  %v518 = vunpack.c.l.b16 %v415
  %v519 = vunpack.c.l.b16 %v416
  %v520 = vunpack.c.l.b16 %v417
  %v521 = vunpack.c.l.b16 %v418
  %v522 = vunpack.c.l.b16 %v419
  %v523 = vunpack.c.l.b16 %v420
  %v524 = vunpack.c.l.b16 %v421
  %v525 = vunpack.c.l.b16 %v422
  %v526 = vunpack.c.l.b16 %v423
  %v527 = vunpack.c.l.b16 %v424
  %v528 = vunpack.c.l.b16 %v425
  %v529 = vunpack.c.l.b16 %v426
  %v530 = vunpack.c.l.b16 %v427
  %v531 = vunpack.c.l.b16 %v428
  %v532 = vunpack.c.l.b16 %v429
  %v533 = vunpack.c.l.b16 %v430
  %v534 = vunpack.c.l.b16 %v431
  %v535 = vunpack.c.l.b16 %v432
  %v536 = vunpack.c.l.b16 %v433
  %v537 = vpack.c.b16 %v490, %v489
  %v538 = vpack.c.b16 %v492, %v491
  %v539 = vpack.c.b16 %v494, %v493
  %v540 = vpack.c.b16 %v496, %v495
  %v541 = vpack.c.b16 %v498, %v497
  %v542 = vpack.c.b16 %v500, %v499
  %v543 = vpack.c.b16 %v502, %v501
  %v544 = vpack.c.b16 %v504, %v503
  %v545 = vpack.c.b16 %v506, %v505
  %v546 = vpack.c.b16 %v508, %v507
  %v547 = vpack.c.b16 %v510, %v509
  %v548 = vpack.c.b16 %v512, %v511
  %v549 = vpack.c.b16 %v514, %v513
  %v550 = vpack.c.b16 %v516, %v515
  %v551 = vpack.c.b16 %v518, %v517
  %v552 = vpack.c.b16 %v520, %v519
  %v553 = vpack.c.b16 %v522, %v521
  %v554 = vpack.c.b16 %v524, %v523
  %v555 = vpack.c.b16 %v526, %v525
  %v556 = vpack.c.b16 %v528, %v527
  %v557 = vpack.c.b16 %v530, %v529
  %v558 = vpack.c.b16 %v532, %v531
  %v559 = vpack.c.b16 %v534, %v533
  %v560 = vpack.c.b16 %v536, %v535
  %585 = vmatprep.subr.bf16.mxu0 0
  %586 = vmatpush1.bf16.msra.mxu0 %v544
  %587 = vmatprep.subr.bf16.mxu0 0
  %588 = vmatpush1.bf16.msra.mxu0 %v543
  %589 = vmatprep.subr.bf16.mxu0 0
  %590 = vmatpush1.bf16.msra.mxu0 %v542
  %591 = vmatprep.subr.bf16.mxu0 0
  %592 = vmatpush1.bf16.msra.mxu0 %v541
  %593 = vmatprep.subr.bf16.mxu0 0
  %594 = vmatpush1.bf16.msra.mxu0 %v540
  %595 = vmatprep.subr.bf16.mxu0 0
  %596 = vmatpush1.bf16.msra.mxu0 %v539
  %597 = vmatprep.subr.bf16.mxu0 0
  %598 = vmatpush1.bf16.msra.mxu0 %v538
  %599 = vmatprep.subr.bf16.mxu0 0
  %600 = vmatpush1.bf16.msra.mxu0 %v537
  %601 = vmatprep.subr.bf16.mxu0 0
  %602 = vmatpush2.bf16.msra.mxu0 %v552
  %603 = vmatprep.subr.bf16.mxu0 0
  %604 = vmatpush2.bf16.msra.mxu0 %v551
  %605 = vmatprep.subr.bf16.mxu0 0
  %606 = vmatpush2.bf16.msra.mxu0 %v550
  %607 = vmatprep.subr.bf16.mxu0 0
  %608 = vmatpush2.bf16.msra.mxu0 %v549
  %609 = vmatprep.subr.bf16.mxu0 0
  %610 = vmatpush2.bf16.msra.mxu0 %v548
  %611 = vmatprep.subr.bf16.mxu0 0
  %612 = vmatpush2.bf16.msra.mxu0 %v547
  %613 = vmatprep.subr.bf16.mxu0 0
  %614 = vmatpush2.bf16.msra.mxu0 %v546
  %615 = vmatprep.subr.bf16.mxu0 0
  %616 = vmatpush2.bf16.msra.mxu0 %v545
  %617 = vmatprep.mubr.bf16.mxu0 %v384
  %618 = vmatmul.mubr.bf16.gmra.mxu0 %v383
  %v619 = vpop.f32.mrf.mxu0
  %v620 = vadd.f32 %v439, %v619
  %v621 = vpop.f32.mrf.mxu0
  %v622 = vpop.f32.mrf.mxu0
  %v623 = vadd.f32 %v439, %v622
  %v624 = vpop.f32.mrf.mxu0
  %625 = vdwg.mxu0
  %626 = vmatprep.subr.bf16.mxu0 0
  %627 = vmatpush1.bf16.msra.mxu0 %v560
  %628 = vmatprep.subr.bf16.mxu0 0
  %629 = vmatpush1.bf16.msra.mxu0 %v559
  %630 = vmatprep.subr.bf16.mxu0 0
  %631 = vmatpush1.bf16.msra.mxu0 %v558
  %632 = vmatprep.subr.bf16.mxu0 0
  %633 = vmatpush1.bf16.msra.mxu0 %v557
  %634 = vmatprep.subr.bf16.mxu0 0
  %635 = vmatpush1.bf16.msra.mxu0 %v556
  %636 = vmatprep.subr.bf16.mxu0 0
  %637 = vmatpush1.bf16.msra.mxu0 %v555
  %638 = vmatprep.subr.bf16.mxu0 0
  %639 = vmatpush1.bf16.msra.mxu0 %v554
  %640 = vmatprep.subr.bf16.mxu0 0
  %641 = vmatpush1.bf16.msra.mxu0 %v553
  %642 = vmatprep.subr.bf16.mxu0 0
  %643 = vmatpush2.bf16.msra.mxu0 0
  %644 = vmatprep.subr.bf16.mxu0 0
  %645 = vmatpush2.bf16.msra.mxu0 0
  %646 = vmatprep.subr.bf16.mxu0 0
  %647 = vmatpush2.bf16.msra.mxu0 0
  %648 = vmatprep.subr.bf16.mxu0 0
  %649 = vmatpush2.bf16.msra.mxu0 0
  %650 = vmatprep.subr.bf16.mxu0 0
  %651 = vmatpush2.bf16.msra.mxu0 0
  %652 = vmatprep.subr.bf16.mxu0 0
  %653 = vmatpush2.bf16.msra.mxu0 0
  %654 = vmatprep.subr.bf16.mxu0 0
  %655 = vmatpush2.bf16.msra.mxu0 0
  %656 = vmatprep.subr.bf16.mxu0 0
  %657 = vmatpush2.bf16.msra.mxu0 0
  %658 = vmatprep.mubr.bf16.mxu0 0
  %659 = vmatmul.mubr.bf16.gmra.mxu0 %v385
  %v660 = vpop.f32.mrf.mxu0
  %v661 = vadd.f32 %v620, %v660
  %v662 = vpop.f32.mrf.mxu0
  %v663 = vpop.f32.mrf.mxu0
  %v664 = vadd.f32 %v623, %v663
  %v665 = vpop.f32.mrf.mxu0
  %666 = vdwg.mxu0
  %v667 = vadd.f32 %v661, %v77
  %v668 = vadd.f32 %v664, %v78
  %v670 = vrot.slane %v668, 7
  %v672 = vsel %vm82, 0.0, %v670
  %v673 = vpack.c.bf16 %v672, %v672
  %v674 = vpack.c.bf16 %v667, %v667
  %v675 = vpack.c.bf16 %v668, %v668
  %v676 = vld [vmem:[%s5] sm:$0xf]
  %v677 = vld [vmem:[%s5 + $0x4] sm:$0xf]
  %v678 = vld [vmem:[%s5 + $0x8] sm:$0xf]
  %v679 = vld [vmem:[%s5 + $0xc] sm:$0xf]
  %v680 = vld [vmem:[%s5 + $0x10] sm:$0xf]
  %v681 = vld [vmem:[%s5 + $0x14] sm:$0xf]
  %v682 = vld [vmem:[%s5 + $0x18] sm:$0xf]
  %v683 = vld [vmem:[%s5 + $0x1c] sm:$0xf]
  %v684 = vld [vmem:[%s5 + $0x20] sm:$0xf]
  %v685 = vld [vmem:[%s5 + $0x24] sm:$0xf]
  %v686 = vld [vmem:[%s5 + $0x28] sm:$0xf]
  %v687 = vld [vmem:[%s5 + $0x2c] sm:$0xf]
  %v688 = vld [vmem:[%s5 + $0x30] sm:$0xf]
  %v689 = vld [vmem:[%s5 + $0x34] sm:$0xf]
  %v690 = vld [vmem:[%s5 + $0x38] sm:$0xf]
  %v691 = vld [vmem:[%s5 + $0x3c] sm:$0xf]
  %v692 = vld [vmem:[%s5 + $0x40] sm:$0xf]
  %v693 = vld [vmem:[%s5 + $0x44] sm:$0xf]
  %v694 = vld [vmem:[%s5 + $0x48] sm:$0xf]
  %v695 = vld [vmem:[%s5 + $0x4c] sm:$0xf]
  %v696 = vld [vmem:[%s5 + $0x50] sm:$0xf]
  %v697 = vld [vmem:[%s5 + $0x54] sm:$0xf]
  %v698 = vld [vmem:[%s5 + $0x58] sm:$0xf]
  %v699 = vld [vmem:[%s5 + $0x5c] sm:$0xf]
  %v700 = vld [vmem:[%s5 + $0x60] sm:$0xf]
  %v701 = vld [vmem:[%s5 + $0x64] sm:$0xf]
  %v702 = vld [vmem:[%s5 + $0x68] sm:$0xf]
  %v703 = vld [vmem:[%s5 + $0x6c] sm:$0xf]
  %v704 = vld [vmem:[%s5 + $0x70] sm:$0xf]
  %v705 = vld [vmem:[%s5 + $0x74] sm:$0xf]
  %v706 = vld [vmem:[%s5 + $0x78] sm:$0xf]
  %v707 = vld [vmem:[%s5 + $0x7c] sm:$0xf]
  %v708 = vld [vmem:[%s5 + $0x80] sm:$0xf]
  %v709 = vld [vmem:[%s5 + $0x84] sm:$0xf]
  %v710 = vld [vmem:[%s5 + $0x88] sm:$0xf]
  %v711 = vld [vmem:[%s5 + $0x8c] sm:$0xf]
  %v712 = vld [vmem:[%s5 + $0x90] sm:$0xf]
  %v713 = vld [vmem:[%s5 + $0x94] sm:$0xf]
  %v714 = vld [vmem:[%s5 + $0x98] sm:$0xf]
  %v715 = vld [vmem:[%s5 + $0x9c] sm:$0xf]
  %v716 = vld [vmem:[%s5 + $0xa0] sm:$0xf]
  %v717 = vld [vmem:[%s5 + $0xa4] sm:$0xf]
  %v718 = vld [vmem:[%s5 + $0xa8] sm:$0xf]
  %v719 = vld [vmem:[%s5 + $0xac] sm:$0xf]
  %v720 = vld [vmem:[%s5 + $0xb0] sm:$0xf]
  %v721 = vld [vmem:[%s5 + $0xb4] sm:$0xf]
  %v722 = vld [vmem:[%s5 + $0xb8] sm:$0xf]
  %v723 = vld [vmem:[%s5 + $0xbc] sm:$0xf]
  %v724 = vld [vmem:[%s6] sm:$0x1]
  %v726 = vlaneseq
  %v727 = vshrl.u32 %v726, 7
  %v728 = vsub.s32 0, %v727
  %v729 = vrot.slane %v724, %v728
  %v779 = vunpack.c.l.b16 %v676
  %v780 = vunpack.c.l.b16 %v677
  %v781 = vunpack.c.l.b16 %v678
  %v782 = vunpack.c.l.b16 %v679
  %v783 = vunpack.c.l.b16 %v680
  %v784 = vunpack.c.l.b16 %v681
  %v785 = vunpack.c.l.b16 %v682
  %v786 = vunpack.c.l.b16 %v683
  %v787 = vunpack.c.l.b16 %v684
  %v788 = vunpack.c.l.b16 %v685
  %v789 = vunpack.c.l.b16 %v686
  %v790 = vunpack.c.l.b16 %v687
  %v791 = vunpack.c.l.b16 %v688
  %v792 = vunpack.c.l.b16 %v689
  %v793 = vunpack.c.l.b16 %v690
  %v794 = vunpack.c.l.b16 %v691
  %v795 = vunpack.c.l.b16 %v692
  %v796 = vunpack.c.l.b16 %v693
  %v797 = vunpack.c.l.b16 %v694
  %v798 = vunpack.c.l.b16 %v695
  %v799 = vunpack.c.l.b16 %v696
  %v800 = vunpack.c.l.b16 %v697
  %v801 = vunpack.c.l.b16 %v698
  %v802 = vunpack.c.l.b16 %v699
  %v803 = vunpack.c.l.b16 %v700
  %v804 = vunpack.c.l.b16 %v701
  %v805 = vunpack.c.l.b16 %v702
  %v806 = vunpack.c.l.b16 %v703
  %v807 = vunpack.c.l.b16 %v704
  %v808 = vunpack.c.l.b16 %v705
  %v809 = vunpack.c.l.b16 %v706
  %v810 = vunpack.c.l.b16 %v707
  %v811 = vunpack.c.l.b16 %v708
  %v812 = vunpack.c.l.b16 %v709
  %v813 = vunpack.c.l.b16 %v710
  %v814 = vunpack.c.l.b16 %v711
  %v815 = vunpack.c.l.b16 %v712
  %v816 = vunpack.c.l.b16 %v713
  %v817 = vunpack.c.l.b16 %v714
  %v818 = vunpack.c.l.b16 %v715
  %v819 = vunpack.c.l.b16 %v716
  %v820 = vunpack.c.l.b16 %v717
  %v821 = vunpack.c.l.b16 %v718
  %v822 = vunpack.c.l.b16 %v719
  %v823 = vunpack.c.l.b16 %v720
  %v824 = vunpack.c.l.b16 %v721
  %v825 = vunpack.c.l.b16 %v722
  %v826 = vunpack.c.l.b16 %v723
  %v827 = vpack.c.b16 %v780, %v779
  %v828 = vpack.c.b16 %v782, %v781
  %v829 = vpack.c.b16 %v784, %v783
  %v830 = vpack.c.b16 %v786, %v785
  %v831 = vpack.c.b16 %v788, %v787
  %v832 = vpack.c.b16 %v790, %v789
  %v833 = vpack.c.b16 %v792, %v791
  %v834 = vpack.c.b16 %v794, %v793
  %v835 = vpack.c.b16 %v796, %v795
  %v836 = vpack.c.b16 %v798, %v797
  %v837 = vpack.c.b16 %v800, %v799
  %v838 = vpack.c.b16 %v802, %v801
  %v839 = vpack.c.b16 %v804, %v803
  %v840 = vpack.c.b16 %v806, %v805
  %v841 = vpack.c.b16 %v808, %v807
  %v842 = vpack.c.b16 %v810, %v809
  %v843 = vpack.c.b16 %v812, %v811
  %v844 = vpack.c.b16 %v814, %v813
  %v845 = vpack.c.b16 %v816, %v815
  %v846 = vpack.c.b16 %v818, %v817
  %v847 = vpack.c.b16 %v820, %v819
  %v848 = vpack.c.b16 %v822, %v821
  %v849 = vpack.c.b16 %v824, %v823
  %v850 = vpack.c.b16 %v826, %v825
  %875 = vmatprep.subr.bf16.mxu0 0
  %876 = vmatpush1.bf16.msra.mxu0 %v834
  %877 = vmatprep.subr.bf16.mxu0 0
  %878 = vmatpush1.bf16.msra.mxu0 %v833
  %879 = vmatprep.subr.bf16.mxu0 0
  %880 = vmatpush1.bf16.msra.mxu0 %v832
  %881 = vmatprep.subr.bf16.mxu0 0
  %882 = vmatpush1.bf16.msra.mxu0 %v831
  %883 = vmatprep.subr.bf16.mxu0 0
  %884 = vmatpush1.bf16.msra.mxu0 %v830
  %885 = vmatprep.subr.bf16.mxu0 0
  %886 = vmatpush1.bf16.msra.mxu0 %v829
  %887 = vmatprep.subr.bf16.mxu0 0
  %888 = vmatpush1.bf16.msra.mxu0 %v828
  %889 = vmatprep.subr.bf16.mxu0 0
  %890 = vmatpush1.bf16.msra.mxu0 %v827
  %891 = vmatprep.subr.bf16.mxu0 0
  %892 = vmatpush2.bf16.msra.mxu0 %v842
  %893 = vmatprep.subr.bf16.mxu0 0
  %894 = vmatpush2.bf16.msra.mxu0 %v841
  %895 = vmatprep.subr.bf16.mxu0 0
  %896 = vmatpush2.bf16.msra.mxu0 %v840
  %897 = vmatprep.subr.bf16.mxu0 0
  %898 = vmatpush2.bf16.msra.mxu0 %v839
  %899 = vmatprep.subr.bf16.mxu0 0
  %900 = vmatpush2.bf16.msra.mxu0 %v838
  %901 = vmatprep.subr.bf16.mxu0 0
  %902 = vmatpush2.bf16.msra.mxu0 %v837
  %903 = vmatprep.subr.bf16.mxu0 0
  %904 = vmatpush2.bf16.msra.mxu0 %v836
  %905 = vmatprep.subr.bf16.mxu0 0
  %906 = vmatpush2.bf16.msra.mxu0 %v835
  %907 = vmatprep.mubr.bf16.mxu0 %v674
  %908 = vmatmul.mubr.bf16.gmra.mxu0 %v673
  %v909 = vpop.f32.mrf.mxu0
  %v910 = vadd.f32 %v729, %v909
  %v911 = vpop.f32.mrf.mxu0
  %v912 = vpop.f32.mrf.mxu0
  %v913 = vpop.f32.mrf.mxu0
  %914 = vdwg.mxu0
  %915 = vmatprep.subr.bf16.mxu0 0
  %916 = vmatpush1.bf16.msra.mxu0 %v850
  %917 = vmatprep.subr.bf16.mxu0 0
  %918 = vmatpush1.bf16.msra.mxu0 %v849
  %919 = vmatprep.subr.bf16.mxu0 0
  %920 = vmatpush1.bf16.msra.mxu0 %v848
  %921 = vmatprep.subr.bf16.mxu0 0
  %922 = vmatpush1.bf16.msra.mxu0 %v847
  %923 = vmatprep.subr.bf16.mxu0 0
  %924 = vmatpush1.bf16.msra.mxu0 %v846
  %925 = vmatprep.subr.bf16.mxu0 0
  %926 = vmatpush1.bf16.msra.mxu0 %v845
  %927 = vmatprep.subr.bf16.mxu0 0
  %928 = vmatpush1.bf16.msra.mxu0 %v844
  %929 = vmatprep.subr.bf16.mxu0 0
  %930 = vmatpush1.bf16.msra.mxu0 %v843
  %931 = vmatprep.subr.bf16.mxu0 0
  %932 = vmatpush2.bf16.msra.mxu0 0
  %933 = vmatprep.subr.bf16.mxu0 0
  %934 = vmatpush2.bf16.msra.mxu0 0
  %935 = vmatprep.subr.bf16.mxu0 0
  %936 = vmatpush2.bf16.msra.mxu0 0
  %937 = vmatprep.subr.bf16.mxu0 0
  %938 = vmatpush2.bf16.msra.mxu0 0
  %939 = vmatprep.subr.bf16.mxu0 0
  %940 = vmatpush2.bf16.msra.mxu0 0
  %941 = vmatprep.subr.bf16.mxu0 0
  %942 = vmatpush2.bf16.msra.mxu0 0
  %943 = vmatprep.subr.bf16.mxu0 0
  %944 = vmatpush2.bf16.msra.mxu0 0
  %945 = vmatprep.subr.bf16.mxu0 0
  %946 = vmatpush2.bf16.msra.mxu0 0
  %947 = vmatprep.mubr.bf16.mxu0 0
  %948 = vmatmul.mubr.bf16.gmra.mxu0 %v675
  %v949 = vpop.f32.mrf.mxu0
  %v950 = vadd.f32 %v910, %v949
  %v951 = vpop.f32.mrf.mxu0
  %v952 = vpop.f32.mrf.mxu0
  %v953 = vpop.f32.mrf.mxu0
  %954 = vdwg.mxu0
  %v956 = vrot.slane %v950, 7
  %v958 = vsel %vm82, 0.0, %v956
  %v959 = vrot.slane %v950, 1
  %v961 = vsel %vm87, %v959, 0.0
  %962 = vrot.lane.b32.xlu0 %v950, 64
  %v963 = vpop.permute.xlu0 %962
  %vm965 = vcmask 523264
  %v966 = vsel %vm965, %v958, %v963
  %v967 = vpack.c.bf16 %v966, %v966
  %v968 = vpack.c.bf16 %v961, %v961
  %v969 = vld [vmem:[%s7] sm:$0xf]
  %v970 = vld [vmem:[%s7 + $0x4] sm:$0xf]
  %v971 = vld [vmem:[%s7 + $0x8] sm:$0xf]
  %v972 = vld [vmem:[%s7 + $0xc] sm:$0xf]
  %v973 = vld [vmem:[%s7 + $0x10] sm:$0xf]
  %v974 = vld [vmem:[%s7 + $0x14] sm:$0xf]
  %v975 = vld [vmem:[%s7 + $0x18] sm:$0xf]
  %v976 = vld [vmem:[%s7 + $0x1c] sm:$0xf]
  %v977 = vld [vmem:[%s7 + $0x20] sm:$0xf]
  %v978 = vld [vmem:[%s7 + $0x24] sm:$0xf]
  %v979 = vld [vmem:[%s7 + $0x28] sm:$0xf]
  %v980 = vld [vmem:[%s7 + $0x2c] sm:$0xf]
  %v981 = vld [vmem:[%s7 + $0x30] sm:$0xf]
  %v982 = vld [vmem:[%s7 + $0x34] sm:$0xf]
  %v983 = vld [vmem:[%s7 + $0x38] sm:$0xf]
  %v984 = vld [vmem:[%s7 + $0x3c] sm:$0xf]
  %v985 = vld [vmem:[%s7 + $0x40] sm:$0xf]
  %v986 = vld [vmem:[%s7 + $0x44] sm:$0xf]
  %v987 = vld [vmem:[%s7 + $0x48] sm:$0xf]
  %v988 = vld [vmem:[%s7 + $0x4c] sm:$0xf]
  %v989 = vld [vmem:[%s7 + $0x50] sm:$0xf]
  %v990 = vld [vmem:[%s7 + $0x54] sm:$0xf]
  %v991 = vld [vmem:[%s7 + $0x58] sm:$0xf]
  %v992 = vld [vmem:[%s7 + $0x5c] sm:$0xf]
  %v993 = vld [vmem:[%s8] sm:$0x1]
  %v995 = vlaneseq
  %v996 = vshrl.u32 %v995, 7
  %v997 = vsub.s32 0, %v996
  %v998 = vrot.slane %v993, %v997
  %v1024 = vunpack.c.l.b16 %v969
  %v1025 = vunpack.c.l.b16 %v970
  %v1026 = vunpack.c.l.b16 %v971
  %v1027 = vunpack.c.l.b16 %v972
  %v1028 = vunpack.c.l.b16 %v973
  %v1029 = vunpack.c.l.b16 %v974
  %v1030 = vunpack.c.l.b16 %v975
  %v1031 = vunpack.c.l.b16 %v976
  %v1032 = vunpack.c.l.b16 %v977
  %v1033 = vunpack.c.l.b16 %v978
  %v1034 = vunpack.c.l.b16 %v979
  %v1035 = vunpack.c.l.b16 %v980
  %v1036 = vunpack.c.l.b16 %v981
  %v1037 = vunpack.c.l.b16 %v982
  %v1038 = vunpack.c.l.b16 %v983
  %v1039 = vunpack.c.l.b16 %v984
  %v1040 = vunpack.c.l.b16 %v985
  %v1041 = vunpack.c.l.b16 %v986
  %v1042 = vunpack.c.l.b16 %v987
  %v1043 = vunpack.c.l.b16 %v988
  %v1044 = vunpack.c.l.b16 %v989
  %v1045 = vunpack.c.l.b16 %v990
  %v1046 = vunpack.c.l.b16 %v991
  %v1047 = vunpack.c.l.b16 %v992
  %v1048 = vpack.c.b16 %v1025, %v1024
  %v1049 = vpack.c.b16 %v1027, %v1026
  %v1050 = vpack.c.b16 %v1029, %v1028
  %v1051 = vpack.c.b16 %v1031, %v1030
  %v1052 = vpack.c.b16 %v1033, %v1032
  %v1053 = vpack.c.b16 %v1035, %v1034
  %v1054 = vpack.c.b16 %v1037, %v1036
  %v1055 = vpack.c.b16 %v1039, %v1038
  %v1056 = vpack.c.b16 %v1041, %v1040
  %v1057 = vpack.c.b16 %v1043, %v1042
  %v1058 = vpack.c.b16 %v1045, %v1044
  %v1059 = vpack.c.b16 %v1047, %v1046
  %v1073 = vsel %vm965, %v968, 0
  %1075 = vmatprep.subr.bf16.mxu0 0
  %1076 = vmatpush1.bf16.msra.mxu0 %v1055
  %1077 = vmatprep.subr.bf16.mxu0 0
  %1078 = vmatpush1.bf16.msra.mxu0 %v1054
  %1079 = vmatprep.subr.bf16.mxu0 0
  %1080 = vmatpush1.bf16.msra.mxu0 %v1053
  %1081 = vmatprep.subr.bf16.mxu0 0
  %1082 = vmatpush1.bf16.msra.mxu0 %v1052
  %1083 = vmatprep.subr.bf16.mxu0 0
  %1084 = vmatpush1.bf16.msra.mxu0 %v1051
  %1085 = vmatprep.subr.bf16.mxu0 0
  %1086 = vmatpush1.bf16.msra.mxu0 %v1050
  %1087 = vmatprep.subr.bf16.mxu0 0
  %1088 = vmatpush1.bf16.msra.mxu0 %v1049
  %1089 = vmatprep.subr.bf16.mxu0 0
  %1090 = vmatpush1.bf16.msra.mxu0 %v1048
  %1091 = vmatprep.subr.bf16.mxu0 0
  %1092 = vmatpush2.bf16.msra.mxu0 0
  %1093 = vmatprep.subr.bf16.mxu0 0
  %1094 = vmatpush2.bf16.msra.mxu0 0
  %1095 = vmatprep.subr.bf16.mxu0 0
  %1096 = vmatpush2.bf16.msra.mxu0 0
  %1097 = vmatprep.subr.bf16.mxu0 0
  %1098 = vmatpush2.bf16.msra.mxu0 0
  %1099 = vmatprep.subr.bf16.mxu0 0
  %1100 = vmatpush2.bf16.msra.mxu0 %v1059
  %1101 = vmatprep.subr.bf16.mxu0 0
  %1102 = vmatpush2.bf16.msra.mxu0 %v1058
  %1103 = vmatprep.subr.bf16.mxu0 0
  %1104 = vmatpush2.bf16.msra.mxu0 %v1057
  %1105 = vmatprep.subr.bf16.mxu0 0
  %1106 = vmatpush2.bf16.msra.mxu0 %v1056
  %1107 = vmatprep.mubr.bf16.mxu0 %v1073
  %1108 = vmatmul.mubr.bf16.gmra.mxu0 %v967
  %v1109 = vpop.f32.mrf.mxu0
  %v1110 = vadd.f32 %v998, %v1109
  %v1111 = vpop.f32.mrf.mxu0
  %v1112 = vpop.f32.mrf.mxu0
  %v1113 = vpop.f32.mrf.mxu0
  %1114 = vdwg.mxu0
  %v1115 = vmax.f32 %v1110, 0.0
  %v1117 = vrot.slane %v1115, 7
  %v1119 = vsel %vm82, 0.0, %v1117
  %v1120 = vrot.slane %v1115, 1
  %v1122 = vsel %vm87, %v1120, 0.0
  %1123 = vrot.lane.b32.xlu0 %v1115, 64
  %v1124 = vpop.permute.xlu0 %1123
  %v1126 = vsel %vm965, %v1119, %v1124
  %v1127 = vpack.c.bf16 %v1126, %v1126
  %v1128 = vpack.c.bf16 %v1122, %v1122
  %v1129 = vld [vmem:[%s9] sm:$0xf]
  %v1130 = vld [vmem:[%s9 + $0x4] sm:$0xf]
  %v1131 = vld [vmem:[%s9 + $0x8] sm:$0xf]
  %v1132 = vld [vmem:[%s9 + $0xc] sm:$0xf]
  %v1133 = vld [vmem:[%s9 + $0x10] sm:$0xf]
  %v1134 = vld [vmem:[%s9 + $0x14] sm:$0xf]
  %v1135 = vld [vmem:[%s9 + $0x18] sm:$0xf]
  %v1136 = vld [vmem:[%s9 + $0x1c] sm:$0xf]
  %v1137 = vld [vmem:[%s9 + $0x20] sm:$0xf]
  %v1138 = vld [vmem:[%s9 + $0x24] sm:$0xf]
  %v1139 = vld [vmem:[%s9 + $0x28] sm:$0xf]
  %v1140 = vld [vmem:[%s9 + $0x2c] sm:$0xf]
  %v1141 = vld [vmem:[%s9 + $0x30] sm:$0xf]
  %v1142 = vld [vmem:[%s9 + $0x34] sm:$0xf]
  %v1143 = vld [vmem:[%s9 + $0x38] sm:$0xf]
  %v1144 = vld [vmem:[%s9 + $0x3c] sm:$0xf]
  %v1145 = vld [vmem:[%s9 + $0x40] sm:$0xf]
  %v1146 = vld [vmem:[%s9 + $0x44] sm:$0xf]
  %v1147 = vld [vmem:[%s9 + $0x48] sm:$0xf]
  %v1148 = vld [vmem:[%s9 + $0x4c] sm:$0xf]
  %v1149 = vld [vmem:[%s9 + $0x50] sm:$0xf]
  %v1150 = vld [vmem:[%s9 + $0x54] sm:$0xf]
  %v1151 = vld [vmem:[%s9 + $0x58] sm:$0xf]
  %v1152 = vld [vmem:[%s9 + $0x5c] sm:$0xf]
  %v1153 = vld [vmem:[%s10] sm:$0x1]
  %v1155 = vlaneseq
  %v1156 = vshrl.u32 %v1155, 7
  %v1157 = vsub.s32 0, %v1156
  %v1158 = vrot.slane %v1153, %v1157
  %v1184 = vunpack.c.l.b16 %v1129
  %v1185 = vunpack.c.l.b16 %v1130
  %v1186 = vunpack.c.l.b16 %v1131
  %v1187 = vunpack.c.l.b16 %v1132
  %v1188 = vunpack.c.l.b16 %v1133
  %v1189 = vunpack.c.l.b16 %v1134
  %v1190 = vunpack.c.l.b16 %v1135
  %v1191 = vunpack.c.l.b16 %v1136
  %v1192 = vunpack.c.l.b16 %v1137
  %v1193 = vunpack.c.l.b16 %v1138
  %v1194 = vunpack.c.l.b16 %v1139
  %v1195 = vunpack.c.l.b16 %v1140
  %v1196 = vunpack.c.l.b16 %v1141
  %v1197 = vunpack.c.l.b16 %v1142
  %v1198 = vunpack.c.l.b16 %v1143
  %v1199 = vunpack.c.l.b16 %v1144
  %v1200 = vunpack.c.l.b16 %v1145
  %v1201 = vunpack.c.l.b16 %v1146
  %v1202 = vunpack.c.l.b16 %v1147
  %v1203 = vunpack.c.l.b16 %v1148
  %v1204 = vunpack.c.l.b16 %v1149
  %v1205 = vunpack.c.l.b16 %v1150
  %v1206 = vunpack.c.l.b16 %v1151
  %v1207 = vunpack.c.l.b16 %v1152
  %v1208 = vpack.c.b16 %v1185, %v1184
  %v1209 = vpack.c.b16 %v1187, %v1186
  %v1210 = vpack.c.b16 %v1189, %v1188
  %v1211 = vpack.c.b16 %v1191, %v1190
  %v1212 = vpack.c.b16 %v1193, %v1192
  %v1213 = vpack.c.b16 %v1195, %v1194
  %v1214 = vpack.c.b16 %v1197, %v1196
  %v1215 = vpack.c.b16 %v1199, %v1198
  %v1216 = vpack.c.b16 %v1201, %v1200
  %v1217 = vpack.c.b16 %v1203, %v1202
  %v1218 = vpack.c.b16 %v1205, %v1204
  %v1219 = vpack.c.b16 %v1207, %v1206
  %v1233 = vsel %vm965, %v1128, 0
  %1235 = vmatprep.subr.bf16.mxu0 0
  %1236 = vmatpush1.bf16.msra.mxu0 %v1215
  %1237 = vmatprep.subr.bf16.mxu0 0
  %1238 = vmatpush1.bf16.msra.mxu0 %v1214
  %1239 = vmatprep.subr.bf16.mxu0 0
  %1240 = vmatpush1.bf16.msra.mxu0 %v1213
  %1241 = vmatprep.subr.bf16.mxu0 0
  %1242 = vmatpush1.bf16.msra.mxu0 %v1212
  %1243 = vmatprep.subr.bf16.mxu0 0
  %1244 = vmatpush1.bf16.msra.mxu0 %v1211
  %1245 = vmatprep.subr.bf16.mxu0 0
  %1246 = vmatpush1.bf16.msra.mxu0 %v1210
  %1247 = vmatprep.subr.bf16.mxu0 0
  %1248 = vmatpush1.bf16.msra.mxu0 %v1209
  %1249 = vmatprep.subr.bf16.mxu0 0
  %1250 = vmatpush1.bf16.msra.mxu0 %v1208
  %1251 = vmatprep.subr.bf16.mxu0 0
  %1252 = vmatpush2.bf16.msra.mxu0 0
  %1253 = vmatprep.subr.bf16.mxu0 0
  %1254 = vmatpush2.bf16.msra.mxu0 0
  %1255 = vmatprep.subr.bf16.mxu0 0
  %1256 = vmatpush2.bf16.msra.mxu0 0
  %1257 = vmatprep.subr.bf16.mxu0 0
  %1258 = vmatpush2.bf16.msra.mxu0 0
  %1259 = vmatprep.subr.bf16.mxu0 0
  %1260 = vmatpush2.bf16.msra.mxu0 %v1219
  %1261 = vmatprep.subr.bf16.mxu0 0
  %1262 = vmatpush2.bf16.msra.mxu0 %v1218
  %1263 = vmatprep.subr.bf16.mxu0 0
  %1264 = vmatpush2.bf16.msra.mxu0 %v1217
  %1265 = vmatprep.subr.bf16.mxu0 0
  %1266 = vmatpush2.bf16.msra.mxu0 %v1216
  %1267 = vmatprep.mubr.bf16.mxu0 %v1233
  %1268 = vmatmul.mubr.bf16.gmra.mxu0 %v1127
  %v1269 = vpop.f32.mrf.mxu0
  %v1270 = vadd.f32 %v1158, %v1269
  %v1271 = vpop.f32.mrf.mxu0
  %v1272 = vpop.f32.mrf.mxu0
  %v1273 = vpop.f32.mrf.mxu0
  %1274 = vdwg.mxu0
  %v1275 = vadd.f32 %v1270, %v950
  %v1277 = vrot.slane %v1275, 7
  %v1279 = vsel %vm82, 0.0, %v1277
  %v1280 = vrot.slane %v1275, 1
  %v1282 = vsel %vm87, %v1280, 0.0
  %1283 = vrot.lane.b32.xlu0 %v1275, 64
  %v1284 = vpop.permute.xlu0 %1283
  %v1286 = vsel %vm965, %v1279, %v1284
  %v1287 = vpack.c.bf16 %v1286, %v1286
  %v1288 = vpack.c.bf16 %v1282, %v1282
  %v1289 = vld [vmem:[%s11] sm:$0xf]
  %v1290 = vld [vmem:[%s11 + $0x4] sm:$0xf]
  %v1291 = vld [vmem:[%s11 + $0x8] sm:$0xf]
  %v1292 = vld [vmem:[%s11 + $0xc] sm:$0xf]
  %v1293 = vld [vmem:[%s11 + $0x10] sm:$0xf]
  %v1294 = vld [vmem:[%s11 + $0x14] sm:$0xf]
  %v1295 = vld [vmem:[%s11 + $0x18] sm:$0xf]
  %v1296 = vld [vmem:[%s11 + $0x1c] sm:$0xf]
  %v1297 = vld [vmem:[%s11 + $0x20] sm:$0xf]
  %v1298 = vld [vmem:[%s11 + $0x24] sm:$0xf]
  %v1299 = vld [vmem:[%s11 + $0x28] sm:$0xf]
  %v1300 = vld [vmem:[%s11 + $0x2c] sm:$0xf]
  %v1301 = vld [vmem:[%s11 + $0x30] sm:$0xf]
  %v1302 = vld [vmem:[%s11 + $0x34] sm:$0xf]
  %v1303 = vld [vmem:[%s11 + $0x38] sm:$0xf]
  %v1304 = vld [vmem:[%s11 + $0x3c] sm:$0xf]
  %v1305 = vld [vmem:[%s11 + $0x40] sm:$0xf]
  %v1306 = vld [vmem:[%s11 + $0x44] sm:$0xf]
  %v1307 = vld [vmem:[%s11 + $0x48] sm:$0xf]
  %v1308 = vld [vmem:[%s11 + $0x4c] sm:$0xf]
  %v1309 = vld [vmem:[%s11 + $0x50] sm:$0xf]
  %v1310 = vld [vmem:[%s11 + $0x54] sm:$0xf]
  %v1311 = vld [vmem:[%s11 + $0x58] sm:$0xf]
  %v1312 = vld [vmem:[%s11 + $0x5c] sm:$0xf]
  %v1313 = vld [vmem:[%s12] sm:$0x1]
  %v1315 = vlaneseq
  %v1316 = vshrl.u32 %v1315, 7
  %v1317 = vsub.s32 0, %v1316
  %v1318 = vrot.slane %v1313, %v1317
  %v1344 = vunpack.c.l.b16 %v1289
  %v1345 = vunpack.c.l.b16 %v1290
  %v1346 = vunpack.c.l.b16 %v1291
  %v1347 = vunpack.c.l.b16 %v1292
  %v1348 = vunpack.c.l.b16 %v1293
  %v1349 = vunpack.c.l.b16 %v1294
  %v1350 = vunpack.c.l.b16 %v1295
  %v1351 = vunpack.c.l.b16 %v1296
  %v1352 = vunpack.c.l.b16 %v1297
  %v1353 = vunpack.c.l.b16 %v1298
  %v1354 = vunpack.c.l.b16 %v1299
  %v1355 = vunpack.c.l.b16 %v1300
  %v1356 = vunpack.c.l.b16 %v1301
  %v1357 = vunpack.c.l.b16 %v1302
  %v1358 = vunpack.c.l.b16 %v1303
  %v1359 = vunpack.c.l.b16 %v1304
  %v1360 = vunpack.c.l.b16 %v1305
  %v1361 = vunpack.c.l.b16 %v1306
  %v1362 = vunpack.c.l.b16 %v1307
  %v1363 = vunpack.c.l.b16 %v1308
  %v1364 = vunpack.c.l.b16 %v1309
  %v1365 = vunpack.c.l.b16 %v1310
  %v1366 = vunpack.c.l.b16 %v1311
  %v1367 = vunpack.c.l.b16 %v1312
  %v1368 = vpack.c.b16 %v1345, %v1344
  %v1369 = vpack.c.b16 %v1347, %v1346
  %v1370 = vpack.c.b16 %v1349, %v1348
  %v1371 = vpack.c.b16 %v1351, %v1350
  %v1372 = vpack.c.b16 %v1353, %v1352
  %v1373 = vpack.c.b16 %v1355, %v1354
  %v1374 = vpack.c.b16 %v1357, %v1356
  %v1375 = vpack.c.b16 %v1359, %v1358
  %v1376 = vpack.c.b16 %v1361, %v1360
  %v1377 = vpack.c.b16 %v1363, %v1362
  %v1378 = vpack.c.b16 %v1365, %v1364
  %v1379 = vpack.c.b16 %v1367, %v1366
  %v1393 = vsel %vm965, %v1288, 0
  %1395 = vmatprep.subr.bf16.mxu0 0
  %1396 = vmatpush1.bf16.msra.mxu0 %v1375
  %1397 = vmatprep.subr.bf16.mxu0 0
  %1398 = vmatpush1.bf16.msra.mxu0 %v1374
  %1399 = vmatprep.subr.bf16.mxu0 0
  %1400 = vmatpush1.bf16.msra.mxu0 %v1373
  %1401 = vmatprep.subr.bf16.mxu0 0
  %1402 = vmatpush1.bf16.msra.mxu0 %v1372
  %1403 = vmatprep.subr.bf16.mxu0 0
  %1404 = vmatpush1.bf16.msra.mxu0 %v1371
  %1405 = vmatprep.subr.bf16.mxu0 0
  %1406 = vmatpush1.bf16.msra.mxu0 %v1370
  %1407 = vmatprep.subr.bf16.mxu0 0
  %1408 = vmatpush1.bf16.msra.mxu0 %v1369
  %1409 = vmatprep.subr.bf16.mxu0 0
  %1410 = vmatpush1.bf16.msra.mxu0 %v1368
  %1411 = vmatprep.subr.bf16.mxu0 0
  %1412 = vmatpush2.bf16.msra.mxu0 0
  %1413 = vmatprep.subr.bf16.mxu0 0
  %1414 = vmatpush2.bf16.msra.mxu0 0
  %1415 = vmatprep.subr.bf16.mxu0 0
  %1416 = vmatpush2.bf16.msra.mxu0 0
  %1417 = vmatprep.subr.bf16.mxu0 0
  %1418 = vmatpush2.bf16.msra.mxu0 0
  %1419 = vmatprep.subr.bf16.mxu0 0
  %1420 = vmatpush2.bf16.msra.mxu0 %v1379
  %1421 = vmatprep.subr.bf16.mxu0 0
  %1422 = vmatpush2.bf16.msra.mxu0 %v1378
  %1423 = vmatprep.subr.bf16.mxu0 0
  %1424 = vmatpush2.bf16.msra.mxu0 %v1377
  %1425 = vmatprep.subr.bf16.mxu0 0
  %1426 = vmatpush2.bf16.msra.mxu0 %v1376
  %1427 = vmatprep.mubr.bf16.mxu0 %v1393
  %1428 = vmatmul.mubr.bf16.gmra.mxu0 %v1287
  %v1429 = vpop.f32.mrf.mxu0
  %v1430 = vadd.f32 %v1318, %v1429
  %v1431 = vpop.f32.mrf.mxu0
  %v1432 = vpop.f32.mrf.mxu0
  %v1433 = vpop.f32.mrf.mxu0
  %1434 = vdwg.mxu0
  %v1435 = vmax.f32 %v1430, 0.0
  %v1437 = vrot.slane %v1435, 7
  %v1439 = vsel %vm82, 0.0, %v1437
  %v1440 = vrot.slane %v1435, 1
  %v1442 = vsel %vm87, %v1440, 0.0
  %1443 = vrot.lane.b32.xlu0 %v1435, 64
  %v1444 = vpop.permute.xlu0 %1443
  %v1446 = vsel %vm965, %v1439, %v1444
  %v1447 = vpack.c.bf16 %v1446, %v1446
  %v1448 = vpack.c.bf16 %v1442, %v1442
  %v1449 = vld [vmem:[%s13] sm:$0xf]
  %v1450 = vld [vmem:[%s13 + $0x4] sm:$0xf]
  %v1451 = vld [vmem:[%s13 + $0x8] sm:$0xf]
  %v1452 = vld [vmem:[%s13 + $0xc] sm:$0xf]
  %v1453 = vld [vmem:[%s13 + $0x10] sm:$0xf]
  %v1454 = vld [vmem:[%s13 + $0x14] sm:$0xf]
  %v1455 = vld [vmem:[%s13 + $0x18] sm:$0xf]
  %v1456 = vld [vmem:[%s13 + $0x1c] sm:$0xf]
  %v1457 = vld [vmem:[%s13 + $0x20] sm:$0xf]
  %v1458 = vld [vmem:[%s13 + $0x24] sm:$0xf]
  %v1459 = vld [vmem:[%s13 + $0x28] sm:$0xf]
  %v1460 = vld [vmem:[%s13 + $0x2c] sm:$0xf]
  %v1461 = vld [vmem:[%s13 + $0x30] sm:$0xf]
  %v1462 = vld [vmem:[%s13 + $0x34] sm:$0xf]
  %v1463 = vld [vmem:[%s13 + $0x38] sm:$0xf]
  %v1464 = vld [vmem:[%s13 + $0x3c] sm:$0xf]
  %v1465 = vld [vmem:[%s13 + $0x40] sm:$0xf]
  %v1466 = vld [vmem:[%s13 + $0x44] sm:$0xf]
  %v1467 = vld [vmem:[%s13 + $0x48] sm:$0xf]
  %v1468 = vld [vmem:[%s13 + $0x4c] sm:$0xf]
  %v1469 = vld [vmem:[%s13 + $0x50] sm:$0xf]
  %v1470 = vld [vmem:[%s13 + $0x54] sm:$0xf]
  %v1471 = vld [vmem:[%s13 + $0x58] sm:$0xf]
  %v1472 = vld [vmem:[%s13 + $0x5c] sm:$0xf]
  %v1473 = vld [vmem:[%s14] sm:$0x1]
  %v1475 = vlaneseq
  %v1476 = vshrl.u32 %v1475, 7
  %v1477 = vsub.s32 0, %v1476
  %v1478 = vrot.slane %v1473, %v1477
  %v1504 = vunpack.c.l.b16 %v1449
  %v1505 = vunpack.c.l.b16 %v1450
  %v1506 = vunpack.c.l.b16 %v1451
  %v1507 = vunpack.c.l.b16 %v1452
  %v1508 = vunpack.c.l.b16 %v1453
  %v1509 = vunpack.c.l.b16 %v1454
  %v1510 = vunpack.c.l.b16 %v1455
  %v1511 = vunpack.c.l.b16 %v1456
  %v1512 = vunpack.c.l.b16 %v1457
  %v1513 = vunpack.c.l.b16 %v1458
  %v1514 = vunpack.c.l.b16 %v1459
  %v1515 = vunpack.c.l.b16 %v1460
  %v1516 = vunpack.c.l.b16 %v1461
  %v1517 = vunpack.c.l.b16 %v1462
  %v1518 = vunpack.c.l.b16 %v1463
  %v1519 = vunpack.c.l.b16 %v1464
  %v1520 = vunpack.c.l.b16 %v1465
  %v1521 = vunpack.c.l.b16 %v1466
  %v1522 = vunpack.c.l.b16 %v1467
  %v1523 = vunpack.c.l.b16 %v1468
  %v1524 = vunpack.c.l.b16 %v1469
  %v1525 = vunpack.c.l.b16 %v1470
  %v1526 = vunpack.c.l.b16 %v1471
  %v1527 = vunpack.c.l.b16 %v1472
  %v1528 = vpack.c.b16 %v1505, %v1504
  %v1529 = vpack.c.b16 %v1507, %v1506
  %v1530 = vpack.c.b16 %v1509, %v1508
  %v1531 = vpack.c.b16 %v1511, %v1510
  %v1532 = vpack.c.b16 %v1513, %v1512
  %v1533 = vpack.c.b16 %v1515, %v1514
  %v1534 = vpack.c.b16 %v1517, %v1516
  %v1535 = vpack.c.b16 %v1519, %v1518
  %v1536 = vpack.c.b16 %v1521, %v1520
  %v1537 = vpack.c.b16 %v1523, %v1522
  %v1538 = vpack.c.b16 %v1525, %v1524
  %v1539 = vpack.c.b16 %v1527, %v1526
  %v1553 = vsel %vm965, %v1448, 0
  %1555 = vmatprep.subr.bf16.mxu0 0
  %1556 = vmatpush1.bf16.msra.mxu0 %v1535
  %1557 = vmatprep.subr.bf16.mxu0 0
  %1558 = vmatpush1.bf16.msra.mxu0 %v1534
  %1559 = vmatprep.subr.bf16.mxu0 0
  %1560 = vmatpush1.bf16.msra.mxu0 %v1533
  %1561 = vmatprep.subr.bf16.mxu0 0
  %1562 = vmatpush1.bf16.msra.mxu0 %v1532
  %1563 = vmatprep.subr.bf16.mxu0 0
  %1564 = vmatpush1.bf16.msra.mxu0 %v1531
  %1565 = vmatprep.subr.bf16.mxu0 0
  %1566 = vmatpush1.bf16.msra.mxu0 %v1530
  %1567 = vmatprep.subr.bf16.mxu0 0
  %1568 = vmatpush1.bf16.msra.mxu0 %v1529
  %1569 = vmatprep.subr.bf16.mxu0 0
  %1570 = vmatpush1.bf16.msra.mxu0 %v1528
  %1571 = vmatprep.subr.bf16.mxu0 0
  %1572 = vmatpush2.bf16.msra.mxu0 0
  %1573 = vmatprep.subr.bf16.mxu0 0
  %1574 = vmatpush2.bf16.msra.mxu0 0
  %1575 = vmatprep.subr.bf16.mxu0 0
  %1576 = vmatpush2.bf16.msra.mxu0 0
  %1577 = vmatprep.subr.bf16.mxu0 0
  %1578 = vmatpush2.bf16.msra.mxu0 0
  %1579 = vmatprep.subr.bf16.mxu0 0
  %1580 = vmatpush2.bf16.msra.mxu0 %v1539
  %1581 = vmatprep.subr.bf16.mxu0 0
  %1582 = vmatpush2.bf16.msra.mxu0 %v1538
  %1583 = vmatprep.subr.bf16.mxu0 0
  %1584 = vmatpush2.bf16.msra.mxu0 %v1537
  %1585 = vmatprep.subr.bf16.mxu0 0
  %1586 = vmatpush2.bf16.msra.mxu0 %v1536
  %1587 = vmatprep.mubr.bf16.mxu0 %v1553
  %1588 = vmatmul.mubr.bf16.gmra.mxu0 %v1447
  %v1589 = vpop.f32.mrf.mxu0
  %v1590 = vadd.f32 %v1478, %v1589
  %v1591 = vpop.f32.mrf.mxu0
  %v1592 = vpop.f32.mrf.mxu0
  %v1593 = vpop.f32.mrf.mxu0
  %1594 = vdwg.mxu0
  %v1595 = vadd.f32 %v1590, %v1275
  %v1597 = vrot.slane %v1595, 7
  %v1599 = vsel %vm82, 0.0, %v1597
  %v1600 = vrot.slane %v1595, 1
  %v1602 = vsel %vm87, %v1600, 0.0
  %1603 = vrot.lane.b32.xlu0 %v1595, 64
  %v1604 = vpop.permute.xlu0 %1603
  %v1606 = vsel %vm965, %v1599, %v1604
  %v1607 = vpack.c.bf16 %v1606, %v1606
  %v1608 = vpack.c.bf16 %v1602, %v1602
  %v1609 = vld [vmem:[%s15] sm:$0xff]
  %v1610 = vld [vmem:[%s15 + $0x8] sm:$0xff]
  %v1611 = vld [vmem:[%s15 + $0x10] sm:$0xff]
  %v1612 = vld [vmem:[%s15 + $0x18] sm:$0xff]
  %v1613 = vld [vmem:[%s15 + $0x20] sm:$0xff]
  %v1614 = vld [vmem:[%s15 + $0x28] sm:$0xff]
  %v1615 = vld [vmem:[%s15 + $0x30] sm:$0xff]
  %v1616 = vld [vmem:[%s15 + $0x38] sm:$0xff]
  %v1617 = vld [vmem:[%s15 + $0x40] sm:$0xff]
  %v1618 = vld [vmem:[%s15 + $0x48] sm:$0xff]
  %v1619 = vld [vmem:[%s15 + $0x50] sm:$0xff]
  %v1620 = vld [vmem:[%s15 + $0x58] sm:$0xff]
  %v1621 = vld [vmem:[%s15 + $0x60] sm:$0xff]
  %v1622 = vld [vmem:[%s15 + $0x68] sm:$0xff]
  %v1623 = vld [vmem:[%s15 + $0x70] sm:$0xff]
  %v1624 = vld [vmem:[%s15 + $0x78] sm:$0xff]
  %v1625 = vld [vmem:[%s15 + $0x80] sm:$0xff]
  %v1626 = vld [vmem:[%s15 + $0x88] sm:$0xff]
  %v1627 = vld [vmem:[%s15 + $0x90] sm:$0xff]
  %v1628 = vld [vmem:[%s15 + $0x98] sm:$0xff]
  %v1629 = vld [vmem:[%s15 + $0xa0] sm:$0xff]
  %v1630 = vld [vmem:[%s15 + $0xa8] sm:$0xff]
  %v1631 = vld [vmem:[%s15 + $0xb0] sm:$0xff]
  %v1632 = vld [vmem:[%s15 + $0xb8] sm:$0xff]
  %v1633 = vld [vmem:[%s16] sm:$0x3]
  %v1635 = vlaneseq
  %v1636 = vshrl.u32 %v1635, 7
  %v1637 = vsub.s32 0, %v1636
  %v1638 = vrot.slane %v1633, %v1637
  %v1639 = vlaneseq
  %v1640 = vshrl.u32 %v1639, 7
  %v1641 = vsub.s32 1, %v1640
  %v1642 = vrot.slane %v1633, %v1641
  %v1669 = vunpack.c.l.b16 %v1609
  %v1670 = vunpack.c.h.b16 %v1609
  %v1671 = vunpack.c.l.b16 %v1610
  %v1672 = vunpack.c.h.b16 %v1610
  %v1673 = vunpack.c.l.b16 %v1611
  %v1674 = vunpack.c.h.b16 %v1611
  %v1675 = vunpack.c.l.b16 %v1612
  %v1676 = vunpack.c.h.b16 %v1612
  %v1677 = vunpack.c.l.b16 %v1613
  %v1678 = vunpack.c.h.b16 %v1613
  %v1679 = vunpack.c.l.b16 %v1614
  %v1680 = vunpack.c.h.b16 %v1614
  %v1681 = vunpack.c.l.b16 %v1615
  %v1682 = vunpack.c.h.b16 %v1615
  %v1683 = vunpack.c.l.b16 %v1616
  %v1684 = vunpack.c.h.b16 %v1616
  %v1685 = vunpack.c.l.b16 %v1617
  %v1686 = vunpack.c.h.b16 %v1617
  %v1687 = vunpack.c.l.b16 %v1618
  %v1688 = vunpack.c.h.b16 %v1618
  %v1689 = vunpack.c.l.b16 %v1619
  %v1690 = vunpack.c.h.b16 %v1619
  %v1691 = vunpack.c.l.b16 %v1620
  %v1692 = vunpack.c.h.b16 %v1620
  %v1693 = vunpack.c.l.b16 %v1621
  %v1694 = vunpack.c.h.b16 %v1621
  %v1695 = vunpack.c.l.b16 %v1622
  %v1696 = vunpack.c.h.b16 %v1622
  %v1697 = vunpack.c.l.b16 %v1623
  %v1698 = vunpack.c.h.b16 %v1623
  %v1699 = vunpack.c.l.b16 %v1624
  %v1700 = vunpack.c.h.b16 %v1624
  %v1701 = vunpack.c.l.b16 %v1625
  %v1702 = vunpack.c.h.b16 %v1625
  %v1703 = vunpack.c.l.b16 %v1626
  %v1704 = vunpack.c.h.b16 %v1626
  %v1705 = vunpack.c.l.b16 %v1627
  %v1706 = vunpack.c.h.b16 %v1627
  %v1707 = vunpack.c.l.b16 %v1628
  %v1708 = vunpack.c.h.b16 %v1628
  %v1709 = vunpack.c.l.b16 %v1629
  %v1710 = vunpack.c.h.b16 %v1629
  %v1711 = vunpack.c.l.b16 %v1630
  %v1712 = vunpack.c.h.b16 %v1630
  %v1713 = vunpack.c.l.b16 %v1631
  %v1714 = vunpack.c.h.b16 %v1631
  %v1715 = vunpack.c.l.b16 %v1632
  %v1716 = vunpack.c.h.b16 %v1632
  %v1717 = vpack.c.b16 %v1671, %v1669
  %v1718 = vpack.c.b16 %v1672, %v1670
  %v1719 = vpack.c.b16 %v1675, %v1673
  %v1720 = vpack.c.b16 %v1676, %v1674
  %v1721 = vpack.c.b16 %v1679, %v1677
  %v1722 = vpack.c.b16 %v1680, %v1678
  %v1723 = vpack.c.b16 %v1683, %v1681
  %v1724 = vpack.c.b16 %v1684, %v1682
  %v1725 = vpack.c.b16 %v1687, %v1685
  %v1726 = vpack.c.b16 %v1688, %v1686
  %v1727 = vpack.c.b16 %v1691, %v1689
  %v1728 = vpack.c.b16 %v1692, %v1690
  %v1729 = vpack.c.b16 %v1695, %v1693
  %v1730 = vpack.c.b16 %v1696, %v1694
  %v1731 = vpack.c.b16 %v1699, %v1697
  %v1732 = vpack.c.b16 %v1700, %v1698
  %v1733 = vpack.c.b16 %v1703, %v1701
  %v1734 = vpack.c.b16 %v1704, %v1702
  %v1735 = vpack.c.b16 %v1707, %v1705
  %v1736 = vpack.c.b16 %v1708, %v1706
  %v1737 = vpack.c.b16 %v1711, %v1709
  %v1738 = vpack.c.b16 %v1712, %v1710
  %v1739 = vpack.c.b16 %v1715, %v1713
  %v1740 = vpack.c.b16 %v1716, %v1714
  %v1766 = vsel %vm965, %v1608, 0
  %1768 = vmatprep.subr.bf16.mxu0 %v1732
  %1769 = vmatpush1.bf16.msra.mxu0 %v1731
  %1770 = vmatprep.subr.bf16.mxu0 %v1730
  %1771 = vmatpush1.bf16.msra.mxu0 %v1729
  %1772 = vmatprep.subr.bf16.mxu0 %v1728
  %1773 = vmatpush1.bf16.msra.mxu0 %v1727
  %1774 = vmatprep.subr.bf16.mxu0 %v1726
  %1775 = vmatpush1.bf16.msra.mxu0 %v1725
  %1776 = vmatprep.subr.bf16.mxu0 %v1724
  %1777 = vmatpush1.bf16.msra.mxu0 %v1723
  %1778 = vmatprep.subr.bf16.mxu0 %v1722
  %1779 = vmatpush1.bf16.msra.mxu0 %v1721
  %1780 = vmatprep.subr.bf16.mxu0 %v1720
  %1781 = vmatpush1.bf16.msra.mxu0 %v1719
  %1782 = vmatprep.subr.bf16.mxu0 %v1718
  %1783 = vmatpush1.bf16.msra.mxu0 %v1717
  %1784 = vmatprep.subr.bf16.mxu0 0
  %1785 = vmatpush2.bf16.msra.mxu0 0
  %1786 = vmatprep.subr.bf16.mxu0 0
  %1787 = vmatpush2.bf16.msra.mxu0 0
  %1788 = vmatprep.subr.bf16.mxu0 0
  %1789 = vmatpush2.bf16.msra.mxu0 0
  %1790 = vmatprep.subr.bf16.mxu0 0
  %1791 = vmatpush2.bf16.msra.mxu0 0
  %1792 = vmatprep.subr.bf16.mxu0 %v1740
  %1793 = vmatpush2.bf16.msra.mxu0 %v1739
  %1794 = vmatprep.subr.bf16.mxu0 %v1738
  %1795 = vmatpush2.bf16.msra.mxu0 %v1737
  %1796 = vmatprep.subr.bf16.mxu0 %v1736
  %1797 = vmatpush2.bf16.msra.mxu0 %v1735
  %1798 = vmatprep.subr.bf16.mxu0 %v1734
  %1799 = vmatpush2.bf16.msra.mxu0 %v1733
  %1800 = vmatprep.mubr.bf16.mxu0 %v1766
  %1801 = vmatmul.mubr.bf16.gmra.mxu0 %v1607
  %v1802 = vpop.f32.mrf.mxu0
  %v1803 = vadd.f32 %v1638, %v1802
  %v1804 = vpop.f32.mrf.mxu0
  %v1805 = vadd.f32 %v1642, %v1804
  %v1806 = vpop.f32.mrf.mxu0
  %v1807 = vpop.f32.mrf.mxu0
  %1808 = vdwg.mxu0
  %v1809 = vadd.f32 %v667, %v1803
  %v1810 = vadd.f32 %v668, %v1805
  %v1812 = vrot.slane %v1810, 7
  %v1814 = vsel %vm82, 0.0, %v1812
  %v1816 = vrot.slane %v1809, 1
  %v1818 = vsel %vm87, %v1816, 0.0
  %v1819 = vpack.c.bf16 %v1809, %v1814
  %v1820 = vpack.c.bf16 %v1810, %v1809
  %v1821 = vpack.c.bf16 %v1818, %v1810
  %v1822 = vld [vmem:[%s17] sm:$0xf]
  %v1823 = vld [vmem:[%s17 + $0x4] sm:$0xf]
  %v1824 = vld [vmem:[%s17 + $0x8] sm:$0xf]
  %v1825 = vld [vmem:[%s17 + $0xc] sm:$0xf]
  %v1826 = vld [vmem:[%s17 + $0x10] sm:$0xf]
  %v1827 = vld [vmem:[%s17 + $0x14] sm:$0xf]
  %v1828 = vld [vmem:[%s17 + $0x18] sm:$0xf]
  %v1829 = vld [vmem:[%s17 + $0x1c] sm:$0xf]
  %v1830 = vld [vmem:[%s17 + $0x20] sm:$0xf]
  %v1831 = vld [vmem:[%s17 + $0x24] sm:$0xf]
  %v1832 = vld [vmem:[%s17 + $0x28] sm:$0xf]
  %v1833 = vld [vmem:[%s17 + $0x2c] sm:$0xf]
  %v1834 = vld [vmem:[%s17 + $0x30] sm:$0xf]
  %v1835 = vld [vmem:[%s17 + $0x34] sm:$0xf]
  %v1836 = vld [vmem:[%s17 + $0x38] sm:$0xf]
  %v1837 = vld [vmem:[%s17 + $0x3c] sm:$0xf]
  %v1838 = vld [vmem:[%s17 + $0x40] sm:$0xf]
  %v1839 = vld [vmem:[%s17 + $0x44] sm:$0xf]
  %v1840 = vld [vmem:[%s17 + $0x48] sm:$0xf]
  %v1841 = vld [vmem:[%s17 + $0x4c] sm:$0xf]
  %v1842 = vld [vmem:[%s17 + $0x50] sm:$0xf]
  %v1843 = vld [vmem:[%s17 + $0x54] sm:$0xf]
  %v1844 = vld [vmem:[%s17 + $0x58] sm:$0xf]
  %v1845 = vld [vmem:[%s17 + $0x5c] sm:$0xf]
  %v1846 = vld [vmem:[%s17 + $0x60] sm:$0xf]
  %v1847 = vld [vmem:[%s17 + $0x64] sm:$0xf]
  %v1848 = vld [vmem:[%s17 + $0x68] sm:$0xf]
  %v1849 = vld [vmem:[%s17 + $0x6c] sm:$0xf]
  %v1850 = vld [vmem:[%s17 + $0x70] sm:$0xf]
  %v1851 = vld [vmem:[%s17 + $0x74] sm:$0xf]
  %v1852 = vld [vmem:[%s17 + $0x78] sm:$0xf]
  %v1853 = vld [vmem:[%s17 + $0x7c] sm:$0xf]
  %v1854 = vld [vmem:[%s17 + $0x80] sm:$0xf]
  %v1855 = vld [vmem:[%s17 + $0x84] sm:$0xf]
  %v1856 = vld [vmem:[%s17 + $0x88] sm:$0xf]
  %v1857 = vld [vmem:[%s17 + $0x8c] sm:$0xf]
  %v1858 = vld [vmem:[%s17 + $0x90] sm:$0xf]
  %v1859 = vld [vmem:[%s17 + $0x94] sm:$0xf]
  %v1860 = vld [vmem:[%s17 + $0x98] sm:$0xf]
  %v1861 = vld [vmem:[%s17 + $0x9c] sm:$0xf]
  %v1862 = vld [vmem:[%s17 + $0xa0] sm:$0xf]
  %v1863 = vld [vmem:[%s17 + $0xa4] sm:$0xf]
  %v1864 = vld [vmem:[%s17 + $0xa8] sm:$0xf]
  %v1865 = vld [vmem:[%s17 + $0xac] sm:$0xf]
  %v1866 = vld [vmem:[%s17 + $0xb0] sm:$0xf]
  %v1867 = vld [vmem:[%s17 + $0xb4] sm:$0xf]
  %v1868 = vld [vmem:[%s17 + $0xb8] sm:$0xf]
  %v1869 = vld [vmem:[%s17 + $0xbc] sm:$0xf]
  %v1870 = vld [vmem:[%s18] sm:$0x1]
  %v1872 = vlaneseq
  %v1873 = vshrl.u32 %v1872, 7
  %v1874 = vsub.s32 0, %v1873
  %v1875 = vrot.slane %v1870, %v1874
  %v1925 = vunpack.c.l.b16 %v1822
  %v1926 = vunpack.c.l.b16 %v1823
  %v1927 = vunpack.c.l.b16 %v1824
  %v1928 = vunpack.c.l.b16 %v1825
  %v1929 = vunpack.c.l.b16 %v1826
  %v1930 = vunpack.c.l.b16 %v1827
  %v1931 = vunpack.c.l.b16 %v1828
  %v1932 = vunpack.c.l.b16 %v1829
  %v1933 = vunpack.c.l.b16 %v1830
  %v1934 = vunpack.c.l.b16 %v1831
  %v1935 = vunpack.c.l.b16 %v1832
  %v1936 = vunpack.c.l.b16 %v1833
  %v1937 = vunpack.c.l.b16 %v1834
  %v1938 = vunpack.c.l.b16 %v1835
  %v1939 = vunpack.c.l.b16 %v1836
  %v1940 = vunpack.c.l.b16 %v1837
  %v1941 = vunpack.c.l.b16 %v1838
  %v1942 = vunpack.c.l.b16 %v1839
  %v1943 = vunpack.c.l.b16 %v1840
  %v1944 = vunpack.c.l.b16 %v1841
  %v1945 = vunpack.c.l.b16 %v1842
  %v1946 = vunpack.c.l.b16 %v1843
  %v1947 = vunpack.c.l.b16 %v1844
  %v1948 = vunpack.c.l.b16 %v1845
  %v1949 = vunpack.c.l.b16 %v1846
  %v1950 = vunpack.c.l.b16 %v1847
  %v1951 = vunpack.c.l.b16 %v1848
  %v1952 = vunpack.c.l.b16 %v1849
  %v1953 = vunpack.c.l.b16 %v1850
  %v1954 = vunpack.c.l.b16 %v1851
  %v1955 = vunpack.c.l.b16 %v1852
  %v1956 = vunpack.c.l.b16 %v1853
  %v1957 = vunpack.c.l.b16 %v1854
  %v1958 = vunpack.c.l.b16 %v1855
  %v1959 = vunpack.c.l.b16 %v1856
  %v1960 = vunpack.c.l.b16 %v1857
  %v1961 = vunpack.c.l.b16 %v1858
  %v1962 = vunpack.c.l.b16 %v1859
  %v1963 = vunpack.c.l.b16 %v1860
  %v1964 = vunpack.c.l.b16 %v1861
  %v1965 = vunpack.c.l.b16 %v1862
  %v1966 = vunpack.c.l.b16 %v1863
  %v1967 = vunpack.c.l.b16 %v1864
  %v1968 = vunpack.c.l.b16 %v1865
  %v1969 = vunpack.c.l.b16 %v1866
  %v1970 = vunpack.c.l.b16 %v1867
  %v1971 = vunpack.c.l.b16 %v1868
  %v1972 = vunpack.c.l.b16 %v1869
  %v1973 = vpack.c.b16 %v1926, %v1925
  %v1974 = vpack.c.b16 %v1928, %v1927
  %v1975 = vpack.c.b16 %v1930, %v1929
  %v1976 = vpack.c.b16 %v1932, %v1931
  %v1977 = vpack.c.b16 %v1934, %v1933
  %v1978 = vpack.c.b16 %v1936, %v1935
  %v1979 = vpack.c.b16 %v1938, %v1937
  %v1980 = vpack.c.b16 %v1940, %v1939
  %v1981 = vpack.c.b16 %v1942, %v1941
  %v1982 = vpack.c.b16 %v1944, %v1943
  %v1983 = vpack.c.b16 %v1946, %v1945
  %v1984 = vpack.c.b16 %v1948, %v1947
  %v1985 = vpack.c.b16 %v1950, %v1949
  %v1986 = vpack.c.b16 %v1952, %v1951
  %v1987 = vpack.c.b16 %v1954, %v1953
  %v1988 = vpack.c.b16 %v1956, %v1955
  %v1989 = vpack.c.b16 %v1958, %v1957
  %v1990 = vpack.c.b16 %v1960, %v1959
  %v1991 = vpack.c.b16 %v1962, %v1961
  %v1992 = vpack.c.b16 %v1964, %v1963
  %v1993 = vpack.c.b16 %v1966, %v1965
  %v1994 = vpack.c.b16 %v1968, %v1967
  %v1995 = vpack.c.b16 %v1970, %v1969
  %v1996 = vpack.c.b16 %v1972, %v1971
  %2021 = vmatprep.subr.bf16.mxu0 0
  %2022 = vmatpush1.bf16.msra.mxu0 %v1980
  %2023 = vmatprep.subr.bf16.mxu0 0
  %2024 = vmatpush1.bf16.msra.mxu0 %v1979
  %2025 = vmatprep.subr.bf16.mxu0 0
  %2026 = vmatpush1.bf16.msra.mxu0 %v1978
  %2027 = vmatprep.subr.bf16.mxu0 0
  %2028 = vmatpush1.bf16.msra.mxu0 %v1977
  %2029 = vmatprep.subr.bf16.mxu0 0
  %2030 = vmatpush1.bf16.msra.mxu0 %v1976
  %2031 = vmatprep.subr.bf16.mxu0 0
  %2032 = vmatpush1.bf16.msra.mxu0 %v1975
  %2033 = vmatprep.subr.bf16.mxu0 0
  %2034 = vmatpush1.bf16.msra.mxu0 %v1974
  %2035 = vmatprep.subr.bf16.mxu0 0
  %2036 = vmatpush1.bf16.msra.mxu0 %v1973
  %2037 = vmatprep.subr.bf16.mxu0 0
  %2038 = vmatpush2.bf16.msra.mxu0 %v1988
  %2039 = vmatprep.subr.bf16.mxu0 0
  %2040 = vmatpush2.bf16.msra.mxu0 %v1987
  %2041 = vmatprep.subr.bf16.mxu0 0
  %2042 = vmatpush2.bf16.msra.mxu0 %v1986
  %2043 = vmatprep.subr.bf16.mxu0 0
  %2044 = vmatpush2.bf16.msra.mxu0 %v1985
  %2045 = vmatprep.subr.bf16.mxu0 0
  %2046 = vmatpush2.bf16.msra.mxu0 %v1984
  %2047 = vmatprep.subr.bf16.mxu0 0
  %2048 = vmatpush2.bf16.msra.mxu0 %v1983
  %2049 = vmatprep.subr.bf16.mxu0 0
  %2050 = vmatpush2.bf16.msra.mxu0 %v1982
  %2051 = vmatprep.subr.bf16.mxu0 0
  %2052 = vmatpush2.bf16.msra.mxu0 %v1981
  %2053 = vmatprep.mubr.bf16.mxu0 %v1820
  %2054 = vmatmul.mubr.bf16.gmra.mxu0 %v1819
  %v2055 = vpop.f32.mrf.mxu0
  %v2056 = vadd.f32 %v1875, %v2055
  %v2057 = vpop.f32.mrf.mxu0
  %v2058 = vpop.f32.mrf.mxu0
  %v2059 = vadd.f32 %v1875, %v2058
  %v2060 = vpop.f32.mrf.mxu0
  %2061 = vdwg.mxu0
  %2062 = vmatprep.subr.bf16.mxu0 0
  %2063 = vmatpush1.bf16.msra.mxu0 %v1996
  %2064 = vmatprep.subr.bf16.mxu0 0
  %2065 = vmatpush1.bf16.msra.mxu0 %v1995
  %2066 = vmatprep.subr.bf16.mxu0 0
  %2067 = vmatpush1.bf16.msra.mxu0 %v1994
  %2068 = vmatprep.subr.bf16.mxu0 0
  %2069 = vmatpush1.bf16.msra.mxu0 %v1993
  %2070 = vmatprep.subr.bf16.mxu0 0
  %2071 = vmatpush1.bf16.msra.mxu0 %v1992
  %2072 = vmatprep.subr.bf16.mxu0 0
  %2073 = vmatpush1.bf16.msra.mxu0 %v1991
  %2074 = vmatprep.subr.bf16.mxu0 0
  %2075 = vmatpush1.bf16.msra.mxu0 %v1990
  %2076 = vmatprep.subr.bf16.mxu0 0
  %2077 = vmatpush1.bf16.msra.mxu0 %v1989
  %2078 = vmatprep.subr.bf16.mxu0 0
  %2079 = vmatpush2.bf16.msra.mxu0 0
  %2080 = vmatprep.subr.bf16.mxu0 0
  %2081 = vmatpush2.bf16.msra.mxu0 0
  %2082 = vmatprep.subr.bf16.mxu0 0
  %2083 = vmatpush2.bf16.msra.mxu0 0
  %2084 = vmatprep.subr.bf16.mxu0 0
  %2085 = vmatpush2.bf16.msra.mxu0 0
  %2086 = vmatprep.subr.bf16.mxu0 0
  %2087 = vmatpush2.bf16.msra.mxu0 0
  %2088 = vmatprep.subr.bf16.mxu0 0
  %2089 = vmatpush2.bf16.msra.mxu0 0
  %2090 = vmatprep.subr.bf16.mxu0 0
  %2091 = vmatpush2.bf16.msra.mxu0 0
  %2092 = vmatprep.subr.bf16.mxu0 0
  %2093 = vmatpush2.bf16.msra.mxu0 0
  %2094 = vmatprep.mubr.bf16.mxu0 0
  %2095 = vmatmul.mubr.bf16.gmra.mxu0 %v1821
  %v2096 = vpop.f32.mrf.mxu0
  %v2097 = vadd.f32 %v2056, %v2096
  %v2098 = vpop.f32.mrf.mxu0
  %v2099 = vpop.f32.mrf.mxu0
  %v2100 = vadd.f32 %v2059, %v2099
  %v2101 = vpop.f32.mrf.mxu0
  %2102 = vdwg.mxu0
  %v2103 = vmax.f32 %v2097, 0.0
  %v2104 = vmax.f32 %v2100, 0.0
  %v2106 = vrot.slane %v2104, 7
  %v2108 = vsel %vm82, 0.0, %v2106
  %v2110 = vrot.slane %v2103, 1
  %v2112 = vsel %vm87, %v2110, 0.0
  %v2113 = vpack.c.bf16 %v2103, %v2108
  %v2114 = vpack.c.bf16 %v2104, %v2103
  %v2115 = vpack.c.bf16 %v2112, %v2104
  %v2116 = vld [vmem:[%s19] sm:$0xf]
  %v2117 = vld [vmem:[%s19 + $0x4] sm:$0xf]
  %v2118 = vld [vmem:[%s19 + $0x8] sm:$0xf]
  %v2119 = vld [vmem:[%s19 + $0xc] sm:$0xf]
  %v2120 = vld [vmem:[%s19 + $0x10] sm:$0xf]
  %v2121 = vld [vmem:[%s19 + $0x14] sm:$0xf]
  %v2122 = vld [vmem:[%s19 + $0x18] sm:$0xf]
  %v2123 = vld [vmem:[%s19 + $0x1c] sm:$0xf]
  %v2124 = vld [vmem:[%s19 + $0x20] sm:$0xf]
  %v2125 = vld [vmem:[%s19 + $0x24] sm:$0xf]
  %v2126 = vld [vmem:[%s19 + $0x28] sm:$0xf]
  %v2127 = vld [vmem:[%s19 + $0x2c] sm:$0xf]
  %v2128 = vld [vmem:[%s19 + $0x30] sm:$0xf]
  %v2129 = vld [vmem:[%s19 + $0x34] sm:$0xf]
  %v2130 = vld [vmem:[%s19 + $0x38] sm:$0xf]
  %v2131 = vld [vmem:[%s19 + $0x3c] sm:$0xf]
  %v2132 = vld [vmem:[%s19 + $0x40] sm:$0xf]
  %v2133 = vld [vmem:[%s19 + $0x44] sm:$0xf]
  %v2134 = vld [vmem:[%s19 + $0x48] sm:$0xf]
  %v2135 = vld [vmem:[%s19 + $0x4c] sm:$0xf]
  %v2136 = vld [vmem:[%s19 + $0x50] sm:$0xf]
  %v2137 = vld [vmem:[%s19 + $0x54] sm:$0xf]
  %v2138 = vld [vmem:[%s19 + $0x58] sm:$0xf]
  %v2139 = vld [vmem:[%s19 + $0x5c] sm:$0xf]
  %v2140 = vld [vmem:[%s19 + $0x60] sm:$0xf]
  %v2141 = vld [vmem:[%s19 + $0x64] sm:$0xf]
  %v2142 = vld [vmem:[%s19 + $0x68] sm:$0xf]
  %v2143 = vld [vmem:[%s19 + $0x6c] sm:$0xf]
  %v2144 = vld [vmem:[%s19 + $0x70] sm:$0xf]
  %v2145 = vld [vmem:[%s19 + $0x74] sm:$0xf]
  %v2146 = vld [vmem:[%s19 + $0x78] sm:$0xf]
  %v2147 = vld [vmem:[%s19 + $0x7c] sm:$0xf]
  %v2148 = vld [vmem:[%s19 + $0x80] sm:$0xf]
  %v2149 = vld [vmem:[%s19 + $0x84] sm:$0xf]
  %v2150 = vld [vmem:[%s19 + $0x88] sm:$0xf]
  %v2151 = vld [vmem:[%s19 + $0x8c] sm:$0xf]
  %v2152 = vld [vmem:[%s19 + $0x90] sm:$0xf]
  %v2153 = vld [vmem:[%s19 + $0x94] sm:$0xf]
  %v2154 = vld [vmem:[%s19 + $0x98] sm:$0xf]
  %v2155 = vld [vmem:[%s19 + $0x9c] sm:$0xf]
  %v2156 = vld [vmem:[%s19 + $0xa0] sm:$0xf]
  %v2157 = vld [vmem:[%s19 + $0xa4] sm:$0xf]
  %v2158 = vld [vmem:[%s19 + $0xa8] sm:$0xf]
  %v2159 = vld [vmem:[%s19 + $0xac] sm:$0xf]
  %v2160 = vld [vmem:[%s19 + $0xb0] sm:$0xf]
  %v2161 = vld [vmem:[%s19 + $0xb4] sm:$0xf]
  %v2162 = vld [vmem:[%s19 + $0xb8] sm:$0xf]
  %v2163 = vld [vmem:[%s19 + $0xbc] sm:$0xf]
  %v2164 = vld [vmem:[%s20] sm:$0x1]
  %v2166 = vlaneseq
  %v2167 = vshrl.u32 %v2166, 7
  %v2168 = vsub.s32 0, %v2167
  %v2169 = vrot.slane %v2164, %v2168
  %v2219 = vunpack.c.l.b16 %v2116
  %v2220 = vunpack.c.l.b16 %v2117
  %v2221 = vunpack.c.l.b16 %v2118
  %v2222 = vunpack.c.l.b16 %v2119
  %v2223 = vunpack.c.l.b16 %v2120
  %v2224 = vunpack.c.l.b16 %v2121
  %v2225 = vunpack.c.l.b16 %v2122
  %v2226 = vunpack.c.l.b16 %v2123
  %v2227 = vunpack.c.l.b16 %v2124
  %v2228 = vunpack.c.l.b16 %v2125
  %v2229 = vunpack.c.l.b16 %v2126
  %v2230 = vunpack.c.l.b16 %v2127
  %v2231 = vunpack.c.l.b16 %v2128
  %v2232 = vunpack.c.l.b16 %v2129
  %v2233 = vunpack.c.l.b16 %v2130
  %v2234 = vunpack.c.l.b16 %v2131
  %v2235 = vunpack.c.l.b16 %v2132
  %v2236 = vunpack.c.l.b16 %v2133
  %v2237 = vunpack.c.l.b16 %v2134
  %v2238 = vunpack.c.l.b16 %v2135
  %v2239 = vunpack.c.l.b16 %v2136
  %v2240 = vunpack.c.l.b16 %v2137
  %v2241 = vunpack.c.l.b16 %v2138
  %v2242 = vunpack.c.l.b16 %v2139
  %v2243 = vunpack.c.l.b16 %v2140
  %v2244 = vunpack.c.l.b16 %v2141
  %v2245 = vunpack.c.l.b16 %v2142
  %v2246 = vunpack.c.l.b16 %v2143
  %v2247 = vunpack.c.l.b16 %v2144
  %v2248 = vunpack.c.l.b16 %v2145
  %v2249 = vunpack.c.l.b16 %v2146
  %v2250 = vunpack.c.l.b16 %v2147
  %v2251 = vunpack.c.l.b16 %v2148
  %v2252 = vunpack.c.l.b16 %v2149
  %v2253 = vunpack.c.l.b16 %v2150
  %v2254 = vunpack.c.l.b16 %v2151
  %v2255 = vunpack.c.l.b16 %v2152
  %v2256 = vunpack.c.l.b16 %v2153
  %v2257 = vunpack.c.l.b16 %v2154
  %v2258 = vunpack.c.l.b16 %v2155
  %v2259 = vunpack.c.l.b16 %v2156
  %v2260 = vunpack.c.l.b16 %v2157
  %v2261 = vunpack.c.l.b16 %v2158
  %v2262 = vunpack.c.l.b16 %v2159
  %v2263 = vunpack.c.l.b16 %v2160
  %v2264 = vunpack.c.l.b16 %v2161
  %v2265 = vunpack.c.l.b16 %v2162
  %v2266 = vunpack.c.l.b16 %v2163
  %v2267 = vpack.c.b16 %v2220, %v2219
  %v2268 = vpack.c.b16 %v2222, %v2221
  %v2269 = vpack.c.b16 %v2224, %v2223
  %v2270 = vpack.c.b16 %v2226, %v2225
  %v2271 = vpack.c.b16 %v2228, %v2227
  %v2272 = vpack.c.b16 %v2230, %v2229
  %v2273 = vpack.c.b16 %v2232, %v2231
  %v2274 = vpack.c.b16 %v2234, %v2233
  %v2275 = vpack.c.b16 %v2236, %v2235
  %v2276 = vpack.c.b16 %v2238, %v2237
  %v2277 = vpack.c.b16 %v2240, %v2239
  %v2278 = vpack.c.b16 %v2242, %v2241
  %v2279 = vpack.c.b16 %v2244, %v2243
  %v2280 = vpack.c.b16 %v2246, %v2245
  %v2281 = vpack.c.b16 %v2248, %v2247
  %v2282 = vpack.c.b16 %v2250, %v2249
  %v2283 = vpack.c.b16 %v2252, %v2251
  %v2284 = vpack.c.b16 %v2254, %v2253
  %v2285 = vpack.c.b16 %v2256, %v2255
  %v2286 = vpack.c.b16 %v2258, %v2257
  %v2287 = vpack.c.b16 %v2260, %v2259
  %v2288 = vpack.c.b16 %v2262, %v2261
  %v2289 = vpack.c.b16 %v2264, %v2263
  %v2290 = vpack.c.b16 %v2266, %v2265
  %2315 = vmatprep.subr.bf16.mxu0 0
  %2316 = vmatpush1.bf16.msra.mxu0 %v2274
  %2317 = vmatprep.subr.bf16.mxu0 0
  %2318 = vmatpush1.bf16.msra.mxu0 %v2273
  %2319 = vmatprep.subr.bf16.mxu0 0
  %2320 = vmatpush1.bf16.msra.mxu0 %v2272
  %2321 = vmatprep.subr.bf16.mxu0 0
  %2322 = vmatpush1.bf16.msra.mxu0 %v2271
  %2323 = vmatprep.subr.bf16.mxu0 0
  %2324 = vmatpush1.bf16.msra.mxu0 %v2270
  %2325 = vmatprep.subr.bf16.mxu0 0
  %2326 = vmatpush1.bf16.msra.mxu0 %v2269
  %2327 = vmatprep.subr.bf16.mxu0 0
  %2328 = vmatpush1.bf16.msra.mxu0 %v2268
  %2329 = vmatprep.subr.bf16.mxu0 0
  %2330 = vmatpush1.bf16.msra.mxu0 %v2267
  %2331 = vmatprep.subr.bf16.mxu0 0
  %2332 = vmatpush2.bf16.msra.mxu0 %v2282
  %2333 = vmatprep.subr.bf16.mxu0 0
  %2334 = vmatpush2.bf16.msra.mxu0 %v2281
  %2335 = vmatprep.subr.bf16.mxu0 0
  %2336 = vmatpush2.bf16.msra.mxu0 %v2280
  %2337 = vmatprep.subr.bf16.mxu0 0
  %2338 = vmatpush2.bf16.msra.mxu0 %v2279
  %2339 = vmatprep.subr.bf16.mxu0 0
  %2340 = vmatpush2.bf16.msra.mxu0 %v2278
  %2341 = vmatprep.subr.bf16.mxu0 0
  %2342 = vmatpush2.bf16.msra.mxu0 %v2277
  %2343 = vmatprep.subr.bf16.mxu0 0
  %2344 = vmatpush2.bf16.msra.mxu0 %v2276
  %2345 = vmatprep.subr.bf16.mxu0 0
  %2346 = vmatpush2.bf16.msra.mxu0 %v2275
  %2347 = vmatprep.mubr.bf16.mxu0 %v2114
  %2348 = vmatmul.mubr.bf16.gmra.mxu0 %v2113
  %v2349 = vpop.f32.mrf.mxu0
  %v2350 = vadd.f32 %v2169, %v2349
  %v2351 = vpop.f32.mrf.mxu0
  %v2352 = vpop.f32.mrf.mxu0
  %v2353 = vadd.f32 %v2169, %v2352
  %v2354 = vpop.f32.mrf.mxu0
  %2355 = vdwg.mxu0
  %2356 = vmatprep.subr.bf16.mxu0 0
  %2357 = vmatpush1.bf16.msra.mxu0 %v2290
  %2358 = vmatprep.subr.bf16.mxu0 0
  %2359 = vmatpush1.bf16.msra.mxu0 %v2289
  %2360 = vmatprep.subr.bf16.mxu0 0
  %2361 = vmatpush1.bf16.msra.mxu0 %v2288
  %2362 = vmatprep.subr.bf16.mxu0 0
  %2363 = vmatpush1.bf16.msra.mxu0 %v2287
  %2364 = vmatprep.subr.bf16.mxu0 0
  %2365 = vmatpush1.bf16.msra.mxu0 %v2286
  %2366 = vmatprep.subr.bf16.mxu0 0
  %2367 = vmatpush1.bf16.msra.mxu0 %v2285
  %2368 = vmatprep.subr.bf16.mxu0 0
  %2369 = vmatpush1.bf16.msra.mxu0 %v2284
  %2370 = vmatprep.subr.bf16.mxu0 0
  %2371 = vmatpush1.bf16.msra.mxu0 %v2283
  %2372 = vmatprep.subr.bf16.mxu0 0
  %2373 = vmatpush2.bf16.msra.mxu0 0
  %2374 = vmatprep.subr.bf16.mxu0 0
  %2375 = vmatpush2.bf16.msra.mxu0 0
  %2376 = vmatprep.subr.bf16.mxu0 0
  %2377 = vmatpush2.bf16.msra.mxu0 0
  %2378 = vmatprep.subr.bf16.mxu0 0
  %2379 = vmatpush2.bf16.msra.mxu0 0
  %2380 = vmatprep.subr.bf16.mxu0 0
  %2381 = vmatpush2.bf16.msra.mxu0 0
  %2382 = vmatprep.subr.bf16.mxu0 0
  %2383 = vmatpush2.bf16.msra.mxu0 0
  %2384 = vmatprep.subr.bf16.mxu0 0
  %2385 = vmatpush2.bf16.msra.mxu0 0
  %2386 = vmatprep.subr.bf16.mxu0 0
  %2387 = vmatpush2.bf16.msra.mxu0 0
  %2388 = vmatprep.mubr.bf16.mxu0 0
  %2389 = vmatmul.mubr.bf16.gmra.mxu0 %v2115
  %v2390 = vpop.f32.mrf.mxu0
  %v2391 = vadd.f32 %v2350, %v2390
  %v2392 = vpop.f32.mrf.mxu0
  %v2393 = vpop.f32.mrf.mxu0
  %v2394 = vadd.f32 %v2353, %v2393
  %v2395 = vpop.f32.mrf.mxu0
  %2396 = vdwg.mxu0
  %v2397 = vadd.f32 %v2391, %v1809
  %v2398 = vadd.f32 %v2394, %v1810
  %v2399 = vpack.c.bf16 %v2398, %v2397
  %v2400 = vld [vmem:[%s21] sm:$0xf]
  %v2401 = vld [vmem:[%s21 + $0x4] sm:$0xf]
  %v2402 = vld [vmem:[%s21 + $0x8] sm:$0xf]
  %v2403 = vld [vmem:[%s21 + $0xc] sm:$0xf]
  %v2404 = vld [vmem:[%s21 + $0x10] sm:$0xf]
  %v2405 = vld [vmem:[%s21 + $0x14] sm:$0xf]
  %v2406 = vld [vmem:[%s21 + $0x18] sm:$0xf]
  %v2407 = vld [vmem:[%s21 + $0x1c] sm:$0xf]
  %v2408 = vld [vmem:[%s21 + $0x20] sm:$0xf]
  %v2409 = vld [vmem:[%s21 + $0x24] sm:$0xf]
  %v2410 = vld [vmem:[%s21 + $0x28] sm:$0xf]
  %v2411 = vld [vmem:[%s21 + $0x2c] sm:$0xf]
  %v2412 = vld [vmem:[%s21 + $0x30] sm:$0xf]
  %v2413 = vld [vmem:[%s21 + $0x34] sm:$0xf]
  %v2414 = vld [vmem:[%s21 + $0x38] sm:$0xf]
  %v2415 = vld [vmem:[%s21 + $0x3c] sm:$0xf]
  %v2416 = vld [vmem:[%s22] sm:$0x1]
  %v2418 = vlaneseq
  %v2419 = vshrl.u32 %v2418, 7
  %v2420 = vsub.s32 0, %v2419
  %v2421 = vrot.slane %v2416, %v2420
  %v2439 = vunpack.c.l.b16 %v2400
  %v2440 = vunpack.c.l.b16 %v2401
  %v2441 = vunpack.c.l.b16 %v2402
  %v2442 = vunpack.c.l.b16 %v2403
  %v2443 = vunpack.c.l.b16 %v2404
  %v2444 = vunpack.c.l.b16 %v2405
  %v2445 = vunpack.c.l.b16 %v2406
  %v2446 = vunpack.c.l.b16 %v2407
  %v2447 = vunpack.c.l.b16 %v2408
  %v2448 = vunpack.c.l.b16 %v2409
  %v2449 = vunpack.c.l.b16 %v2410
  %v2450 = vunpack.c.l.b16 %v2411
  %v2451 = vunpack.c.l.b16 %v2412
  %v2452 = vunpack.c.l.b16 %v2413
  %v2453 = vunpack.c.l.b16 %v2414
  %v2454 = vunpack.c.l.b16 %v2415
  %v2455 = vpack.c.b16 %v2440, %v2439
  %v2456 = vpack.c.b16 %v2442, %v2441
  %v2457 = vpack.c.b16 %v2444, %v2443
  %v2458 = vpack.c.b16 %v2446, %v2445
  %v2459 = vpack.c.b16 %v2448, %v2447
  %v2460 = vpack.c.b16 %v2450, %v2449
  %v2461 = vpack.c.b16 %v2452, %v2451
  %v2462 = vpack.c.b16 %v2454, %v2453
  %2471 = vmatprep.subr.bf16.mxu0 0
  %2472 = vmatpush1.bf16.msra.mxu0 %v2462
  %2473 = vmatprep.subr.bf16.mxu0 0
  %2474 = vmatpush1.bf16.msra.mxu0 %v2461
  %2475 = vmatprep.subr.bf16.mxu0 0
  %2476 = vmatpush1.bf16.msra.mxu0 %v2460
  %2477 = vmatprep.subr.bf16.mxu0 0
  %2478 = vmatpush1.bf16.msra.mxu0 %v2459
  %2479 = vmatprep.subr.bf16.mxu0 0
  %2480 = vmatpush1.bf16.msra.mxu0 %v2458
  %2481 = vmatprep.subr.bf16.mxu0 0
  %2482 = vmatpush1.bf16.msra.mxu0 %v2457
  %2483 = vmatprep.subr.bf16.mxu0 0
  %2484 = vmatpush1.bf16.msra.mxu0 %v2456
  %2485 = vmatprep.subr.bf16.mxu0 0
  %2486 = vmatpush1.bf16.msra.mxu0 %v2455
  %2487 = vmatprep.subr.bf16.mxu0 0
  %2488 = vmatpush2.bf16.msra.mxu0 0
  %2489 = vmatprep.subr.bf16.mxu0 0
  %2490 = vmatpush2.bf16.msra.mxu0 0
  %2491 = vmatprep.subr.bf16.mxu0 0
  %2492 = vmatpush2.bf16.msra.mxu0 0
  %2493 = vmatprep.subr.bf16.mxu0 0
  %2494 = vmatpush2.bf16.msra.mxu0 0
  %2495 = vmatprep.subr.bf16.mxu0 0
  %2496 = vmatpush2.bf16.msra.mxu0 0
  %2497 = vmatprep.subr.bf16.mxu0 0
  %2498 = vmatpush2.bf16.msra.mxu0 0
  %2499 = vmatprep.subr.bf16.mxu0 0
  %2500 = vmatpush2.bf16.msra.mxu0 0
  %2501 = vmatprep.subr.bf16.mxu0 0
  %2502 = vmatpush2.bf16.msra.mxu0 0
  %2503 = vmatprep.mubr.bf16.mxu0 0
  %2504 = vmatmul.mubr.bf16.gmra.mxu0 %v2399
  %v2505 = vpop.f32.mrf.mxu0
  %v2506 = vadd.f32 %v2421, %v2505
  %v2507 = vpop.f32.mrf.mxu0
  %v2508 = vpop.f32.mrf.mxu0
  %v2509 = vadd.f32 %v2421, %v2508
  %v2510 = vpop.f32.mrf.mxu0
  %2511 = vdwg.mxu0
  %v2512 = vsub.f32 0.0, %v2506
  %v2513 = vsub.f32 0.0, %v2509
  %v2514 = vmul.f32 %v2512, 1.442695
  %v2515 = vpow.pop %v2514
  %v2516 = vmul.f32 %v2513, 1.442695
  %v2517 = vpow.pop %v2516
  %v2518 = vadd.f32 %v2515, 1.0
  %v2519 = vadd.f32 %v2517, 1.0
  %v2520 = vrcp.pop %v2518
  %v2521 = vrcp.pop %v2519
  %2522 = vst [vmem:[%s23] sm:$0xff] %v2520
  %2523 = vst [vmem:[%s23 + $0x8] sm:$0xff] %v2521
  // Predicated region
  $region94: #{_lambda_.1} parent=0 // pred_check
    _
  $region95: #{_lambda_.1} parent=0 // pred_check_branch
    %2525 = sbr.rel (0) target = $region97
  $region96: #{_lambda_.1} parent=0 // pred_region
    _
  $region97: #{_lambda_.1} parent=0 // pred_fallthru
    _
  // Predicated region
  $region98: #{_lambda_.1} parent=0 // pred_check
    _
  $region99: #{_lambda_.1} parent=0 // pred_check_branch
    %2527 = sbr.rel (0) target = $region101
  $region100: #{_lambda_.1} parent=0 // pred_region
    _
  $region101: #{_lambda_.1} parent=0 // pred_fallthru
    _

</llo_original>
